<compile_context>
chip_gen: v6e
topology: v6e:2x2x1
jax: 0.10.0
libtpu: 0.0.40
codegen_flags: <defaults>
</compile_context>

<pallas_src>
import functools

import jax
import jax.numpy as jnp
from jax.experimental import pallas as pl
from jax.experimental.pallas import tpu as pltpu


# ----------------------------------------------------------------------------
# Fused all-layers encoder kernel.
# grid = (n_layers,); residual stream (B*T, D) lives in a VMEM scratch across
# the whole grid; per-layer weights are streamed (leading layer dim in HBM).
# ----------------------------------------------------------------------------
def fused_blocks_kernel(x_ref,
                        ln1_g_ref, ln1_b_ref,
                        wq_ref, bq_ref, wk_ref, bk_ref, wv_ref, bv_ref,
                        wo_ref, bo_ref,
                        ln2_g_ref, ln2_b_ref,
                        w1_ref, b1_ref, w2_ref, b2_ref,
                        o_ref, xs_ref,
                        *, batch, seq, n_heads, activation, norm_first):
    l = pl.program_id(0)
    n_layers = pl.num_programs(0)

    # Load the (embedded) input into the resident f32 residual stream once.
    @pl.when(l == 0)
    def _():
        xs_ref[...] = x_ref[...].astype(jnp.float32)

    B, T, H = batch, seq, n_heads
    N, D = xs_ref.shape
    Dh = D // H
    eps = 1e-5
    scale = 1.0 / float(Dh) ** 0.5

    x = xs_ref[...]                               # (N, D) f32 residual stream

    def layer_norm(z, g, b):                      # f32 LayerNorm (matches PyTorch)
        mu = jnp.mean(z, axis=-1, keepdims=True)
        var = jnp.mean(jnp.square(z - mu), axis=-1, keepdims=True)
        return (z - mu) * jax.lax.rsqrt(var + eps) * g + b

    # Per-layer parameters (block leading layer dim squeezed with [0]).
    ln1_g = ln1_g_ref[0]                          # (1, D)   f32
    ln1_b = ln1_b_ref[0]
    ln2_g = ln2_g_ref[0]
    ln2_b = ln2_b_ref[0]
    wq = wq_ref[0]                                # (H, D, Dh)  bf16
    wk = wk_ref[0]
    wv = wv_ref[0]
    wo = wo_ref[0]                                # (H, Dh, D)  bf16
    bq = bq_ref[0]                                # (H, 1, Dh)  f32
    bk = bk_ref[0]
    bv = bv_ref[0]
    bo = bo_ref[0]                                # (1, D)      f32
    w1 = w1_ref[0]                                # (D, dff)    bf16
    b1 = b1_ref[0]                                # (1, dff)    f32
    w2 = w2_ref[0]                                # (dff, D)    bf16
    b2 = b2_ref[0]                                # (1, D)      f32

    # Causal mask built once per layer step (static T), broadcast over heads.
    row = jax.lax.broadcasted_iota(jnp.int32, (T, T), 0)
    col = jax.lax.broadcasted_iota(jnp.int32, (T, T), 1)
    causal = (col <= row)[None, :, :]             # (1, T, T)
    neg = jnp.float32(-1e30)                      # finite mask value (NaN-safe)

    def mha(z):                                   # z: (N, D) f32
        zb = z.astype(jnp.bfloat16)
        outs = []
        for b in range(B):                        # static unroll over tiny batch
            xb = zb[b * T:(b + 1) * T, :]         # (T, D) bf16, aligned slice
            xbh = jnp.broadcast_to(xb[None, :, :], (H, T, D))      # (H, T, D)
            # Head-batched projections on the MXU, f32 accumulation.
            q = jnp.einsum('htd,hde->hte', xbh, wq,
                           preferred_element_type=jnp.float32) + bq    # (H,T,Dh)
            k = jnp.einsum('htd,hde->hte', xbh, wk,
                           preferred_element_type=jnp.float32) + bk
            v = jnp.einsum('htd,hde->hte', xbh, wv,
                           preferred_element_type=jnp.float32) + bv
            s = jnp.einsum('hqe,hke->hqk',
                           q.astype(jnp.bfloat16), k.astype(jnp.bfloat16),
                           preferred_element_type=jnp.float32) * scale # (H,T,T)
            s = jnp.where(causal, s, neg)
            m = jnp.max(s, axis=-1, keepdims=True)
            p = jnp.exp(s - m)                                         # f32
            p = p * pl.reciprocal(jnp.sum(p, axis=-1, keepdims=True),
                                  approx=True)
            o = jnp.einsum('hqk,hke->hqe',
                           p.astype(jnp.bfloat16), v.astype(jnp.bfloat16),
                           preferred_element_type=jnp.float32)         # (H,T,Dh)
            ob = jnp.einsum('hte,hed->htd',
                            o.astype(jnp.bfloat16), wo,
                            preferred_element_type=jnp.float32)        # (H,T,D)
            outs.append(jnp.sum(ob, axis=0) + bo)                      # (T, D)
        return jnp.concatenate(outs, axis=0)                           # (N, D)

    def ffn(z):                                   # z: (N, D) f32
        h = jnp.dot(z.astype(jnp.bfloat16), w1,
                    preferred_element_type=jnp.float32) + b1           # (N, dff)
        if activation == "relu":
            h = jnp.maximum(h, 0.0)
        else:  # exact GELU (PyTorch default for activation='gelu')
            h = 0.5 * h * (1.0 + jax.lax.erf(h * (2.0 ** -0.5)))
        return jnp.dot(h.astype(jnp.bfloat16), w2,
                       preferred_element_type=jnp.float32) + b2        # (N, D)

    # Dropout is identity in eval mode.
    if norm_first:
        x = x + mha(layer_norm(x, ln1_g, ln1_b))
        x = x + ffn(layer_norm(x, ln2_g, ln2_b))
    else:
        x = layer_norm(x + mha(x), ln1_g, ln1_b)
        x = layer_norm(x + ffn(x), ln2_g, ln2_b)

    xs_ref[...] = x                               # residual stays in VMEM

    @pl.when(l == n_layers - 1)
    def _():
        o_ref[...] = x.astype(o_ref.dtype)


def _layer_index_map(ndim):
    if ndim == 3:
        return lambda l: (l, 0, 0)
    return lambda l: (l, 0, 0, 0)


def fused_encoder_blocks(x_flat, blk, *, batch, seq, n_heads, activation,
                         norm_first):
    N, D = x_flat.shape
    L = blk["ln1_g"].shape[0]

    kernel = functools.partial(fused_blocks_kernel, batch=batch, seq=seq,
                               n_heads=n_heads, activation=activation,
                               norm_first=norm_first)

    names = ["ln1_g", "ln1_b", "wq", "bq", "wk", "bk", "wv", "bv",
             "wo", "bo", "ln2_g", "ln2_b", "w1", "b1", "w2", "b2"]

    args = [x_flat]
    in_specs = [pl.BlockSpec((N, D), lambda l: (0, 0))]   # fetched once
    for name in names:
        arr = blk[name]
        args.append(arr)
        in_specs.append(pl.BlockSpec((1,) + arr.shape[1:],
                                     _layer_index_map(arr.ndim)))

    return pl.pallas_call(
        kernel,
        out_shape=jax.ShapeDtypeStruct((N, D), jnp.float32),
        grid_spec=pltpu.PrefetchScalarGridSpec(
            num_scalar_prefetch=0,
            grid=(L,),
            in_specs=in_specs,
            out_specs=pl.BlockSpec((N, D), lambda l: (0, 0)),
            scratch_shapes=[pltpu.VMEM((N, D), jnp.float32)],
        ),
        compiler_params=pltpu.CompilerParams(
            # layer axis is a carried reduction over the resident activation
            dimension_semantics=("arbitrary",),
            # re-budget per generation for realistic D/dff (v7x has 64 MiB VMEM)
            vmem_limit_bytes=32 * 1024 * 1024,
        ),
    )(*args)


# ----------------------------------------------------------------------------
# Final vocabulary projection (last position only), tiled over V.
# ----------------------------------------------------------------------------
def final_linear_kernel(x_ref, w_ref, b_ref, o_ref):
    y = jnp.dot(x_ref[...].astype(jnp.bfloat16), w_ref[...],
                preferred_element_type=jnp.float32) + b_ref[...]
    o_ref[...] = y


def final_linear(x_last, w, b, *, tile_v=512):
    B, D = x_last.shape
    V = w.shape[1]
    if V % tile_v != 0:       # toy vocab: one full-width (lane-masked) block
        tile_v = V
    nv = V // tile_v
    return pl.pallas_call(
        final_linear_kernel,
        out_shape=jax.ShapeDtypeStruct((B, V), jnp.float32),
        grid_spec=pltpu.PrefetchScalarGridSpec(
            num_scalar_prefetch=0,
            grid=(nv,),
            in_specs=[pl.BlockSpec((B, D), lambda j: (0, 0)),
                      pl.BlockSpec((D, tile_v), lambda j: (0, j)),
                      pl.BlockSpec((1, tile_v), lambda j: (0, j))],
            out_specs=pl.BlockSpec((B, tile_v), lambda j: (0, j)),
        ),
        compiler_params=pltpu.CompilerParams(
            dimension_semantics=("parallel",)),
    )(x_last, w, b)


# ----------------------------------------------------------------------------
# Parameter init (weights stacked over layers, attention weights head-major,
# matmul weights stored bf16) + full forward.
# ----------------------------------------------------------------------------
def init_params(key, vocab_size, d_model, n_layers, n_heads, dff,
                max_block_size):
    D, H, L = d_model, n_heads, n_layers
    Dh = D // H
    keys = jax.random.split(key, 9)

    def nrm(k, shape):
        return 0.02 * jax.random.normal(k, shape, jnp.float32)

    # Generate standard (D, D_out) matrices, then reshape to head-major form.
    wq = nrm(keys[2], (L, D, D)).reshape(L, D, H, Dh).transpose(0, 2, 1, 3)
    wk = nrm(keys[3], (L, D, D)).reshape(L, D, H, Dh).transpose(0, 2, 1, 3)
    wv = nrm(keys[4], (L, D, D)).reshape(L, D, H, Dh).transpose(0, 2, 1, 3)
    wo = nrm(keys[5], (L, D, D)).reshape(L, H, Dh, D)

    blocks = {
        "ln1_g": jnp.ones((L, 1, D), jnp.float32),
        "ln1_b": jnp.zeros((L, 1, D), jnp.float32),
        "wq": wq.astype(jnp.bfloat16), "bq": jnp.zeros((L, H, 1, Dh), jnp.float32),
        "wk": wk.astype(jnp.bfloat16), "bk": jnp.zeros((L, H, 1, Dh), jnp.float32),
        "wv": wv.astype(jnp.bfloat16), "bv": jnp.zeros((L, H, 1, Dh), jnp.float32),
        "wo": wo.astype(jnp.bfloat16), "bo": jnp.zeros((L, 1, D), jnp.float32),
        "ln2_g": jnp.ones((L, 1, D), jnp.float32),
        "ln2_b": jnp.zeros((L, 1, D), jnp.float32),
        "w1": nrm(keys[6], (L, D, dff)).astype(jnp.bfloat16),
        "b1": jnp.zeros((L, 1, dff), jnp.float32),
        "w2": nrm(keys[7], (L, dff, D)).astype(jnp.bfloat16),
        "b2": jnp.zeros((L, 1, D), jnp.float32),
    }
    return {
        "tok_emb": nrm(keys[0], (vocab_size, D)),
        "pos_emb": nrm(keys[1], (max_block_size, D)),
        "w_out": nrm(keys[8], (D, vocab_size)).astype(jnp.bfloat16),
        "b_out": jnp.zeros((1, vocab_size), jnp.float32),
        "blocks": blocks,
    }


def transformer_lm_forward(tokens, params, *, n_heads, activation, norm_first,
                           max_block_size):
    """Inference forward (targets=None): returns (logits[B,1,V], None)."""
    B, T = tokens.shape
    assert T <= max_block_size
    D = params["tok_emb"].shape[1]

    # Embedding gather + add is plain-JAX glue; dropout = identity (eval).
    tok = jnp.take(params["tok_emb"], tokens, axis=0)        # (B, T, D)
    pos = params["pos_emb"][:T][None, :, :]                  # (1, T, D)
    x = (tok + pos).reshape(B * T, D)                        # flatten batch rows

    y = fused_encoder_blocks(x, params["blocks"], batch=B, seq=T,
                             n_heads=n_heads, activation=activation,
                             norm_first=norm_first)          # (B*T, D)

    x_last = y.reshape(B, T, D)[:, -1, :]                    # (B, D)
    logits = final_linear(x_last, params["w_out"], params["b_out"])   # (B, V)
    return logits[:, None, :], None                          # like x[:, [-1], :]


if __name__ == "__main__":
    vocab_size = 64
    d_model = 32
    n_layers = 2
    n_heads = 4
    dff = 64
    activation = "relu"
    norm_first = True
    max_block_size = 16
    B, T = 2, 8

    key = jax.random.PRNGKey(0)
    kp, kx = jax.random.split(key)
    params = init_params(kp, vocab_size, d_model, n_layers, n_heads, dff,
                         max_block_size)
    tokens = jax.random.randint(kx, (B, T), 0, vocab_size, dtype=jnp.int32)

    logits, loss = transformer_lm_forward(
        tokens, params, n_heads=n_heads, activation=activation,
        norm_first=norm_first, max_block_size=max_block_size)
    jax.block_until_ready(logits)
    assert logits.shape == (B, 1, vocab_size)
    assert loss is None
    print("KERNEL_OK")
</pallas_src>

<mosaic_0001>
module attributes {stable_mosaic.version = 11 : i64} {
  func.func @fused_blocks_kernel(%arg0: i32, %arg1: memref<16x32xf32, #tpu.memory_space<vmem>>, %arg2: memref<1x1x32xf32, #tpu.memory_space<vmem>>, %arg3: memref<1x1x32xf32, #tpu.memory_space<vmem>>, %arg4: memref<1x4x32x8xbf16, #tpu.memory_space<vmem>>, %arg5: memref<1x4x1x8xf32, #tpu.memory_space<vmem>>, %arg6: memref<1x4x32x8xbf16, #tpu.memory_space<vmem>>, %arg7: memref<1x4x1x8xf32, #tpu.memory_space<vmem>>, %arg8: memref<1x4x32x8xbf16, #tpu.memory_space<vmem>>, %arg9: memref<1x4x1x8xf32, #tpu.memory_space<vmem>>, %arg10: memref<1x4x8x32xbf16, #tpu.memory_space<vmem>>, %arg11: memref<1x1x32xf32, #tpu.memory_space<vmem>>, %arg12: memref<1x1x32xf32, #tpu.memory_space<vmem>>, %arg13: memref<1x1x32xf32, #tpu.memory_space<vmem>>, %arg14: memref<1x32x64xbf16, #tpu.memory_space<vmem>>, %arg15: memref<1x1x64xf32, #tpu.memory_space<vmem>>, %arg16: memref<1x64x32xbf16, #tpu.memory_space<vmem>>, %arg17: memref<1x1x32xf32, #tpu.memory_space<vmem>>, %arg18: memref<16x32xf32, #tpu.memory_space<vmem>>, %arg19: memref<16x32xf32, #tpu.memory_space<vmem>>) attributes {dimension_semantics = [#tpu.dimension_semantics<arbitrary>], iteration_bounds = array<i64: 2>, scalar_prefetch = 0 : i64, scratch_operands = 1 : i64, tpu.core_type = #tpu.core_type<tc>, window_params = [{pipeline_mode = #tpu.pipeline_mode<synchronous>, transform_indices = @transform_0, window_bounds = array<i64: 16, 32>}, {transform_indices = @transform_1, window_bounds = array<i64: 1, 1, 32>}, {transform_indices = @transform_2, window_bounds = array<i64: 1, 1, 32>}, {transform_indices = @transform_3, window_bounds = array<i64: 1, 4, 32, 8>}, {transform_indices = @transform_4, window_bounds = array<i64: 1, 4, 1, 8>}, {transform_indices = @transform_5, window_bounds = array<i64: 1, 4, 32, 8>}, {transform_indices = @transform_6, window_bounds = array<i64: 1, 4, 1, 8>}, {transform_indices = @transform_7, window_bounds = array<i64: 1, 4, 32, 8>}, {transform_indices = @transform_8, window_bounds = array<i64: 1, 4, 1, 8>}, {transform_indices = @transform_9, window_bounds = array<i64: 1, 4, 8, 32>}, {transform_indices = @transform_10, window_bounds = array<i64: 1, 1, 32>}, {transform_indices = @transform_11, window_bounds = array<i64: 1, 1, 32>}, {transform_indices = @transform_12, window_bounds = array<i64: 1, 1, 32>}, {transform_indices = @transform_13, window_bounds = array<i64: 1, 32, 64>}, {transform_indices = @transform_14, window_bounds = array<i64: 1, 1, 64>}, {transform_indices = @transform_15, window_bounds = array<i64: 1, 64, 32>}, {transform_indices = @transform_16, window_bounds = array<i64: 1, 1, 32>}, {pipeline_mode = #tpu.pipeline_mode<synchronous>, transform_indices = @transform_17, window_bounds = array<i64: 16, 32>}]} {
    %c0_i32 = arith.constant 0 : i32
    %0 = arith.cmpi eq, %arg0, %c0_i32 : i32
    %1 = arith.extui %0 : i1 to i32
    %c0_i32_0 = arith.constant 0 : i32
    %2 = arith.cmpi ne, %1, %c0_i32_0 : i32
    scf.if %2 {
      %c0_94 = arith.constant 0 : index
      %c0_95 = arith.constant 0 : index
      %182 = vector.load %arg1[%c0_94, %c0_95] : memref<16x32xf32, #tpu.memory_space<vmem>>, vector<16x32xf32>
      %c0_96 = arith.constant 0 : index
      %c0_97 = arith.constant 0 : index
      %183 = vector.load %arg19[%c0_96, %c0_97] : memref<16x32xf32, #tpu.memory_space<vmem>>, vector<16x32xf32>
      tpu.vector_store %arg19[%c0_96, %c0_97], %182 {strides = array<i32>} : memref<16x32xf32, #tpu.memory_space<vmem>>, vector<16x32xf32>,
    } else {
    }
    %c0 = arith.constant 0 : index
    %c0_1 = arith.constant 0 : index
    %3 = vector.load %arg19[%c0, %c0_1] : memref<16x32xf32, #tpu.memory_space<vmem>>, vector<16x32xf32>
    %c0_2 = arith.constant 0 : index
    %c0_3 = arith.constant 0 : index
    %c0_4 = arith.constant 0 : index
    %4 = vector.load %arg2[%c0_2, %c0_3, %c0_4] : memref<1x1x32xf32, #tpu.memory_space<vmem>>, vector<1x1x32xf32>
    %5 = vector.shape_cast %4 : vector<1x1x32xf32> to vector<1x32xf32>
    %c0_5 = arith.constant 0 : index
    %c0_6 = arith.constant 0 : index
    %c0_7 = arith.constant 0 : index
    %6 = vector.load %arg3[%c0_5, %c0_6, %c0_7] : memref<1x1x32xf32, #tpu.memory_space<vmem>>, vector<1x1x32xf32>
    %7 = vector.shape_cast %6 : vector<1x1x32xf32> to vector<1x32xf32>
    %c0_8 = arith.constant 0 : index
    %c0_9 = arith.constant 0 : index
    %c0_10 = arith.constant 0 : index
    %8 = vector.load %arg12[%c0_8, %c0_9, %c0_10] : memref<1x1x32xf32, #tpu.memory_space<vmem>>, vector<1x1x32xf32>
    %9 = vector.shape_cast %8 : vector<1x1x32xf32> to vector<1x32xf32>
    %c0_11 = arith.constant 0 : index
    %c0_12 = arith.constant 0 : index
    %c0_13 = arith.constant 0 : index
    %10 = vector.load %arg13[%c0_11, %c0_12, %c0_13] : memref<1x1x32xf32, #tpu.memory_space<vmem>>, vector<1x1x32xf32>
    %11 = vector.shape_cast %10 : vector<1x1x32xf32> to vector<1x32xf32>
    %c0_14 = arith.constant 0 : index
    %c0_15 = arith.constant 0 : index
    %c0_16 = arith.constant 0 : index
    %c0_17 = arith.constant 0 : index
    %12 = vector.load %arg4[%c0_14, %c0_15, %c0_16, %c0_17] : memref<1x4x32x8xbf16, #tpu.memory_space<vmem>>, vector<1x4x32x8xbf16>
    %13 = vector.shape_cast %12 : vector<1x4x32x8xbf16> to vector<4x32x8xbf16>
    %c0_18 = arith.constant 0 : index
    %c0_19 = arith.constant 0 : index
    %c0_20 = arith.constant 0 : index
    %c0_21 = arith.constant 0 : index
    %14 = vector.load %arg6[%c0_18, %c0_19, %c0_20, %c0_21] : memref<1x4x32x8xbf16, #tpu.memory_space<vmem>>, vector<1x4x32x8xbf16>
    %15 = vector.shape_cast %14 : vector<1x4x32x8xbf16> to vector<4x32x8xbf16>
    %c0_22 = arith.constant 0 : index
    %c0_23 = arith.constant 0 : index
    %c0_24 = arith.constant 0 : index
    %c0_25 = arith.constant 0 : index
    %16 = vector.load %arg8[%c0_22, %c0_23, %c0_24, %c0_25] : memref<1x4x32x8xbf16, #tpu.memory_space<vmem>>, vector<1x4x32x8xbf16>
    %17 = vector.shape_cast %16 : vector<1x4x32x8xbf16> to vector<4x32x8xbf16>
    %c0_26 = arith.constant 0 : index
    %c0_27 = arith.constant 0 : index
    %c0_28 = arith.constant 0 : index
    %c0_29 = arith.constant 0 : index
    %18 = vector.load %arg10[%c0_26, %c0_27, %c0_28, %c0_29] : memref<1x4x8x32xbf16, #tpu.memory_space<vmem>>, vector<1x4x8x32xbf16>
    %19 = vector.shape_cast %18 : vector<1x4x8x32xbf16> to vector<4x8x32xbf16>
    %c0_30 = arith.constant 0 : index
    %c0_31 = arith.constant 0 : index
    %c0_32 = arith.constant 0 : index
    %c0_33 = arith.constant 0 : index
    %20 = vector.load %arg5[%c0_30, %c0_31, %c0_32, %c0_33] : memref<1x4x1x8xf32, #tpu.memory_space<vmem>>, vector<1x4x1x8xf32>
    %21 = vector.shape_cast %20 : vector<1x4x1x8xf32> to vector<4x1x8xf32>
    %c0_34 = arith.constant 0 : index
    %c0_35 = arith.constant 0 : index
    %c0_36 = arith.constant 0 : index
    %c0_37 = arith.constant 0 : index
    %22 = vector.load %arg7[%c0_34, %c0_35, %c0_36, %c0_37] : memref<1x4x1x8xf32, #tpu.memory_space<vmem>>, vector<1x4x1x8xf32>
    %23 = vector.shape_cast %22 : vector<1x4x1x8xf32> to vector<4x1x8xf32>
    %c0_38 = arith.constant 0 : index
    %c0_39 = arith.constant 0 : index
    %c0_40 = arith.constant 0 : index
    %c0_41 = arith.constant 0 : index
    %24 = vector.load %arg9[%c0_38, %c0_39, %c0_40, %c0_41] : memref<1x4x1x8xf32, #tpu.memory_space<vmem>>, vector<1x4x1x8xf32>
    %25 = vector.shape_cast %24 : vector<1x4x1x8xf32> to vector<4x1x8xf32>
    %c0_42 = arith.constant 0 : index
    %c0_43 = arith.constant 0 : index
    %c0_44 = arith.constant 0 : index
    %26 = vector.load %arg11[%c0_42, %c0_43, %c0_44] : memref<1x1x32xf32, #tpu.memory_space<vmem>>, vector<1x1x32xf32>
    %27 = vector.shape_cast %26 : vector<1x1x32xf32> to vector<1x32xf32>
    %c0_45 = arith.constant 0 : index
    %c0_46 = arith.constant 0 : index
    %c0_47 = arith.constant 0 : index
    %28 = vector.load %arg14[%c0_45, %c0_46, %c0_47] : memref<1x32x64xbf16, #tpu.memory_space<vmem>>, vector<1x32x64xbf16>
    %29 = vector.shape_cast %28 : vector<1x32x64xbf16> to vector<32x64xbf16>
    %c0_48 = arith.constant 0 : index
    %c0_49 = arith.constant 0 : index
    %c0_50 = arith.constant 0 : index
    %30 = vector.load %arg15[%c0_48, %c0_49, %c0_50] : memref<1x1x64xf32, #tpu.memory_space<vmem>>, vector<1x1x64xf32>
    %31 = vector.shape_cast %30 : vector<1x1x64xf32> to vector<1x64xf32>
    %c0_51 = arith.constant 0 : index
    %c0_52 = arith.constant 0 : index
    %c0_53 = arith.constant 0 : index
    %32 = vector.load %arg16[%c0_51, %c0_52, %c0_53] : memref<1x64x32xbf16, #tpu.memory_space<vmem>>, vector<1x64x32xbf16>
    %33 = vector.shape_cast %32 : vector<1x64x32xbf16> to vector<64x32xbf16>
    %c0_54 = arith.constant 0 : index
    %c0_55 = arith.constant 0 : index
    %c0_56 = arith.constant 0 : index
    %34 = vector.load %arg17[%c0_54, %c0_55, %c0_56] : memref<1x1x32xf32, #tpu.memory_space<vmem>>, vector<1x1x32xf32>
    %35 = vector.shape_cast %34 : vector<1x1x32xf32> to vector<1x32xf32>
    %36 = tpu.iota {dimensions = array<i32: 0>} : vector<8x8xi32>
    %37 = tpu.iota {dimensions = array<i32: 1>} : vector<8x8xi32>
    %38 = arith.cmpi sle, %37, %36 : vector<8x8xi32>
    %39 = vector.shape_cast %38 : vector<8x8xi1> to vector<1x8x8xi1>
    %cst = arith.constant dense<0.000000e+00> : vector<16xf32>
    %40 = vector.multi_reduction <add>, %3, %cst [1] : vector<16x32xf32> to vector<16xf32>
    %41 = vector.shape_cast %40 : vector<16xf32> to vector<16x1xf32>
    %cst_57 = arith.constant 3.200000e+01 : f32
    %42 = vector.broadcast %cst_57 : f32 to vector<16x1xf32>
    %43 = arith.divf %41, %42 : vector<16x1xf32>
    %44 = vector.broadcast %43 : vector<16x1xf32> to vector<16x32xf32>
    %45 = arith.subf %3, %44 : vector<16x32xf32>
    %46 = arith.mulf %45, %45 : vector<16x32xf32>
    %cst_58 = arith.constant dense<0.000000e+00> : vector<16xf32>
    %47 = vector.multi_reduction <add>, %46, %cst_58 [1] : vector<16x32xf32> to vector<16xf32>
    %48 = vector.shape_cast %47 : vector<16xf32> to vector<16x1xf32>
    %cst_59 = arith.constant 3.200000e+01 : f32
    %49 = vector.broadcast %cst_59 : f32 to vector<16x1xf32>
    %50 = arith.divf %48, %49 : vector<16x1xf32>
    %51 = vector.broadcast %43 : vector<16x1xf32> to vector<16x32xf32>
    %52 = arith.subf %3, %51 : vector<16x32xf32>
    %cst_60 = arith.constant 9.99999974E-6 : f32
    %53 = vector.broadcast %cst_60 : f32 to vector<16x1xf32>
    %54 = arith.addf %50, %53 : vector<16x1xf32>
    %55 = math.rsqrt %54 : vector<16x1xf32>
    %56 = vector.broadcast %55 : vector<16x1xf32> to vector<16x32xf32>
    %57 = arith.mulf %52, %56 : vector<16x32xf32>
    %58 = vector.broadcast %5 : vector<1x32xf32> to vector<16x32xf32>
    %59 = arith.mulf %57, %58 : vector<16x32xf32>
    %60 = vector.broadcast %7 : vector<1x32xf32> to vector<16x32xf32>
    %61 = arith.addf %59, %60 : vector<16x32xf32>
    %62 = arith.truncf %61 : vector<16x32xf32> to vector<16x32xbf16>
    %63 = vector.extract_strided_slice %62 {offsets = [0, 0], sizes = [8, 32], strides = [1, 1]} : vector<16x32xbf16> to vector<8x32xbf16>
    %64 = vector.shape_cast %63 : vector<8x32xbf16> to vector<1x8x32xbf16>
    %65 = vector.shape_cast %64 : vector<1x8x32xbf16> to vector<1x8x32xbf16>
    %66 = vector.broadcast %65 : vector<1x8x32xbf16> to vector<4x8x32xbf16>
    "tpu.trace_start"() <{level = 10 : i32, message = "htd,hde->hte"}> : () -> ()
    %cst_61 = arith.constant dense<0.000000e+00> : vector<4x8x8xf32>
    %67 = tpu.matmul %66, %13, %cst_61 {dimension_numbers = #tpu.dot_dimension_numbers<[2], [1], [1], [2], [0, 0, 0, 1, 1, 2], [0], [0]>} : vector<4x8x32xbf16>, vector<4x32x8xbf16>, vector<4x8x8xf32> -> vector<4x8x8xf32>
    "tpu.trace_stop"() : () -> ()
    %68 = vector.broadcast %21 : vector<4x1x8xf32> to vector<4x8x8xf32>
    %69 = arith.addf %67, %68 : vector<4x8x8xf32>
    "tpu.trace_start"() <{level = 10 : i32, message = "htd,hde->hte"}> : () -> ()
    %cst_62 = arith.constant dense<0.000000e+00> : vector<4x8x8xf32>
    %70 = tpu.matmul %66, %15, %cst_62 {dimension_numbers = #tpu.dot_dimension_numbers<[2], [1], [1], [2], [0, 0, 0, 1, 1, 2], [0], [0]>} : vector<4x8x32xbf16>, vector<4x32x8xbf16>, vector<4x8x8xf32> -> vector<4x8x8xf32>
    "tpu.trace_stop"() : () -> ()
    %71 = vector.broadcast %23 : vector<4x1x8xf32> to vector<4x8x8xf32>
    %72 = arith.addf %70, %71 : vector<4x8x8xf32>
    "tpu.trace_start"() <{level = 10 : i32, message = "htd,hde->hte"}> : () -> ()
    %cst_63 = arith.constant dense<0.000000e+00> : vector<4x8x8xf32>
    %73 = tpu.matmul %66, %17, %cst_63 {dimension_numbers = #tpu.dot_dimension_numbers<[2], [1], [1], [2], [0, 0, 0, 1, 1, 2], [0], [0]>} : vector<4x8x32xbf16>, vector<4x32x8xbf16>, vector<4x8x8xf32> -> vector<4x8x8xf32>
    "tpu.trace_stop"() : () -> ()
    %74 = vector.broadcast %25 : vector<4x1x8xf32> to vector<4x8x8xf32>
    %75 = arith.addf %73, %74 : vector<4x8x8xf32>
    %76 = arith.truncf %69 : vector<4x8x8xf32> to vector<4x8x8xbf16>
    %77 = arith.truncf %72 : vector<4x8x8xf32> to vector<4x8x8xbf16>
    "tpu.trace_start"() <{level = 10 : i32, message = "hqe,hke->hqk"}> : () -> ()
    %cst_64 = arith.constant dense<0.000000e+00> : vector<4x8x8xf32>
    %78 = tpu.matmul %76, %77, %cst_64 {dimension_numbers = #tpu.dot_dimension_numbers<[2], [2], [1], [1], [0, 0, 0, 1, 1, 1], [0], [0]>} : vector<4x8x8xbf16>, vector<4x8x8xbf16>, vector<4x8x8xf32> -> vector<4x8x8xf32>
    "tpu.trace_stop"() : () -> ()
    %cst_65 = arith.constant 0.353553385 : f32
    %79 = vector.broadcast %cst_65 : f32 to vector<4x8x8xf32>
    %80 = arith.mulf %78, %79 : vector<4x8x8xf32>
    %cst_66 = arith.constant -1.000000e+30 : f32
    %81 = vector.shape_cast %39 : vector<1x8x8xi1> to vector<1x8x8xi1>
    %82 = vector.broadcast %81 : vector<1x8x8xi1> to vector<4x8x8xi1>
    %83 = vector.broadcast %cst_66 : f32 to vector<4x8x8xf32>
    %84 = arith.select %82, %80, %83 : vector<4x8x8xi1>, vector<4x8x8xf32>
    %cst_67 = arith.constant dense<0xFF800000> : vector<4x8xf32>
    %85 = vector.multi_reduction <maximumf>, %84, %cst_67 [2] : vector<4x8x8xf32> to vector<4x8xf32>
    %86 = vector.shape_cast %85 : vector<4x8xf32> to vector<4x8x1xf32>
    %87 = vector.broadcast %86 : vector<4x8x1xf32> to vector<4x8x8xf32>
    %88 = arith.subf %84, %87 : vector<4x8x8xf32>
    %89 = math.exp %88 : vector<4x8x8xf32>
    %cst_68 = arith.constant dense<0.000000e+00> : vector<4x8xf32>
    %90 = vector.multi_reduction <add>, %89, %cst_68 [2] : vector<4x8x8xf32> to vector<4x8xf32>
    %91 = vector.shape_cast %90 : vector<4x8xf32> to vector<4x8x1xf32>
    %92 = tpu.reciprocal %91 {approx = true} : vector<4x8x1xf32> -> vector<4x8x1xf32>
    %93 = vector.broadcast %92 : vector<4x8x1xf32> to vector<4x8x8xf32>
    %94 = arith.mulf %89, %93 : vector<4x8x8xf32>
    %95 = arith.truncf %94 : vector<4x8x8xf32> to vector<4x8x8xbf16>
    %96 = arith.truncf %75 : vector<4x8x8xf32> to vector<4x8x8xbf16>
    "tpu.trace_start"() <{level = 10 : i32, message = "hqk,hke->hqe"}> : () -> ()
    %cst_69 = arith.constant dense<0.000000e+00> : vector<4x8x8xf32>
    %97 = tpu.matmul %95, %96, %cst_69 {dimension_numbers = #tpu.dot_dimension_numbers<[2], [1], [1], [2], [0, 0, 0, 1, 1, 2], [0], [0]>} : vector<4x8x8xbf16>, vector<4x8x8xbf16>, vector<4x8x8xf32> -> vector<4x8x8xf32>
    "tpu.trace_stop"() : () -> ()
    %98 = arith.truncf %97 : vector<4x8x8xf32> to vector<4x8x8xbf16>
    "tpu.trace_start"() <{level = 10 : i32, message = "hte,hed->htd"}> : () -> ()
    %cst_70 = arith.constant dense<0.000000e+00> : vector<4x8x32xf32>
    %99 = tpu.matmul %98, %19, %cst_70 {dimension_numbers = #tpu.dot_dimension_numbers<[2], [1], [1], [2], [0, 0, 0, 1, 1, 2], [0], [0]>} : vector<4x8x8xbf16>, vector<4x8x32xbf16>, vector<4x8x32xf32> -> vector<4x8x32xf32>
    "tpu.trace_stop"() : () -> ()
    %cst_71 = arith.constant dense<0.000000e+00> : vector<8x32xf32>
    %100 = vector.multi_reduction <add>, %99, %cst_71 [0] : vector<4x8x32xf32> to vector<8x32xf32>
    %101 = vector.broadcast %27 : vector<1x32xf32> to vector<8x32xf32>
    %102 = arith.addf %100, %101 : vector<8x32xf32>
    %103 = vector.extract_strided_slice %62 {offsets = [8, 0], sizes = [8, 32], strides = [1, 1]} : vector<16x32xbf16> to vector<8x32xbf16>
    %104 = vector.shape_cast %103 : vector<8x32xbf16> to vector<1x8x32xbf16>
    %105 = vector.shape_cast %104 : vector<1x8x32xbf16> to vector<1x8x32xbf16>
    %106 = vector.broadcast %105 : vector<1x8x32xbf16> to vector<4x8x32xbf16>
    "tpu.trace_start"() <{level = 10 : i32, message = "htd,hde->hte"}> : () -> ()
    %cst_72 = arith.constant dense<0.000000e+00> : vector<4x8x8xf32>
    %107 = tpu.matmul %106, %13, %cst_72 {dimension_numbers = #tpu.dot_dimension_numbers<[2], [1], [1], [2], [0, 0, 0, 1, 1, 2], [0], [0]>} : vector<4x8x32xbf16>, vector<4x32x8xbf16>, vector<4x8x8xf32> -> vector<4x8x8xf32>
    "tpu.trace_stop"() : () -> ()
    %108 = vector.broadcast %21 : vector<4x1x8xf32> to vector<4x8x8xf32>
    %109 = arith.addf %107, %108 : vector<4x8x8xf32>
    "tpu.trace_start"() <{level = 10 : i32, message = "htd,hde->hte"}> : () -> ()
    %cst_73 = arith.constant dense<0.000000e+00> : vector<4x8x8xf32>
    %110 = tpu.matmul %106, %15, %cst_73 {dimension_numbers = #tpu.dot_dimension_numbers<[2], [1], [1], [2], [0, 0, 0, 1, 1, 2], [0], [0]>} : vector<4x8x32xbf16>, vector<4x32x8xbf16>, vector<4x8x8xf32> -> vector<4x8x8xf32>
    "tpu.trace_stop"() : () -> ()
    %111 = vector.broadcast %23 : vector<4x1x8xf32> to vector<4x8x8xf32>
    %112 = arith.addf %110, %111 : vector<4x8x8xf32>
    "tpu.trace_start"() <{level = 10 : i32, message = "htd,hde->hte"}> : () -> ()
    %cst_74 = arith.constant dense<0.000000e+00> : vector<4x8x8xf32>
    %113 = tpu.matmul %106, %17, %cst_74 {dimension_numbers = #tpu.dot_dimension_numbers<[2], [1], [1], [2], [0, 0, 0, 1, 1, 2], [0], [0]>} : vector<4x8x32xbf16>, vector<4x32x8xbf16>, vector<4x8x8xf32> -> vector<4x8x8xf32>
    "tpu.trace_stop"() : () -> ()
    %114 = vector.broadcast %25 : vector<4x1x8xf32> to vector<4x8x8xf32>
    %115 = arith.addf %113, %114 : vector<4x8x8xf32>
    %116 = arith.truncf %109 : vector<4x8x8xf32> to vector<4x8x8xbf16>
    %117 = arith.truncf %112 : vector<4x8x8xf32> to vector<4x8x8xbf16>
    "tpu.trace_start"() <{level = 10 : i32, message = "hqe,hke->hqk"}> : () -> ()
    %cst_75 = arith.constant dense<0.000000e+00> : vector<4x8x8xf32>
    %118 = tpu.matmul %116, %117, %cst_75 {dimension_numbers = #tpu.dot_dimension_numbers<[2], [2], [1], [1], [0, 0, 0, 1, 1, 1], [0], [0]>} : vector<4x8x8xbf16>, vector<4x8x8xbf16>, vector<4x8x8xf32> -> vector<4x8x8xf32>
    "tpu.trace_stop"() : () -> ()
    %cst_76 = arith.constant 0.353553385 : f32
    %119 = vector.broadcast %cst_76 : f32 to vector<4x8x8xf32>
    %120 = arith.mulf %118, %119 : vector<4x8x8xf32>
    %cst_77 = arith.constant -1.000000e+30 : f32
    %121 = vector.shape_cast %39 : vector<1x8x8xi1> to vector<1x8x8xi1>
    %122 = vector.broadcast %121 : vector<1x8x8xi1> to vector<4x8x8xi1>
    %123 = vector.broadcast %cst_77 : f32 to vector<4x8x8xf32>
    %124 = arith.select %122, %120, %123 : vector<4x8x8xi1>, vector<4x8x8xf32>
    %cst_78 = arith.constant dense<0xFF800000> : vector<4x8xf32>
    %125 = vector.multi_reduction <maximumf>, %124, %cst_78 [2] : vector<4x8x8xf32> to vector<4x8xf32>
    %126 = vector.shape_cast %125 : vector<4x8xf32> to vector<4x8x1xf32>
    %127 = vector.broadcast %126 : vector<4x8x1xf32> to vector<4x8x8xf32>
    %128 = arith.subf %124, %127 : vector<4x8x8xf32>
    %129 = math.exp %128 : vector<4x8x8xf32>
    %cst_79 = arith.constant dense<0.000000e+00> : vector<4x8xf32>
    %130 = vector.multi_reduction <add>, %129, %cst_79 [2] : vector<4x8x8xf32> to vector<4x8xf32>
    %131 = vector.shape_cast %130 : vector<4x8xf32> to vector<4x8x1xf32>
    %132 = tpu.reciprocal %131 {approx = true} : vector<4x8x1xf32> -> vector<4x8x1xf32>
    %133 = vector.broadcast %132 : vector<4x8x1xf32> to vector<4x8x8xf32>
    %134 = arith.mulf %129, %133 : vector<4x8x8xf32>
    %135 = arith.truncf %134 : vector<4x8x8xf32> to vector<4x8x8xbf16>
    %136 = arith.truncf %115 : vector<4x8x8xf32> to vector<4x8x8xbf16>
    "tpu.trace_start"() <{level = 10 : i32, message = "hqk,hke->hqe"}> : () -> ()
    %cst_80 = arith.constant dense<0.000000e+00> : vector<4x8x8xf32>
    %137 = tpu.matmul %135, %136, %cst_80 {dimension_numbers = #tpu.dot_dimension_numbers<[2], [1], [1], [2], [0, 0, 0, 1, 1, 2], [0], [0]>} : vector<4x8x8xbf16>, vector<4x8x8xbf16>, vector<4x8x8xf32> -> vector<4x8x8xf32>
    "tpu.trace_stop"() : () -> ()
    %138 = arith.truncf %137 : vector<4x8x8xf32> to vector<4x8x8xbf16>
    "tpu.trace_start"() <{level = 10 : i32, message = "hte,hed->htd"}> : () -> ()
    %cst_81 = arith.constant dense<0.000000e+00> : vector<4x8x32xf32>
    %139 = tpu.matmul %138, %19, %cst_81 {dimension_numbers = #tpu.dot_dimension_numbers<[2], [1], [1], [2], [0, 0, 0, 1, 1, 2], [0], [0]>} : vector<4x8x8xbf16>, vector<4x8x32xbf16>, vector<4x8x32xf32> -> vector<4x8x32xf32>
    "tpu.trace_stop"() : () -> ()
    %cst_82 = arith.constant dense<0.000000e+00> : vector<8x32xf32>
    %140 = vector.multi_reduction <add>, %139, %cst_82 [0] : vector<4x8x32xf32> to vector<8x32xf32>
    %141 = vector.broadcast %27 : vector<1x32xf32> to vector<8x32xf32>
    %142 = arith.addf %140, %141 : vector<8x32xf32>
    %143 = tpu.concatenate %102, %142 in 0 : vector<8x32xf32>, vector<8x32xf32> -> vector<16x32xf32>
    %144 = arith.addf %3, %143 : vector<16x32xf32>
    %cst_83 = arith.constant dense<0.000000e+00> : vector<16xf32>
    %145 = vector.multi_reduction <add>, %144, %cst_83 [1] : vector<16x32xf32> to vector<16xf32>
    %146 = vector.shape_cast %145 : vector<16xf32> to vector<16x1xf32>
    %cst_84 = arith.constant 3.200000e+01 : f32
    %147 = vector.broadcast %cst_84 : f32 to vector<16x1xf32>
    %148 = arith.divf %146, %147 : vector<16x1xf32>
    %149 = vector.broadcast %148 : vector<16x1xf32> to vector<16x32xf32>
    %150 = arith.subf %144, %149 : vector<16x32xf32>
    %151 = arith.mulf %150, %150 : vector<16x32xf32>
    %cst_85 = arith.constant dense<0.000000e+00> : vector<16xf32>
    %152 = vector.multi_reduction <add>, %151, %cst_85 [1] : vector<16x32xf32> to vector<16xf32>
    %153 = vector.shape_cast %152 : vector<16xf32> to vector<16x1xf32>
    %cst_86 = arith.constant 3.200000e+01 : f32
    %154 = vector.broadcast %cst_86 : f32 to vector<16x1xf32>
    %155 = arith.divf %153, %154 : vector<16x1xf32>
    %156 = vector.broadcast %148 : vector<16x1xf32> to vector<16x32xf32>
    %157 = arith.subf %144, %156 : vector<16x32xf32>
    %cst_87 = arith.constant 9.99999974E-6 : f32
    %158 = vector.broadcast %cst_87 : f32 to vector<16x1xf32>
    %159 = arith.addf %155, %158 : vector<16x1xf32>
    %160 = math.rsqrt %159 : vector<16x1xf32>
    %161 = vector.broadcast %160 : vector<16x1xf32> to vector<16x32xf32>
    %162 = arith.mulf %157, %161 : vector<16x32xf32>
    %163 = vector.broadcast %9 : vector<1x32xf32> to vector<16x32xf32>
    %164 = arith.mulf %162, %163 : vector<16x32xf32>
    %165 = vector.broadcast %11 : vector<1x32xf32> to vector<16x32xf32>
    %166 = arith.addf %164, %165 : vector<16x32xf32>
    %167 = arith.truncf %166 : vector<16x32xf32> to vector<16x32xbf16>
    %cst_88 = arith.constant dense<0.000000e+00> : vector<16x64xf32>
    %168 = tpu.matmul %167, %29, %cst_88 {dimension_numbers = #tpu.dot_dimension_numbers<[1], [0], [0], [1], [0, 0, 1, 1], [], []>} : vector<16x32xbf16>, vector<32x64xbf16>, vector<16x64xf32> -> vector<16x64xf32>
    %169 = vector.broadcast %31 : vector<1x64xf32> to vector<16x64xf32>
    %170 = arith.addf %168, %169 : vector<16x64xf32>
    %cst_89 = arith.constant 0.000000e+00 : f32
    %171 = vector.broadcast %cst_89 : f32 to vector<16x64xf32>
    %172 = arith.maximumf %170, %171 : vector<16x64xf32>
    %173 = arith.truncf %172 : vector<16x64xf32> to vector<16x64xbf16>
    %cst_90 = arith.constant dense<0.000000e+00> : vector<16x32xf32>
    %174 = tpu.matmul %173, %33, %cst_90 {dimension_numbers = #tpu.dot_dimension_numbers<[1], [0], [0], [1], [0, 0, 1, 1], [], []>} : vector<16x64xbf16>, vector<64x32xbf16>, vector<16x32xf32> -> vector<16x32xf32>
    %175 = vector.broadcast %35 : vector<1x32xf32> to vector<16x32xf32>
    %176 = arith.addf %174, %175 : vector<16x32xf32>
    %177 = arith.addf %144, %176 : vector<16x32xf32>
    %c0_91 = arith.constant 0 : index
    %c0_92 = arith.constant 0 : index
    %178 = vector.load %arg19[%c0_91, %c0_92] : memref<16x32xf32, #tpu.memory_space<vmem>>, vector<16x32xf32>
    tpu.vector_store %arg19[%c0_91, %c0_92], %177 {strides = array<i32>} : memref<16x32xf32, #tpu.memory_space<vmem>>, vector<16x32xf32>,
    %c1_i32 = arith.constant 1 : i32
    %179 = arith.cmpi eq, %arg0, %c1_i32 : i32
    %180 = arith.extui %179 : i1 to i32
    %c0_i32_93 = arith.constant 0 : i32
    %181 = arith.cmpi ne, %180, %c0_i32_93 : i32
    scf.if %181 {
      %c0_94 = arith.constant 0 : index
      %c0_95 = arith.constant 0 : index
      %182 = vector.load %arg18[%c0_94, %c0_95] : memref<16x32xf32, #tpu.memory_space<vmem>>, vector<16x32xf32>
      tpu.vector_store %arg18[%c0_94, %c0_95], %177 {strides = array<i32>} : memref<16x32xf32, #tpu.memory_space<vmem>>, vector<16x32xf32>,
    } else {
    }
    return
  }
  func.func @transform_0(%arg0: i32) -> (i32, i32) {
    %c0_i32 = arith.constant 0 : i32
    %c0_i32_0 = arith.constant 0 : i32
    %c0_i32_1 = arith.constant 0 : i32
    return %c0_i32, %c0_i32_0 : i32, i32
  }
  func.func @transform_1(%arg0: i32) -> (i32, i32, i32) {
    %c0_i32 = arith.constant 0 : i32
    %c0_i32_0 = arith.constant 0 : i32
    %c0_i32_1 = arith.constant 0 : i32
    return %arg0, %c0_i32, %c0_i32_0 : i32, i32, i32
  }
  func.func @transform_2(%arg0: i32) -> (i32, i32, i32) {
    %c0_i32 = arith.constant 0 : i32
    %c0_i32_0 = arith.constant 0 : i32
    %c0_i32_1 = arith.constant 0 : i32
    return %arg0, %c0_i32, %c0_i32_0 : i32, i32, i32
  }
  func.func @transform_3(%arg0: i32) -> (i32, i32, i32, i32) {
    %c0_i32 = arith.constant 0 : i32
    %c0_i32_0 = arith.constant 0 : i32
    %c0_i32_1 = arith.constant 0 : i32
    %c0_i32_2 = arith.constant 0 : i32
    return %arg0, %c0_i32, %c0_i32_0, %c0_i32_1 : i32, i32, i32, i32
  }
  func.func @transform_4(%arg0: i32) -> (i32, i32, i32, i32) {
    %c0_i32 = arith.constant 0 : i32
    %c0_i32_0 = arith.constant 0 : i32
    %c0_i32_1 = arith.constant 0 : i32
    %c0_i32_2 = arith.constant 0 : i32
    return %arg0, %c0_i32, %c0_i32_0, %c0_i32_1 : i32, i32, i32, i32
  }
  func.func @transform_5(%arg0: i32) -> (i32, i32, i32, i32) {
    %c0_i32 = arith.constant 0 : i32
    %c0_i32_0 = arith.constant 0 : i32
    %c0_i32_1 = arith.constant 0 : i32
    %c0_i32_2 = arith.constant 0 : i32
    return %arg0, %c0_i32, %c0_i32_0, %c0_i32_1 : i32, i32, i32, i32
  }
  func.func @transform_6(%arg0: i32) -> (i32, i32, i32, i32) {
    %c0_i32 = arith.constant 0 : i32
    %c0_i32_0 = arith.constant 0 : i32
    %c0_i32_1 = arith.constant 0 : i32
    %c0_i32_2 = arith.constant 0 : i32
    return %arg0, %c0_i32, %c0_i32_0, %c0_i32_1 : i32, i32, i32, i32
  }
  func.func @transform_7(%arg0: i32) -> (i32, i32, i32, i32) {
    %c0_i32 = arith.constant 0 : i32
    %c0_i32_0 = arith.constant 0 : i32
    %c0_i32_1 = arith.constant 0 : i32
    %c0_i32_2 = arith.constant 0 : i32
    return %arg0, %c0_i32, %c0_i32_0, %c0_i32_1 : i32, i32, i32, i32
  }
  func.func @transform_8(%arg0: i32) -> (i32, i32, i32, i32) {
    %c0_i32 = arith.constant 0 : i32
    %c0_i32_0 = arith.constant 0 : i32
    %c0_i32_1 = arith.constant 0 : i32
    %c0_i32_2 = arith.constant 0 : i32
    return %arg0, %c0_i32, %c0_i32_0, %c0_i32_1 : i32, i32, i32, i32
  }
  func.func @transform_9(%arg0: i32) -> (i32, i32, i32, i32) {
    %c0_i32 = arith.constant 0 : i32
    %c0_i32_0 = arith.constant 0 : i32
    %c0_i32_1 = arith.constant 0 : i32
    %c0_i32_2 = arith.constant 0 : i32
    return %arg0, %c0_i32, %c0_i32_0, %c0_i32_1 : i32, i32, i32, i32
  }
  func.func @transform_10(%arg0: i32) -> (i32, i32, i32) {
    %c0_i32 = arith.constant 0 : i32
    %c0_i32_0 = arith.constant 0 : i32
    %c0_i32_1 = arith.constant 0 : i32
    return %arg0, %c0_i32, %c0_i32_0 : i32, i32, i32
  }
  func.func @transform_11(%arg0: i32) -> (i32, i32, i32) {
    %c0_i32 = arith.constant 0 : i32
    %c0_i32_0 = arith.constant 0 : i32
    %c0_i32_1 = arith.constant 0 : i32
    return %arg0, %c0_i32, %c0_i32_0 : i32, i32, i32
  }
  func.func @transform_12(%arg0: i32) -> (i32, i32, i32) {
    %c0_i32 = arith.constant 0 : i32
    %c0_i32_0 = arith.constant 0 : i32
    %c0_i32_1 = arith.constant 0 : i32
    return %arg0, %c0_i32, %c0_i32_0 : i32, i32, i32
  }
  func.func @transform_13(%arg0: i32) -> (i32, i32, i32) {
    %c0_i32 = arith.constant 0 : i32
    %c0_i32_0 = arith.constant 0 : i32
    %c0_i32_1 = arith.constant 0 : i32
    return %arg0, %c0_i32, %c0_i32_0 : i32, i32, i32
  }
  func.func @transform_14(%arg0: i32) -> (i32, i32, i32) {
    %c0_i32 = arith.constant 0 : i32
    %c0_i32_0 = arith.constant 0 : i32
    %c0_i32_1 = arith.constant 0 : i32
    return %arg0, %c0_i32, %c0_i32_0 : i32, i32, i32
  }
  func.func @transform_15(%arg0: i32) -> (i32, i32, i32) {
    %c0_i32 = arith.constant 0 : i32
    %c0_i32_0 = arith.constant 0 : i32
    %c0_i32_1 = arith.constant 0 : i32
    return %arg0, %c0_i32, %c0_i32_0 : i32, i32, i32
  }
  func.func @transform_16(%arg0: i32) -> (i32, i32, i32) {
    %c0_i32 = arith.constant 0 : i32
    %c0_i32_0 = arith.constant 0 : i32
    %c0_i32_1 = arith.constant 0 : i32
    return %arg0, %c0_i32, %c0_i32_0 : i32, i32, i32
  }
  func.func @transform_17(%arg0: i32) -> (i32, i32) {
    %c0_i32 = arith.constant 0 : i32
    %c0_i32_0 = arith.constant 0 : i32
    %c0_i32_1 = arith.constant 0 : i32
    return %c0_i32, %c0_i32_0 : i32, i32
  }
}

</mosaic_0001>

<llo_original>
// kernel: tpu_custom_call.1
$region0: #{tpu_custom_call.1}
  #allocation0 [shape = 'u32[]', space=smem, size = 0x4, offset = 0x4, fixed_abs, tag = 'smem constant byte address 0x4 - core index']
  #allocation1 [shape = 'u32[144,128]{1,0:T(1,128)}', space=vmem, size = 0x12000, scoped, tag = 'internal scratch']
  #allocation2 [shape = 'f32[16,32]{1,0:T(8,128)}', space=vmem, size = 0x2000, scoped, tag = 'scratch operand']
  %s0 = inlined_call_operand.vmem [shape: f32[16,32], index: 0, kind: input, shape index: {}]
  %s1 = inlined_call_operand.vmem [shape: f32[2,1,32], index: 1, kind: input, shape index: {}]
  %s2 = inlined_call_operand.vmem [shape: f32[2,1,32], index: 2, kind: input, shape index: {}]
  %s3 = inlined_call_operand.vmem [shape: bf16[2,4,32,8], index: 3, kind: input, shape index: {}]
  %s4 = inlined_call_operand.vmem [shape: f32[2,4,1,8], index: 4, kind: input, shape index: {}]
  %s5 = inlined_call_operand.vmem [shape: bf16[2,4,32,8], index: 5, kind: input, shape index: {}]
  %s6 = inlined_call_operand.vmem [shape: f32[2,4,1,8], index: 6, kind: input, shape index: {}]
  %s7 = inlined_call_operand.vmem [shape: bf16[2,4,32,8], index: 7, kind: input, shape index: {}]
  %s8 = inlined_call_operand.vmem [shape: f32[2,4,1,8], index: 8, kind: input, shape index: {}]
  %s9 = inlined_call_operand.vmem [shape: bf16[2,4,8,32], index: 9, kind: input, shape index: {}]
  %s10 = inlined_call_operand.vmem [shape: f32[2,1,32], index: 10, kind: input, shape index: {}]
  %s11 = inlined_call_operand.vmem [shape: f32[2,1,32], index: 11, kind: input, shape index: {}]
  %s12 = inlined_call_operand.vmem [shape: f32[2,1,32], index: 12, kind: input, shape index: {}]
  %s13 = inlined_call_operand.vmem [shape: bf16[2,32,64], index: 13, kind: input, shape index: {}]
  %s14 = inlined_call_operand.vmem [shape: f32[2,1,64], index: 14, kind: input, shape index: {}]
  %s15 = inlined_call_operand.vmem [shape: bf16[2,64,32], index: 15, kind: input, shape index: {}]
  %s16 = inlined_call_operand.vmem [shape: f32[2,1,32], index: 16, kind: input, shape index: {}]
  %s17 = inlined_call_operand.hbm [shape: f32[16,32], index: 17, kind: output, shape index: {}]
  %s18 = sld [smem:[#allocation0]]
  $region109: #{tpu_custom_call.1} parent=0
    _
  %s20 = ssub.s32 1, %s18
  %s21 = scalar_select 0, %s20, %s18
  $region1: #{tpu_custom_call.1} parent=0
    #allocation3 [shape = 'u8[8192]{0}', space=vmem, size = 0x2000, scoped, tag = 'output window, operand 0, single buffered']
    #allocation4 [shape = 's32[2]{0}', space=sflag, size = 0x8, scoped, tag = 'scoped memory for tpu_custom_call.1']
    %22 = vsyncpa [#allocation4], 0
    loop: start=0, step=1, limit=4
    $region2: #{tpu_custom_call.1} parent=1 // loop_pre_header
      _
    $region3: #{tpu_custom_call.1} parent=1 // loop_header
      %s24 = sphi 0, %s28
      %p25 = scmp.ge.s32.totalorder %s24, 4
      %s32 = sphi 0, %s32
      %s34 = sphi 0, %s32
      %s35 = sphi 0, %s34
      %s49 = sphi 0, %s35
      %s55 = sphi 0, %s57
      %s58 = sphi 0, %s55
      %s59 = sphi 0, %s58
      %s75 = sphi 0, %s59
      %s81 = sphi 0, %s83
      %s84 = sphi 0, %s81
      %s85 = sphi 0, %s84
      %s101 = sphi 0, %s85
      %s107 = sphi 0, %s109
      %s110 = sphi 0, %s107
      %s111 = sphi 0, %s110
      %s127 = sphi 0, %s111
      %s133 = sphi 0, %s135
      %s136 = sphi 0, %s133
      %s137 = sphi 0, %s136
      %s153 = sphi 0, %s137
      %s159 = sphi 0, %s161
      %s162 = sphi 0, %s159
      %s163 = sphi 0, %s162
      %s179 = sphi 0, %s163
      %s185 = sphi 0, %s187
      %s188 = sphi 0, %s185
      %s189 = sphi 0, %s188
      %s205 = sphi 0, %s189
      %s211 = sphi 0, %s213
      %s214 = sphi 0, %s211
      %s215 = sphi 0, %s214
      %s231 = sphi 0, %s215
      %s237 = sphi 0, %s239
      %s240 = sphi 0, %s237
      %s241 = sphi 0, %s240
      %s257 = sphi 0, %s241
      %s263 = sphi 0, %s265
      %s266 = sphi 0, %s263
      %s267 = sphi 0, %s266
      %s283 = sphi 0, %s267
      %s289 = sphi 0, %s291
      %s292 = sphi 0, %s289
      %s293 = sphi 0, %s292
      %s309 = sphi 0, %s293
      %s315 = sphi 0, %s317
      %s318 = sphi 0, %s315
      %s319 = sphi 0, %s318
      %s335 = sphi 0, %s319
      %s341 = sphi 0, %s343
      %s344 = sphi 0, %s341
      %s345 = sphi 0, %s344
      %s361 = sphi 0, %s345
      %s367 = sphi 0, %s369
      %s370 = sphi 0, %s367
      %s371 = sphi 0, %s370
      %s387 = sphi 0, %s371
      %s393 = sphi 0, %s395
      %s396 = sphi 0, %s393
      %s397 = sphi 0, %s396
      %s413 = sphi 0, %s397
      %s419 = sphi 0, %s421
      %s422 = sphi 0, %s419
      %s423 = sphi 0, %s422
      %s439 = sphi 0, %s423
      %s445 = sphi 0, %s447
      %s448 = sphi 0, %s445
      %s449 = sphi 0, %s448
      %s465 = sphi 0, %s449
      %s469 = sphi 0, %s469
      %s471 = sphi 0, %s469
      %s472 = sphi 0, %s471
      %s486 = sphi 0, %s472
    $region4: #{tpu_custom_call.1} parent=1 // loop_header_branch
      %27 = sbr.rel (%p25) target = $region8
    $region5: #{tpu_custom_call.1} parent=1 // loop_body
      %s29 = ssub.s32 %s24, 1
      %s30 = ssub.s32 %s24, 2
      %s31 = sadd.s32 %s24, 1
      %s33 = sadd.s32 %s32, 1
      %p36 = scmp.eq.s32.totalorder %s24, 1
      %p37 = scmp.ne.s32.totalorder %s32, %s34
      %p38 = scmp.eq.s32.totalorder %s24, 0
      %p39 = por %p37, %p38
      %p40 = scmp.ne.s32.totalorder %s32, %s34
      %p41 = scmp.eq.s32.totalorder %s29, 1
      %p42 = por %p40, %p41
      %p43 = scmp.ne.s32.totalorder %s34, %s35
      %p44 = scmp.eq.s32.totalorder %s29, 0
      %p45 = por %p43, %p44
      %p46 = scmp.ne.s32.totalorder %s34, %s35
      %p47 = scmp.eq.s32.totalorder %s30, 1
      %p48 = por %p46, %p47
      %p50 = scmp.ne.s32.totalorder %s35, %s49
      %p51 = scmp.eq.s32.totalorder %s30, 0
      %p52 = por %p50, %p51
      %s53 = ssub.s32 %s24, %s31
      %p54 = scmp.eq.s32.totalorder %s53, 0
      %s56 = sadd.s32 %s55, 1
      %s57 = scalar_select %p54, %s55, %s56
      %p60 = pneg %p54
      %p61 = scmp.eq.s32.totalorder %s24, 1
      %p62 = por %p60, %p61
      %p63 = scmp.ne.s32.totalorder %s55, %s58
      %p64 = scmp.eq.s32.totalorder %s24, 0
      %p65 = por %p63, %p64
      %p66 = scmp.ne.s32.totalorder %s55, %s58
      %p67 = scmp.eq.s32.totalorder %s29, 1
      %p68 = por %p66, %p67
      %p69 = scmp.ne.s32.totalorder %s58, %s59
      %p70 = scmp.eq.s32.totalorder %s29, 0
      %p71 = por %p69, %p70
      %p72 = scmp.ne.s32.totalorder %s58, %s59
      %p73 = scmp.eq.s32.totalorder %s30, 1
      %p74 = por %p72, %p73
      %p76 = scmp.ne.s32.totalorder %s59, %s75
      %p77 = scmp.eq.s32.totalorder %s30, 0
      %p78 = por %p76, %p77
      %s79 = ssub.s32 %s24, %s31
      %p80 = scmp.eq.s32.totalorder %s79, 0
      %s82 = sadd.s32 %s81, 1
      %s83 = scalar_select %p80, %s81, %s82
      %p86 = pneg %p80
      %p87 = scmp.eq.s32.totalorder %s24, 1
      %p88 = por %p86, %p87
      %p89 = scmp.ne.s32.totalorder %s81, %s84
      %p90 = scmp.eq.s32.totalorder %s24, 0
      %p91 = por %p89, %p90
      %p92 = scmp.ne.s32.totalorder %s81, %s84
      %p93 = scmp.eq.s32.totalorder %s29, 1
      %p94 = por %p92, %p93
      %p95 = scmp.ne.s32.totalorder %s84, %s85
      %p96 = scmp.eq.s32.totalorder %s29, 0
      %p97 = por %p95, %p96
      %p98 = scmp.ne.s32.totalorder %s84, %s85
      %p99 = scmp.eq.s32.totalorder %s30, 1
      %p100 = por %p98, %p99
      %p102 = scmp.ne.s32.totalorder %s85, %s101
      %p103 = scmp.eq.s32.totalorder %s30, 0
      %p104 = por %p102, %p103
      %s105 = ssub.s32 %s24, %s31
      %p106 = scmp.eq.s32.totalorder %s105, 0
      %s108 = sadd.s32 %s107, 1
      %s109 = scalar_select %p106, %s107, %s108
      %p112 = pneg %p106
      %p113 = scmp.eq.s32.totalorder %s24, 1
      %p114 = por %p112, %p113
      %p115 = scmp.ne.s32.totalorder %s107, %s110
      %p116 = scmp.eq.s32.totalorder %s24, 0
      %p117 = por %p115, %p116
      %p118 = scmp.ne.s32.totalorder %s107, %s110
      %p119 = scmp.eq.s32.totalorder %s29, 1
      %p120 = por %p118, %p119
      %p121 = scmp.ne.s32.totalorder %s110, %s111
      %p122 = scmp.eq.s32.totalorder %s29, 0
      %p123 = por %p121, %p122
      %p124 = scmp.ne.s32.totalorder %s110, %s111
      %p125 = scmp.eq.s32.totalorder %s30, 1
      %p126 = por %p124, %p125
      %p128 = scmp.ne.s32.totalorder %s111, %s127
      %p129 = scmp.eq.s32.totalorder %s30, 0
      %p130 = por %p128, %p129
      %s131 = ssub.s32 %s24, %s31
      %p132 = scmp.eq.s32.totalorder %s131, 0
      %s134 = sadd.s32 %s133, 1
      %s135 = scalar_select %p132, %s133, %s134
      %p138 = pneg %p132
      %p139 = scmp.eq.s32.totalorder %s24, 1
      %p140 = por %p138, %p139
      %p141 = scmp.ne.s32.totalorder %s133, %s136
      %p142 = scmp.eq.s32.totalorder %s24, 0
      %p143 = por %p141, %p142
      %p144 = scmp.ne.s32.totalorder %s133, %s136
      %p145 = scmp.eq.s32.totalorder %s29, 1
      %p146 = por %p144, %p145
      %p147 = scmp.ne.s32.totalorder %s136, %s137
      %p148 = scmp.eq.s32.totalorder %s29, 0
      %p149 = por %p147, %p148
      %p150 = scmp.ne.s32.totalorder %s136, %s137
      %p151 = scmp.eq.s32.totalorder %s30, 1
      %p152 = por %p150, %p151
      %p154 = scmp.ne.s32.totalorder %s137, %s153
      %p155 = scmp.eq.s32.totalorder %s30, 0
      %p156 = por %p154, %p155
      %s157 = ssub.s32 %s24, %s31
      %p158 = scmp.eq.s32.totalorder %s157, 0
      %s160 = sadd.s32 %s159, 1
      %s161 = scalar_select %p158, %s159, %s160
      %p164 = pneg %p158
      %p165 = scmp.eq.s32.totalorder %s24, 1
      %p166 = por %p164, %p165
      %p167 = scmp.ne.s32.totalorder %s159, %s162
      %p168 = scmp.eq.s32.totalorder %s24, 0
      %p169 = por %p167, %p168
      %p170 = scmp.ne.s32.totalorder %s159, %s162
      %p171 = scmp.eq.s32.totalorder %s29, 1
      %p172 = por %p170, %p171
      %p173 = scmp.ne.s32.totalorder %s162, %s163
      %p174 = scmp.eq.s32.totalorder %s29, 0
      %p175 = por %p173, %p174
      %p176 = scmp.ne.s32.totalorder %s162, %s163
      %p177 = scmp.eq.s32.totalorder %s30, 1
      %p178 = por %p176, %p177
      %p180 = scmp.ne.s32.totalorder %s163, %s179
      %p181 = scmp.eq.s32.totalorder %s30, 0
      %p182 = por %p180, %p181
      %s183 = ssub.s32 %s24, %s31
      %p184 = scmp.eq.s32.totalorder %s183, 0
      %s186 = sadd.s32 %s185, 1
      %s187 = scalar_select %p184, %s185, %s186
      %p190 = pneg %p184
      %p191 = scmp.eq.s32.totalorder %s24, 1
      %p192 = por %p190, %p191
      %p193 = scmp.ne.s32.totalorder %s185, %s188
      %p194 = scmp.eq.s32.totalorder %s24, 0
      %p195 = por %p193, %p194
      %p196 = scmp.ne.s32.totalorder %s185, %s188
      %p197 = scmp.eq.s32.totalorder %s29, 1
      %p198 = por %p196, %p197
      %p199 = scmp.ne.s32.totalorder %s188, %s189
      %p200 = scmp.eq.s32.totalorder %s29, 0
      %p201 = por %p199, %p200
      %p202 = scmp.ne.s32.totalorder %s188, %s189
      %p203 = scmp.eq.s32.totalorder %s30, 1
      %p204 = por %p202, %p203
      %p206 = scmp.ne.s32.totalorder %s189, %s205
      %p207 = scmp.eq.s32.totalorder %s30, 0
      %p208 = por %p206, %p207
      %s209 = ssub.s32 %s24, %s31
      %p210 = scmp.eq.s32.totalorder %s209, 0
      %s212 = sadd.s32 %s211, 1
      %s213 = scalar_select %p210, %s211, %s212
      %p216 = pneg %p210
      %p217 = scmp.eq.s32.totalorder %s24, 1
      %p218 = por %p216, %p217
      %p219 = scmp.ne.s32.totalorder %s211, %s214
      %p220 = scmp.eq.s32.totalorder %s24, 0
      %p221 = por %p219, %p220
      %p222 = scmp.ne.s32.totalorder %s211, %s214
      %p223 = scmp.eq.s32.totalorder %s29, 1
      %p224 = por %p222, %p223
      %p225 = scmp.ne.s32.totalorder %s214, %s215
      %p226 = scmp.eq.s32.totalorder %s29, 0
      %p227 = por %p225, %p226
      %p228 = scmp.ne.s32.totalorder %s214, %s215
      %p229 = scmp.eq.s32.totalorder %s30, 1
      %p230 = por %p228, %p229
      %p232 = scmp.ne.s32.totalorder %s215, %s231
      %p233 = scmp.eq.s32.totalorder %s30, 0
      %p234 = por %p232, %p233
      %s235 = ssub.s32 %s24, %s31
      %p236 = scmp.eq.s32.totalorder %s235, 0
      %s238 = sadd.s32 %s237, 1
      %s239 = scalar_select %p236, %s237, %s238
      %p242 = pneg %p236
      %p243 = scmp.eq.s32.totalorder %s24, 1
      %p244 = por %p242, %p243
      %p245 = scmp.ne.s32.totalorder %s237, %s240
      %p246 = scmp.eq.s32.totalorder %s24, 0
      %p247 = por %p245, %p246
      %p248 = scmp.ne.s32.totalorder %s237, %s240
      %p249 = scmp.eq.s32.totalorder %s29, 1
      %p250 = por %p248, %p249
      %p251 = scmp.ne.s32.totalorder %s240, %s241
      %p252 = scmp.eq.s32.totalorder %s29, 0
      %p253 = por %p251, %p252
      %p254 = scmp.ne.s32.totalorder %s240, %s241
      %p255 = scmp.eq.s32.totalorder %s30, 1
      %p256 = por %p254, %p255
      %p258 = scmp.ne.s32.totalorder %s241, %s257
      %p259 = scmp.eq.s32.totalorder %s30, 0
      %p260 = por %p258, %p259
      %s261 = ssub.s32 %s24, %s31
      %p262 = scmp.eq.s32.totalorder %s261, 0
      %s264 = sadd.s32 %s263, 1
      %s265 = scalar_select %p262, %s263, %s264
      %p268 = pneg %p262
      %p269 = scmp.eq.s32.totalorder %s24, 1
      %p270 = por %p268, %p269
      %p271 = scmp.ne.s32.totalorder %s263, %s266
      %p272 = scmp.eq.s32.totalorder %s24, 0
      %p273 = por %p271, %p272
      %p274 = scmp.ne.s32.totalorder %s263, %s266
      %p275 = scmp.eq.s32.totalorder %s29, 1
      %p276 = por %p274, %p275
      %p277 = scmp.ne.s32.totalorder %s266, %s267
      %p278 = scmp.eq.s32.totalorder %s29, 0
      %p279 = por %p277, %p278
      %p280 = scmp.ne.s32.totalorder %s266, %s267
      %p281 = scmp.eq.s32.totalorder %s30, 1
      %p282 = por %p280, %p281
      %p284 = scmp.ne.s32.totalorder %s267, %s283
      %p285 = scmp.eq.s32.totalorder %s30, 0
      %p286 = por %p284, %p285
      %s287 = ssub.s32 %s24, %s31
      %p288 = scmp.eq.s32.totalorder %s287, 0
      %s290 = sadd.s32 %s289, 1
      %s291 = scalar_select %p288, %s289, %s290
      %p294 = pneg %p288
      %p295 = scmp.eq.s32.totalorder %s24, 1
      %p296 = por %p294, %p295
      %p297 = scmp.ne.s32.totalorder %s289, %s292
      %p298 = scmp.eq.s32.totalorder %s24, 0
      %p299 = por %p297, %p298
      %p300 = scmp.ne.s32.totalorder %s289, %s292
      %p301 = scmp.eq.s32.totalorder %s29, 1
      %p302 = por %p300, %p301
      %p303 = scmp.ne.s32.totalorder %s292, %s293
      %p304 = scmp.eq.s32.totalorder %s29, 0
      %p305 = por %p303, %p304
      %p306 = scmp.ne.s32.totalorder %s292, %s293
      %p307 = scmp.eq.s32.totalorder %s30, 1
      %p308 = por %p306, %p307
      %p310 = scmp.ne.s32.totalorder %s293, %s309
      %p311 = scmp.eq.s32.totalorder %s30, 0
      %p312 = por %p310, %p311
      %s313 = ssub.s32 %s24, %s31
      %p314 = scmp.eq.s32.totalorder %s313, 0
      %s316 = sadd.s32 %s315, 1
      %s317 = scalar_select %p314, %s315, %s316
      %p320 = pneg %p314
      %p321 = scmp.eq.s32.totalorder %s24, 1
      %p322 = por %p320, %p321
      %p323 = scmp.ne.s32.totalorder %s315, %s318
      %p324 = scmp.eq.s32.totalorder %s24, 0
      %p325 = por %p323, %p324
      %p326 = scmp.ne.s32.totalorder %s315, %s318
      %p327 = scmp.eq.s32.totalorder %s29, 1
      %p328 = por %p326, %p327
      %p329 = scmp.ne.s32.totalorder %s318, %s319
      %p330 = scmp.eq.s32.totalorder %s29, 0
      %p331 = por %p329, %p330
      %p332 = scmp.ne.s32.totalorder %s318, %s319
      %p333 = scmp.eq.s32.totalorder %s30, 1
      %p334 = por %p332, %p333
      %p336 = scmp.ne.s32.totalorder %s319, %s335
      %p337 = scmp.eq.s32.totalorder %s30, 0
      %p338 = por %p336, %p337
      %s339 = ssub.s32 %s24, %s31
      %p340 = scmp.eq.s32.totalorder %s339, 0
      %s342 = sadd.s32 %s341, 1
      %s343 = scalar_select %p340, %s341, %s342
      %p346 = pneg %p340
      %p347 = scmp.eq.s32.totalorder %s24, 1
      %p348 = por %p346, %p347
      %p349 = scmp.ne.s32.totalorder %s341, %s344
      %p350 = scmp.eq.s32.totalorder %s24, 0
      %p351 = por %p349, %p350
      %p352 = scmp.ne.s32.totalorder %s341, %s344
      %p353 = scmp.eq.s32.totalorder %s29, 1
      %p354 = por %p352, %p353
      %p355 = scmp.ne.s32.totalorder %s344, %s345
      %p356 = scmp.eq.s32.totalorder %s29, 0
      %p357 = por %p355, %p356
      %p358 = scmp.ne.s32.totalorder %s344, %s345
      %p359 = scmp.eq.s32.totalorder %s30, 1
      %p360 = por %p358, %p359
      %p362 = scmp.ne.s32.totalorder %s345, %s361
      %p363 = scmp.eq.s32.totalorder %s30, 0
      %p364 = por %p362, %p363
      %s365 = ssub.s32 %s24, %s31
      %p366 = scmp.eq.s32.totalorder %s365, 0
      %s368 = sadd.s32 %s367, 1
      %s369 = scalar_select %p366, %s367, %s368
      %p372 = pneg %p366
      %p373 = scmp.eq.s32.totalorder %s24, 1
      %p374 = por %p372, %p373
      %p375 = scmp.ne.s32.totalorder %s367, %s370
      %p376 = scmp.eq.s32.totalorder %s24, 0
      %p377 = por %p375, %p376
      %p378 = scmp.ne.s32.totalorder %s367, %s370
      %p379 = scmp.eq.s32.totalorder %s29, 1
      %p380 = por %p378, %p379
      %p381 = scmp.ne.s32.totalorder %s370, %s371
      %p382 = scmp.eq.s32.totalorder %s29, 0
      %p383 = por %p381, %p382
      %p384 = scmp.ne.s32.totalorder %s370, %s371
      %p385 = scmp.eq.s32.totalorder %s30, 1
      %p386 = por %p384, %p385
      %p388 = scmp.ne.s32.totalorder %s371, %s387
      %p389 = scmp.eq.s32.totalorder %s30, 0
      %p390 = por %p388, %p389
      %s391 = ssub.s32 %s24, %s31
      %p392 = scmp.eq.s32.totalorder %s391, 0
      %s394 = sadd.s32 %s393, 1
      %s395 = scalar_select %p392, %s393, %s394
      %p398 = pneg %p392
      %p399 = scmp.eq.s32.totalorder %s24, 1
      %p400 = por %p398, %p399
      %p401 = scmp.ne.s32.totalorder %s393, %s396
      %p402 = scmp.eq.s32.totalorder %s24, 0
      %p403 = por %p401, %p402
      %p404 = scmp.ne.s32.totalorder %s393, %s396
      %p405 = scmp.eq.s32.totalorder %s29, 1
      %p406 = por %p404, %p405
      %p407 = scmp.ne.s32.totalorder %s396, %s397
      %p408 = scmp.eq.s32.totalorder %s29, 0
      %p409 = por %p407, %p408
      %p410 = scmp.ne.s32.totalorder %s396, %s397
      %p411 = scmp.eq.s32.totalorder %s30, 1
      %p412 = por %p410, %p411
      %p414 = scmp.ne.s32.totalorder %s397, %s413
      %p415 = scmp.eq.s32.totalorder %s30, 0
      %p416 = por %p414, %p415
      %s417 = ssub.s32 %s24, %s31
      %p418 = scmp.eq.s32.totalorder %s417, 0
      %s420 = sadd.s32 %s419, 1
      %s421 = scalar_select %p418, %s419, %s420
      %p424 = pneg %p418
      %p425 = scmp.eq.s32.totalorder %s24, 1
      %p426 = por %p424, %p425
      %p427 = scmp.ne.s32.totalorder %s419, %s422
      %p428 = scmp.eq.s32.totalorder %s24, 0
      %p429 = por %p427, %p428
      %p430 = scmp.ne.s32.totalorder %s419, %s422
      %p431 = scmp.eq.s32.totalorder %s29, 1
      %p432 = por %p430, %p431
      %p433 = scmp.ne.s32.totalorder %s422, %s423
      %p434 = scmp.eq.s32.totalorder %s29, 0
      %p435 = por %p433, %p434
      %p436 = scmp.ne.s32.totalorder %s422, %s423
      %p437 = scmp.eq.s32.totalorder %s30, 1
      %p438 = por %p436, %p437
      %p440 = scmp.ne.s32.totalorder %s423, %s439
      %p441 = scmp.eq.s32.totalorder %s30, 0
      %p442 = por %p440, %p441
      %s443 = ssub.s32 %s24, %s31
      %p444 = scmp.eq.s32.totalorder %s443, 0
      %s446 = sadd.s32 %s445, 1
      %s447 = scalar_select %p444, %s445, %s446
      %p450 = pneg %p444
      %p451 = scmp.eq.s32.totalorder %s24, 1
      %p452 = por %p450, %p451
      %p453 = scmp.ne.s32.totalorder %s445, %s448
      %p454 = scmp.eq.s32.totalorder %s24, 0
      %p455 = por %p453, %p454
      %p456 = scmp.ne.s32.totalorder %s445, %s448
      %p457 = scmp.eq.s32.totalorder %s29, 1
      %p458 = por %p456, %p457
      %p459 = scmp.ne.s32.totalorder %s448, %s449
      %p460 = scmp.eq.s32.totalorder %s29, 0
      %p461 = por %p459, %p460
      %p462 = scmp.ne.s32.totalorder %s448, %s449
      %p463 = scmp.eq.s32.totalorder %s30, 1
      %p464 = por %p462, %p463
      %p466 = scmp.ne.s32.totalorder %s449, %s465
      %p467 = scmp.eq.s32.totalorder %s30, 0
      %p468 = por %p466, %p467
      %s470 = sadd.s32 %s469, 1
      %p473 = scmp.eq.s32.totalorder %s24, 1
      %p474 = scmp.ne.s32.totalorder %s469, %s471
      %p475 = scmp.eq.s32.totalorder %s24, 0
      %p476 = por %p474, %p475
      %p477 = scmp.ne.s32.totalorder %s469, %s471
      %p478 = scmp.eq.s32.totalorder %s29, 1
      %p479 = por %p477, %p478
      %p480 = scmp.ne.s32.totalorder %s471, %s472
      %p481 = scmp.eq.s32.totalorder %s29, 0
      %p482 = por %p480, %p481
      %p483 = scmp.ne.s32.totalorder %s471, %s472
      %p484 = scmp.eq.s32.totalorder %s30, 1
      %p485 = por %p483, %p484
      %p487 = scmp.ne.s32.totalorder %s472, %s486
      %p488 = scmp.eq.s32.totalorder %s30, 0
      %p489 = por %p487, %p488
      %p490 = scmp.le.s32.totalorder 1, %s24
      %p491 = scmp.lt.s32.totalorder %s24, 3
      %p492 = pnand %p490, %p491
      %p493 = pneg %p492
      // Predicated region
      $region9: #{tpu_custom_call.1} parent=5 // pred_check
        _
      $region10: #{tpu_custom_call.1} parent=5 // pred_check_branch
        %495 = sbr.rel (%p492) target = $region12
      $region11: #{tpu_custom_call.1} parent=5 // pred_region
        %s496 = ssub.s32 %s24, 1
        // Predicated region
        $region13: #{tpu_custom_call.1} parent=11 // pred_check
          %p497 = pneg %p45
        $region14: #{tpu_custom_call.1} parent=11 // pred_check_branch
          %499 = sbr.rel (%p497) target = $region16
        $region15: #{tpu_custom_call.1} parent=11 // pred_region
          _
        $region16: #{tpu_custom_call.1} parent=11 // pred_fallthru
          _
      $region12: #{tpu_custom_call.1} parent=5 // pred_fallthru
        _
      %p500 = scmp.lt.s32.totalorder %s24, 2
      // Predicated region
      $region17: #{tpu_custom_call.1} parent=5 // pred_check
        %p501 = pneg %p500
      $region18: #{tpu_custom_call.1} parent=5 // pred_check_branch
        %503 = sbr.rel (%p501) target = $region20
      $region19: #{tpu_custom_call.1} parent=5 // pred_region
        // Predicated region
        $region21: #{tpu_custom_call.1} parent=19 // pred_check
          %p504 = pneg %p65
        $region22: #{tpu_custom_call.1} parent=19 // pred_check_branch
          %506 = sbr.rel (%p504) target = $region24
        $region23: #{tpu_custom_call.1} parent=19 // pred_region
          %p507 = scmp.lt.s32.totalorder %s24, 1
          %s508 = scalar_select %p507, %s24, 1
          %s509 = scalar_lea.vmem %s1, %s508
        $region24: #{tpu_custom_call.1} parent=19 // pred_fallthru
          _
        // Predicated region
        $region25: #{tpu_custom_call.1} parent=19 // pred_check
          %p510 = pneg %p91
        $region26: #{tpu_custom_call.1} parent=19 // pred_check_branch
          %512 = sbr.rel (%p510) target = $region28
        $region27: #{tpu_custom_call.1} parent=19 // pred_region
          %p513 = scmp.lt.s32.totalorder %s24, 1
          %s514 = scalar_select %p513, %s24, 1
          %s515 = scalar_lea.vmem %s2, %s514
        $region28: #{tpu_custom_call.1} parent=19 // pred_fallthru
          _
        // Predicated region
        $region29: #{tpu_custom_call.1} parent=19 // pred_check
          %p516 = pneg %p117
        $region30: #{tpu_custom_call.1} parent=19 // pred_check_branch
          %518 = sbr.rel (%p516) target = $region32
        $region31: #{tpu_custom_call.1} parent=19 // pred_region
          %p519 = scmp.lt.s32.totalorder %s24, 1
          %s520 = scalar_select %p519, %s24, 1
          %s521 = smul.addr %s520, 16
          %s522 = smul.addr %s521, 4
          %s523 = scalar_lea.vmem %s3, %s522
        $region32: #{tpu_custom_call.1} parent=19 // pred_fallthru
          _
        // Predicated region
        $region33: #{tpu_custom_call.1} parent=19 // pred_check
          %p524 = pneg %p143
        $region34: #{tpu_custom_call.1} parent=19 // pred_check_branch
          %526 = sbr.rel (%p524) target = $region36
        $region35: #{tpu_custom_call.1} parent=19 // pred_region
          %p527 = scmp.lt.s32.totalorder %s24, 1
          %s528 = scalar_select %p527, %s24, 1
          %s529 = smul.addr %s528, 4
          %s530 = scalar_lea.vmem %s4, %s529
        $region36: #{tpu_custom_call.1} parent=19 // pred_fallthru
          _
        // Predicated region
        $region37: #{tpu_custom_call.1} parent=19 // pred_check
          %p531 = pneg %p169
        $region38: #{tpu_custom_call.1} parent=19 // pred_check_branch
          %533 = sbr.rel (%p531) target = $region40
        $region39: #{tpu_custom_call.1} parent=19 // pred_region
          %p534 = scmp.lt.s32.totalorder %s24, 1
          %s535 = scalar_select %p534, %s24, 1
          %s536 = smul.addr %s535, 16
          %s537 = smul.addr %s536, 4
          %s538 = scalar_lea.vmem %s5, %s537
        $region40: #{tpu_custom_call.1} parent=19 // pred_fallthru
          _
        // Predicated region
        $region41: #{tpu_custom_call.1} parent=19 // pred_check
          %p539 = pneg %p195
        $region42: #{tpu_custom_call.1} parent=19 // pred_check_branch
          %541 = sbr.rel (%p539) target = $region44
        $region43: #{tpu_custom_call.1} parent=19 // pred_region
          %p542 = scmp.lt.s32.totalorder %s24, 1
          %s543 = scalar_select %p542, %s24, 1
          %s544 = smul.addr %s543, 4
          %s545 = scalar_lea.vmem %s6, %s544
        $region44: #{tpu_custom_call.1} parent=19 // pred_fallthru
          _
        // Predicated region
        $region45: #{tpu_custom_call.1} parent=19 // pred_check
          %p546 = pneg %p221
        $region46: #{tpu_custom_call.1} parent=19 // pred_check_branch
          %548 = sbr.rel (%p546) target = $region48
        $region47: #{tpu_custom_call.1} parent=19 // pred_region
          %p549 = scmp.lt.s32.totalorder %s24, 1
          %s550 = scalar_select %p549, %s24, 1
          %s551 = smul.addr %s550, 16
          %s552 = smul.addr %s551, 4
          %s553 = scalar_lea.vmem %s7, %s552
        $region48: #{tpu_custom_call.1} parent=19 // pred_fallthru
          _
        // Predicated region
        $region49: #{tpu_custom_call.1} parent=19 // pred_check
          %p554 = pneg %p247
        $region50: #{tpu_custom_call.1} parent=19 // pred_check_branch
          %556 = sbr.rel (%p554) target = $region52
        $region51: #{tpu_custom_call.1} parent=19 // pred_region
          %p557 = scmp.lt.s32.totalorder %s24, 1
          %s558 = scalar_select %p557, %s24, 1
          %s559 = smul.addr %s558, 4
          %s560 = scalar_lea.vmem %s8, %s559
        $region52: #{tpu_custom_call.1} parent=19 // pred_fallthru
          _
        // Predicated region
        $region53: #{tpu_custom_call.1} parent=19 // pred_check
          %p561 = pneg %p273
        $region54: #{tpu_custom_call.1} parent=19 // pred_check_branch
          %563 = sbr.rel (%p561) target = $region56
        $region55: #{tpu_custom_call.1} parent=19 // pred_region
          %p564 = scmp.lt.s32.totalorder %s24, 1
          %s565 = scalar_select %p564, %s24, 1
          %s566 = smul.addr %s565, 4
          %s567 = smul.addr %s566, 4
          %s568 = scalar_lea.vmem %s9, %s567
        $region56: #{tpu_custom_call.1} parent=19 // pred_fallthru
          _
        // Predicated region
        $region57: #{tpu_custom_call.1} parent=19 // pred_check
          %p569 = pneg %p299
        $region58: #{tpu_custom_call.1} parent=19 // pred_check_branch
          %571 = sbr.rel (%p569) target = $region60
        $region59: #{tpu_custom_call.1} parent=19 // pred_region
          %p572 = scmp.lt.s32.totalorder %s24, 1
          %s573 = scalar_select %p572, %s24, 1
          %s574 = scalar_lea.vmem %s10, %s573
        $region60: #{tpu_custom_call.1} parent=19 // pred_fallthru
          _
        // Predicated region
        $region61: #{tpu_custom_call.1} parent=19 // pred_check
          %p575 = pneg %p325
        $region62: #{tpu_custom_call.1} parent=19 // pred_check_branch
          %577 = sbr.rel (%p575) target = $region64
        $region63: #{tpu_custom_call.1} parent=19 // pred_region
          %p578 = scmp.lt.s32.totalorder %s24, 1
          %s579 = scalar_select %p578, %s24, 1
          %s580 = scalar_lea.vmem %s11, %s579
        $region64: #{tpu_custom_call.1} parent=19 // pred_fallthru
          _
        // Predicated region
        $region65: #{tpu_custom_call.1} parent=19 // pred_check
          %p581 = pneg %p351
        $region66: #{tpu_custom_call.1} parent=19 // pred_check_branch
          %583 = sbr.rel (%p581) target = $region68
        $region67: #{tpu_custom_call.1} parent=19 // pred_region
          %p584 = scmp.lt.s32.totalorder %s24, 1
          %s585 = scalar_select %p584, %s24, 1
          %s586 = scalar_lea.vmem %s12, %s585
        $region68: #{tpu_custom_call.1} parent=19 // pred_fallthru
          _
        // Predicated region
        $region69: #{tpu_custom_call.1} parent=19 // pred_check
          %p587 = pneg %p377
        $region70: #{tpu_custom_call.1} parent=19 // pred_check_branch
          %589 = sbr.rel (%p587) target = $region72
        $region71: #{tpu_custom_call.1} parent=19 // pred_region
          %p590 = scmp.lt.s32.totalorder %s24, 1
          %s591 = scalar_select %p590, %s24, 1
          %s592 = smul.addr %s591, 4
          %s593 = smul.addr %s592, 4
          %s594 = scalar_lea.vmem %s13, %s593
        $region72: #{tpu_custom_call.1} parent=19 // pred_fallthru
          _
        // Predicated region
        $region73: #{tpu_custom_call.1} parent=19 // pred_check
          %p595 = pneg %p403
        $region74: #{tpu_custom_call.1} parent=19 // pred_check_branch
          %597 = sbr.rel (%p595) target = $region76
        $region75: #{tpu_custom_call.1} parent=19 // pred_region
          %p598 = scmp.lt.s32.totalorder %s24, 1
          %s599 = scalar_select %p598, %s24, 1
          %s600 = scalar_lea.vmem %s14, %s599
        $region76: #{tpu_custom_call.1} parent=19 // pred_fallthru
          _
        // Predicated region
        $region77: #{tpu_custom_call.1} parent=19 // pred_check
          %p601 = pneg %p429
        $region78: #{tpu_custom_call.1} parent=19 // pred_check_branch
          %603 = sbr.rel (%p601) target = $region80
        $region79: #{tpu_custom_call.1} parent=19 // pred_region
          %p604 = scmp.lt.s32.totalorder %s24, 1
          %s605 = scalar_select %p604, %s24, 1
          %s606 = smul.addr %s605, 8
          %s607 = smul.addr %s606, 4
          %s608 = scalar_lea.vmem %s15, %s607
        $region80: #{tpu_custom_call.1} parent=19 // pred_fallthru
          _
        // Predicated region
        $region81: #{tpu_custom_call.1} parent=19 // pred_check
          %p609 = pneg %p455
        $region82: #{tpu_custom_call.1} parent=19 // pred_check_branch
          %611 = sbr.rel (%p609) target = $region84
        $region83: #{tpu_custom_call.1} parent=19 // pred_region
          %p612 = scmp.lt.s32.totalorder %s24, 1
          %s613 = scalar_select %p612, %s24, 1
          %s614 = scalar_lea.vmem %s16, %s613
        $region84: #{tpu_custom_call.1} parent=19 // pred_fallthru
          _
      $region20: #{tpu_custom_call.1} parent=5 // pred_fallthru
        _
      %p615 = scmp.le.s32.totalorder 1, %s24
      %p616 = scmp.lt.s32.totalorder %s24, 3
      %p617 = pnand %p615, %p616
      %p618 = pneg %p617
      // Predicated region
      $region85: #{tpu_custom_call.1} parent=5 // pred_check
        _
      $region86: #{tpu_custom_call.1} parent=5 // pred_check_branch
        %620 = sbr.rel (%p617) target = $region88
      $region87: #{tpu_custom_call.1} parent=5 // pred_region
        %s621 = ssub.s32 %s24, 1
        %p622 = pneg %p45
        %p623 = pneg %p42
        %p624 = scmp.lt.s32.totalorder %s29, 1
        %s625 = scalar_select %p624, %s29, 1
        %s626 = scalar_lea.vmem %s1, %s625
        %p627 = pneg %p71
        %p628 = pneg %p68
        %p629 = scmp.lt.s32.totalorder %s29, 1
        %s630 = scalar_select %p629, %s29, 1
        %s631 = scalar_lea.vmem %s2, %s630
        %p632 = pneg %p97
        %p633 = pneg %p94
        %p634 = scmp.lt.s32.totalorder %s29, 1
        %s635 = scalar_select %p634, %s29, 1
        %s636 = smul.addr %s635, 16
        %s637 = smul.addr %s636, 4
        %s638 = scalar_lea.vmem %s3, %s637
        %p639 = pneg %p123
        %p640 = pneg %p120
        %p641 = scmp.lt.s32.totalorder %s29, 1
        %s642 = scalar_select %p641, %s29, 1
        %s643 = smul.addr %s642, 4
        %s644 = scalar_lea.vmem %s4, %s643
        %p645 = pneg %p149
        %p646 = pneg %p146
        %p647 = scmp.lt.s32.totalorder %s29, 1
        %s648 = scalar_select %p647, %s29, 1
        %s649 = smul.addr %s648, 16
        %s650 = smul.addr %s649, 4
        %s651 = scalar_lea.vmem %s5, %s650
        %p652 = pneg %p175
        %p653 = pneg %p172
        %p654 = scmp.lt.s32.totalorder %s29, 1
        %s655 = scalar_select %p654, %s29, 1
        %s656 = smul.addr %s655, 4
        %s657 = scalar_lea.vmem %s6, %s656
        %p658 = pneg %p201
        %p659 = pneg %p198
        %p660 = scmp.lt.s32.totalorder %s29, 1
        %s661 = scalar_select %p660, %s29, 1
        %s662 = smul.addr %s661, 16
        %s663 = smul.addr %s662, 4
        %s664 = scalar_lea.vmem %s7, %s663
        %p665 = pneg %p227
        %p666 = pneg %p224
        %p667 = scmp.lt.s32.totalorder %s29, 1
        %s668 = scalar_select %p667, %s29, 1
        %s669 = smul.addr %s668, 4
        %s670 = scalar_lea.vmem %s8, %s669
        %p671 = pneg %p253
        %p672 = pneg %p250
        %p673 = scmp.lt.s32.totalorder %s29, 1
        %s674 = scalar_select %p673, %s29, 1
        %s675 = smul.addr %s674, 4
        %s676 = smul.addr %s675, 4
        %s677 = scalar_lea.vmem %s9, %s676
        %p678 = pneg %p279
        %p679 = pneg %p276
        %p680 = scmp.lt.s32.totalorder %s29, 1
        %s681 = scalar_select %p680, %s29, 1
        %s682 = scalar_lea.vmem %s10, %s681
        %p683 = pneg %p305
        %p684 = pneg %p302
        %p685 = scmp.lt.s32.totalorder %s29, 1
        %s686 = scalar_select %p685, %s29, 1
        %s687 = scalar_lea.vmem %s11, %s686
        %p688 = pneg %p331
        %p689 = pneg %p328
        %p690 = scmp.lt.s32.totalorder %s29, 1
        %s691 = scalar_select %p690, %s29, 1
        %s692 = scalar_lea.vmem %s12, %s691
        %p693 = pneg %p357
        %p694 = pneg %p354
        %p695 = scmp.lt.s32.totalorder %s29, 1
        %s696 = scalar_select %p695, %s29, 1
        %s697 = smul.addr %s696, 4
        %s698 = smul.addr %s697, 4
        %s699 = scalar_lea.vmem %s13, %s698
        %p700 = pneg %p383
        %p701 = pneg %p380
        %p702 = scmp.lt.s32.totalorder %s29, 1
        %s703 = scalar_select %p702, %s29, 1
        %s704 = scalar_lea.vmem %s14, %s703
        %p705 = pneg %p409
        %p706 = pneg %p406
        %p707 = scmp.lt.s32.totalorder %s29, 1
        %s708 = scalar_select %p707, %s29, 1
        %s709 = smul.addr %s708, 8
        %s710 = smul.addr %s709, 4
        %s711 = scalar_lea.vmem %s15, %s710
        %p712 = pneg %p435
        %p713 = pneg %p432
        %p714 = scmp.lt.s32.totalorder %s29, 1
        %s715 = scalar_select %p714, %s29, 1
        %s716 = scalar_lea.vmem %s16, %s715
        %p717 = pneg %p461
        %p718 = pneg %p458
        %p719 = pneg %p482
        %p720 = pneg %p479
        %p721 = scmp.lt.s32.totalorder %s29, 1
        %s722 = scalar_select %p721, %s29, 1
        %s723 = scalar_lea.vmem %s1, %s722
        %p724 = scmp.lt.s32.totalorder %s29, 1
        %s725 = scalar_select %p724, %s29, 1
        %s726 = scalar_lea.vmem %s2, %s725
        %p727 = scmp.lt.s32.totalorder %s29, 1
        %s728 = scalar_select %p727, %s29, 1
        %s729 = smul.addr %s728, 16
        %s730 = smul.addr %s729, 4
        %s731 = scalar_lea.vmem %s3, %s730
        %p732 = scmp.lt.s32.totalorder %s29, 1
        %s733 = scalar_select %p732, %s29, 1
        %s734 = smul.addr %s733, 4
        %s735 = scalar_lea.vmem %s4, %s734
        %p736 = scmp.lt.s32.totalorder %s29, 1
        %s737 = scalar_select %p736, %s29, 1
        %s738 = smul.addr %s737, 16
        %s739 = smul.addr %s738, 4
        %s740 = scalar_lea.vmem %s5, %s739
        %p741 = scmp.lt.s32.totalorder %s29, 1
        %s742 = scalar_select %p741, %s29, 1
        %s743 = smul.addr %s742, 4
        %s744 = scalar_lea.vmem %s6, %s743
        %p745 = scmp.lt.s32.totalorder %s29, 1
        %s746 = scalar_select %p745, %s29, 1
        %s747 = smul.addr %s746, 16
        %s748 = smul.addr %s747, 4
        %s749 = scalar_lea.vmem %s7, %s748
        %p750 = scmp.lt.s32.totalorder %s29, 1
        %s751 = scalar_select %p750, %s29, 1
        %s752 = smul.addr %s751, 4
        %s753 = scalar_lea.vmem %s8, %s752
        %p754 = scmp.lt.s32.totalorder %s29, 1
        %s755 = scalar_select %p754, %s29, 1
        %s756 = smul.addr %s755, 4
        %s757 = smul.addr %s756, 4
        %s758 = scalar_lea.vmem %s9, %s757
        %p759 = scmp.lt.s32.totalorder %s29, 1
        %s760 = scalar_select %p759, %s29, 1
        %s761 = scalar_lea.vmem %s10, %s760
        %p762 = scmp.lt.s32.totalorder %s29, 1
        %s763 = scalar_select %p762, %s29, 1
        %s764 = scalar_lea.vmem %s11, %s763
        %p765 = scmp.lt.s32.totalorder %s29, 1
        %s766 = scalar_select %p765, %s29, 1
        %s767 = scalar_lea.vmem %s12, %s766
        %p768 = scmp.lt.s32.totalorder %s29, 1
        %s769 = scalar_select %p768, %s29, 1
        %s770 = smul.addr %s769, 4
        %s771 = smul.addr %s770, 4
        %s772 = scalar_lea.vmem %s13, %s771
        %p773 = scmp.lt.s32.totalorder %s29, 1
        %s774 = scalar_select %p773, %s29, 1
        %s775 = scalar_lea.vmem %s14, %s774
        %p776 = scmp.lt.s32.totalorder %s29, 1
        %s777 = scalar_select %p776, %s29, 1
        %s778 = smul.addr %s777, 8
        %s779 = smul.addr %s778, 4
        %s780 = scalar_lea.vmem %s15, %s779
        %p781 = scmp.lt.s32.totalorder %s29, 1
        %s782 = scalar_select %p781, %s29, 1
        %s783 = scalar_lea.vmem %s16, %s782
        %p785 = scmp.eq.s32.totalorder %s29, 0
        // Predicated region
        $region89: #{tpu_custom_call.1} parent=87 // pred_check
          %p786 = pneg %p785
        $region90: #{tpu_custom_call.1} parent=87 // pred_check_branch
          %788 = sbr.rel (%p786) target = $region92
        $region91: #{tpu_custom_call.1} parent=87 // pred_region
          %v789 = vld [vmem:[%s0] sm:$0xff]
          %v790 = vld [vmem:[%s0 + $0x8] sm:$0xff]
          %vm791 = vcmask 261120
          %792 = vst.msk [vmem:[#allocation2] sm:$0xff] %vm791, %v789
          %793 = vst.msk [vmem:[#allocation2 + $0x8] sm:$0xff] %vm791, %v790
        $region92: #{tpu_custom_call.1} parent=87 // pred_fallthru
          _
        %v794 = vld [vmem:[#allocation2] sm:$0xff]
        %v795 = vld [vmem:[#allocation2 + $0x8] sm:$0xff]
        %v796 = vld [vmem:[%s723] sm:$0x1]
        %v797 = vld [vmem:[%s726] sm:$0x1]
        %v798 = vld [vmem:[%s764] sm:$0x1]
        %v799 = vld [vmem:[%s767] sm:$0x1]
        %v800 = vld [vmem:[%s731] sm:$0xf]
        %v801 = vld [vmem:[%s731 + $0x4] sm:$0xf]
        %v802 = vld [vmem:[%s731 + $0x8] sm:$0xf]
        %v803 = vld [vmem:[%s731 + $0xc] sm:$0xf]
        %v804 = vld [vmem:[%s731 + $0x10] sm:$0xf]
        %v805 = vld [vmem:[%s731 + $0x14] sm:$0xf]
        %v806 = vld [vmem:[%s731 + $0x18] sm:$0xf]
        %v807 = vld [vmem:[%s731 + $0x1c] sm:$0xf]
        %v808 = vld [vmem:[%s731 + $0x20] sm:$0xf]
        %v809 = vld [vmem:[%s731 + $0x24] sm:$0xf]
        %v810 = vld [vmem:[%s731 + $0x28] sm:$0xf]
        %v811 = vld [vmem:[%s731 + $0x2c] sm:$0xf]
        %v812 = vld [vmem:[%s731 + $0x30] sm:$0xf]
        %v813 = vld [vmem:[%s731 + $0x34] sm:$0xf]
        %v814 = vld [vmem:[%s731 + $0x38] sm:$0xf]
        %v815 = vld [vmem:[%s731 + $0x3c] sm:$0xf]
        %v816 = vld [vmem:[%s740] sm:$0xf]
        %v817 = vld [vmem:[%s740 + $0x4] sm:$0xf]
        %v818 = vld [vmem:[%s740 + $0x8] sm:$0xf]
        %v819 = vld [vmem:[%s740 + $0xc] sm:$0xf]
        %v820 = vld [vmem:[%s740 + $0x10] sm:$0xf]
        %v821 = vld [vmem:[%s740 + $0x14] sm:$0xf]
        %v822 = vld [vmem:[%s740 + $0x18] sm:$0xf]
        %v823 = vld [vmem:[%s740 + $0x1c] sm:$0xf]
        %v824 = vld [vmem:[%s740 + $0x20] sm:$0xf]
        %v825 = vld [vmem:[%s740 + $0x24] sm:$0xf]
        %v826 = vld [vmem:[%s740 + $0x28] sm:$0xf]
        %v827 = vld [vmem:[%s740 + $0x2c] sm:$0xf]
        %v828 = vld [vmem:[%s740 + $0x30] sm:$0xf]
        %v829 = vld [vmem:[%s740 + $0x34] sm:$0xf]
        %v830 = vld [vmem:[%s740 + $0x38] sm:$0xf]
        %v831 = vld [vmem:[%s740 + $0x3c] sm:$0xf]
        %v832 = vld [vmem:[%s749] sm:$0xf]
        %v833 = vld [vmem:[%s749 + $0x4] sm:$0xf]
        %v834 = vld [vmem:[%s749 + $0x8] sm:$0xf]
        %v835 = vld [vmem:[%s749 + $0xc] sm:$0xf]
        %v836 = vld [vmem:[%s749 + $0x10] sm:$0xf]
        %v837 = vld [vmem:[%s749 + $0x14] sm:$0xf]
        %v838 = vld [vmem:[%s749 + $0x18] sm:$0xf]
        %v839 = vld [vmem:[%s749 + $0x1c] sm:$0xf]
        %v840 = vld [vmem:[%s749 + $0x20] sm:$0xf]
        %v841 = vld [vmem:[%s749 + $0x24] sm:$0xf]
        %v842 = vld [vmem:[%s749 + $0x28] sm:$0xf]
        %v843 = vld [vmem:[%s749 + $0x2c] sm:$0xf]
        %v844 = vld [vmem:[%s749 + $0x30] sm:$0xf]
        %v845 = vld [vmem:[%s749 + $0x34] sm:$0xf]
        %v846 = vld [vmem:[%s749 + $0x38] sm:$0xf]
        %v847 = vld [vmem:[%s749 + $0x3c] sm:$0xf]
        %v848 = vld [vmem:[%s758] sm:$0xf]
        %v849 = vld [vmem:[%s758 + $0x4] sm:$0xf]
        %v850 = vld [vmem:[%s758 + $0x8] sm:$0xf]
        %v851 = vld [vmem:[%s758 + $0xc] sm:$0xf]
        %v852 = vld [vmem:[%s735] sm:$0x1]
        %v853 = vld [vmem:[%s735 + $0x1] sm:$0x1]
        %v854 = vld [vmem:[%s735 + $0x2] sm:$0x1]
        %v855 = vld [vmem:[%s735 + $0x3] sm:$0x1]
        %v856 = vld [vmem:[%s744] sm:$0x1]
        %v857 = vld [vmem:[%s744 + $0x1] sm:$0x1]
        %v858 = vld [vmem:[%s744 + $0x2] sm:$0x1]
        %v859 = vld [vmem:[%s744 + $0x3] sm:$0x1]
        %v860 = vld [vmem:[%s753] sm:$0x1]
        %v861 = vld [vmem:[%s753 + $0x1] sm:$0x1]
        %v862 = vld [vmem:[%s753 + $0x2] sm:$0x1]
        %v863 = vld [vmem:[%s753 + $0x3] sm:$0x1]
        %v864 = vld [vmem:[%s761] sm:$0x1]
        %v865 = vld [vmem:[%s772] sm:$0xf]
        %v866 = vld [vmem:[%s772 + $0x4] sm:$0xf]
        %v867 = vld [vmem:[%s772 + $0x8] sm:$0xf]
        %v868 = vld [vmem:[%s772 + $0xc] sm:$0xf]
        %v869 = vld [vmem:[%s775] sm:$0x1]
        %v870 = vld [vmem:[%s780] sm:$0xf]
        %v871 = vld [vmem:[%s780 + $0x4] sm:$0xf]
        %v872 = vld [vmem:[%s780 + $0x8] sm:$0xf]
        %v873 = vld [vmem:[%s780 + $0xc] sm:$0xf]
        %v874 = vld [vmem:[%s780 + $0x10] sm:$0xf]
        %v875 = vld [vmem:[%s780 + $0x14] sm:$0xf]
        %v876 = vld [vmem:[%s780 + $0x18] sm:$0xf]
        %v877 = vld [vmem:[%s780 + $0x1c] sm:$0xf]
        %v878 = vld [vmem:[%s783] sm:$0x1]
        %v879 = vlaneseq
        %v880 = vshrl.u32 %v879, 7
        %v881 = vlaneseq
        %v882 = vand.u32 %v881, 127
        %vm883 = vcmp.le.s32.totalorder %v882, %v880
        %vm884 = vcmask 261120
        %v885 = vsel %vm884, %v794, 0.0
        %886 = vadd.xlane.f32.xlu0 %v885
        %v887 = vpop.xlane.xlu0 %886
        %v888 = vsel %vm884, %v795, 0.0
        %889 = vadd.xlane.f32.xlu0 %v888
        %v890 = vpop.xlane.xlu0 %889
        %v891 = vrcp.pop 32.0
        %v892 = vmul.f32 %v887, %v891
        %v893 = vmul.f32 %v890, %v891
        %v894 = vsub.f32 %v794, %v892
        %v895 = vsub.f32 %v795, %v893
        %v896 = vmul.f32 %v894, %v894
        %v897 = vmul.f32 %v895, %v895
        %v898 = vsel %vm884, %v896, 0.0
        %899 = vadd.xlane.f32.xlu0 %v898
        %v900 = vpop.xlane.xlu0 %899
        %v901 = vsel %vm884, %v897, 0.0
        %902 = vadd.xlane.f32.xlu0 %v901
        %v903 = vpop.xlane.xlu0 %902
        %v904 = vmul.f32 %v900, %v891
        %v905 = vmul.f32 %v903, %v891
        %v906 = vadd.f32 %v904, 1e-05
        %v907 = vadd.f32 %v905, 1e-05
        %v908 = vrsqrt.pop %v906
        %v909 = vrsqrt.pop %v907
        %v910 = vmul.f32 %v894, %v908
        %v911 = vmul.f32 %v895, %v909
        %v913 = vlaneseq
        %v914 = vshrl.u32 %v913, 7
        %v915 = vsub.s32 0, %v914
        %v916 = vrot.slane %v796, %v915
        %v918 = vmul.f32 %v910, %v916
        %v919 = vmul.f32 %v911, %v916
        %v921 = vlaneseq
        %v922 = vshrl.u32 %v921, 7
        %v923 = vsub.s32 0, %v922
        %v924 = vrot.slane %v797, %v923
        %v926 = vadd.f32 %v918, %v924
        %v927 = vadd.f32 %v919, %v924
        %v928 = vpack.c.bf16 %v927, %v926
        %v933 = vlaneseq
        %v934 = vshrl.u32 %v933, 7
        %v935 = vsub.s32 0, %v934
        %v936 = vrot.slane %v852, %v935
        %v937 = vlaneseq
        %v938 = vshrl.u32 %v937, 7
        %v939 = vsub.s32 0, %v938
        %v940 = vrot.slane %v853, %v939
        %v941 = vlaneseq
        %v942 = vshrl.u32 %v941, 7
        %v943 = vsub.s32 0, %v942
        %v944 = vrot.slane %v854, %v943
        %v945 = vlaneseq
        %v946 = vshrl.u32 %v945, 7
        %v947 = vsub.s32 0, %v946
        %v948 = vrot.slane %v855, %v947
        %v957 = vunpack.c.l.b16 %v800
        %v958 = vunpack.c.l.b16 %v801
        %v959 = vunpack.c.l.b16 %v802
        %v960 = vunpack.c.l.b16 %v803
        %v961 = vpack.c.b16 %v958, %v957
        %v962 = vpack.c.b16 %v960, %v959
        %v966 = vsel %vm884, %v928, 0
        %968 = vmatprep.subr.bf16.mxu0 0
        %969 = vmatpush1.bf16.msra.mxu0 0
        %970 = vmatprep.subr.bf16.mxu0 0
        %971 = vmatpush1.bf16.msra.mxu0 0
        %972 = vmatprep.subr.bf16.mxu0 0
        %973 = vmatpush1.bf16.msra.mxu0 0
        %974 = vmatprep.subr.bf16.mxu0 0
        %975 = vmatpush1.bf16.msra.mxu0 0
        %976 = vmatprep.subr.bf16.mxu0 0
        %977 = vmatpush1.bf16.msra.mxu0 0
        %978 = vmatprep.subr.bf16.mxu0 0
        %979 = vmatpush1.bf16.msra.mxu0 0
        %980 = vmatprep.subr.bf16.mxu0 0
        %981 = vmatpush1.bf16.msra.mxu0 %v962
        %982 = vmatprep.subr.bf16.mxu0 0
        %983 = vmatpush1.bf16.msra.mxu0 %v961
        %984 = vmatprep.subr.bf16.mxu0 0
        %985 = vmatpush2.bf16.msra.mxu0 0
        %986 = vmatprep.subr.bf16.mxu0 0
        %987 = vmatpush2.bf16.msra.mxu0 0
        %988 = vmatprep.subr.bf16.mxu0 0
        %989 = vmatpush2.bf16.msra.mxu0 0
        %990 = vmatprep.subr.bf16.mxu0 0
        %991 = vmatpush2.bf16.msra.mxu0 0
        %992 = vmatprep.subr.bf16.mxu0 0
        %993 = vmatpush2.bf16.msra.mxu0 0
        %994 = vmatprep.subr.bf16.mxu0 0
        %995 = vmatpush2.bf16.msra.mxu0 0
        %996 = vmatprep.subr.bf16.mxu0 0
        %997 = vmatpush2.bf16.msra.mxu0 0
        %998 = vmatprep.subr.bf16.mxu0 0
        %999 = vmatpush2.bf16.msra.mxu0 0
        %1000 = vmatprep.mubr.bf16.mxu0 0
        %1001 = vmatmul.mubr.bf16.gmra.mxu0 %v966
        %v1002 = vpop.f32.mrf.mxu0
        %v1003 = vadd.f32 %v936, %v1002
        %v1004 = vpop.f32.mrf.mxu0
        %v1005 = vpop.f32.mrf.mxu0
        %v1006 = vpop.f32.mrf.mxu0
        %1007 = vdwg.mxu0
        %v1012 = vunpack.c.l.b16 %v804
        %v1013 = vunpack.c.l.b16 %v805
        %v1014 = vunpack.c.l.b16 %v806
        %v1015 = vunpack.c.l.b16 %v807
        %v1016 = vpack.c.b16 %v1013, %v1012
        %v1017 = vpack.c.b16 %v1015, %v1014
        %1020 = vmatprep.subr.bf16.mxu0 0
        %1021 = vmatpush1.bf16.msra.mxu0 0
        %1022 = vmatprep.subr.bf16.mxu0 0
        %1023 = vmatpush1.bf16.msra.mxu0 0
        %1024 = vmatprep.subr.bf16.mxu0 0
        %1025 = vmatpush1.bf16.msra.mxu0 0
        %1026 = vmatprep.subr.bf16.mxu0 0
        %1027 = vmatpush1.bf16.msra.mxu0 0
        %1028 = vmatprep.subr.bf16.mxu0 0
        %1029 = vmatpush1.bf16.msra.mxu0 0
        %1030 = vmatprep.subr.bf16.mxu0 0
        %1031 = vmatpush1.bf16.msra.mxu0 0
        %1032 = vmatprep.subr.bf16.mxu0 0
        %1033 = vmatpush1.bf16.msra.mxu0 %v1017
        %1034 = vmatprep.subr.bf16.mxu0 0
        %1035 = vmatpush1.bf16.msra.mxu0 %v1016
        %1036 = vmatprep.subr.bf16.mxu0 0
        %1037 = vmatpush2.bf16.msra.mxu0 0
        %1038 = vmatprep.subr.bf16.mxu0 0
        %1039 = vmatpush2.bf16.msra.mxu0 0
        %1040 = vmatprep.subr.bf16.mxu0 0
        %1041 = vmatpush2.bf16.msra.mxu0 0
        %1042 = vmatprep.subr.bf16.mxu0 0
        %1043 = vmatpush2.bf16.msra.mxu0 0
        %1044 = vmatprep.subr.bf16.mxu0 0
        %1045 = vmatpush2.bf16.msra.mxu0 0
        %1046 = vmatprep.subr.bf16.mxu0 0
        %1047 = vmatpush2.bf16.msra.mxu0 0
        %1048 = vmatprep.subr.bf16.mxu0 0
        %1049 = vmatpush2.bf16.msra.mxu0 0
        %1050 = vmatprep.subr.bf16.mxu0 0
        %1051 = vmatpush2.bf16.msra.mxu0 0
        %1052 = vmatprep.mubr.bf16.mxu0 0
        %1053 = vmatmul.mubr.bf16.gmra.mxu0 %v966
        %v1054 = vpop.f32.mrf.mxu0
        %v1055 = vadd.f32 %v940, %v1054
        %v1056 = vpop.f32.mrf.mxu0
        %v1057 = vpop.f32.mrf.mxu0
        %v1058 = vpop.f32.mrf.mxu0
        %1059 = vdwg.mxu0
        %v1064 = vunpack.c.l.b16 %v808
        %v1065 = vunpack.c.l.b16 %v809
        %v1066 = vunpack.c.l.b16 %v810
        %v1067 = vunpack.c.l.b16 %v811
        %v1068 = vpack.c.b16 %v1065, %v1064
        %v1069 = vpack.c.b16 %v1067, %v1066
        %1072 = vmatprep.subr.bf16.mxu0 0
        %1073 = vmatpush1.bf16.msra.mxu0 0
        %1074 = vmatprep.subr.bf16.mxu0 0
        %1075 = vmatpush1.bf16.msra.mxu0 0
        %1076 = vmatprep.subr.bf16.mxu0 0
        %1077 = vmatpush1.bf16.msra.mxu0 0
        %1078 = vmatprep.subr.bf16.mxu0 0
        %1079 = vmatpush1.bf16.msra.mxu0 0
        %1080 = vmatprep.subr.bf16.mxu0 0
        %1081 = vmatpush1.bf16.msra.mxu0 0
        %1082 = vmatprep.subr.bf16.mxu0 0
        %1083 = vmatpush1.bf16.msra.mxu0 0
        %1084 = vmatprep.subr.bf16.mxu0 0
        %1085 = vmatpush1.bf16.msra.mxu0 %v1069
        %1086 = vmatprep.subr.bf16.mxu0 0
        %1087 = vmatpush1.bf16.msra.mxu0 %v1068
        %1088 = vmatprep.subr.bf16.mxu0 0
        %1089 = vmatpush2.bf16.msra.mxu0 0
        %1090 = vmatprep.subr.bf16.mxu0 0
        %1091 = vmatpush2.bf16.msra.mxu0 0
        %1092 = vmatprep.subr.bf16.mxu0 0
        %1093 = vmatpush2.bf16.msra.mxu0 0
        %1094 = vmatprep.subr.bf16.mxu0 0
        %1095 = vmatpush2.bf16.msra.mxu0 0
        %1096 = vmatprep.subr.bf16.mxu0 0
        %1097 = vmatpush2.bf16.msra.mxu0 0
        %1098 = vmatprep.subr.bf16.mxu0 0
        %1099 = vmatpush2.bf16.msra.mxu0 0
        %1100 = vmatprep.subr.bf16.mxu0 0
        %1101 = vmatpush2.bf16.msra.mxu0 0
        %1102 = vmatprep.subr.bf16.mxu0 0
        %1103 = vmatpush2.bf16.msra.mxu0 0
        %1104 = vmatprep.mubr.bf16.mxu0 0
        %1105 = vmatmul.mubr.bf16.gmra.mxu0 %v966
        %v1106 = vpop.f32.mrf.mxu0
        %v1107 = vadd.f32 %v944, %v1106
        %v1108 = vpop.f32.mrf.mxu0
        %v1109 = vpop.f32.mrf.mxu0
        %v1110 = vpop.f32.mrf.mxu0
        %1111 = vdwg.mxu0
        %v1116 = vunpack.c.l.b16 %v812
        %v1117 = vunpack.c.l.b16 %v813
        %v1118 = vunpack.c.l.b16 %v814
        %v1119 = vunpack.c.l.b16 %v815
        %v1120 = vpack.c.b16 %v1117, %v1116
        %v1121 = vpack.c.b16 %v1119, %v1118
        %1124 = vmatprep.subr.bf16.mxu0 0
        %1125 = vmatpush1.bf16.msra.mxu0 0
        %1126 = vmatprep.subr.bf16.mxu0 0
        %1127 = vmatpush1.bf16.msra.mxu0 0
        %1128 = vmatprep.subr.bf16.mxu0 0
        %1129 = vmatpush1.bf16.msra.mxu0 0
        %1130 = vmatprep.subr.bf16.mxu0 0
        %1131 = vmatpush1.bf16.msra.mxu0 0
        %1132 = vmatprep.subr.bf16.mxu0 0
        %1133 = vmatpush1.bf16.msra.mxu0 0
        %1134 = vmatprep.subr.bf16.mxu0 0
        %1135 = vmatpush1.bf16.msra.mxu0 0
        %1136 = vmatprep.subr.bf16.mxu0 0
        %1137 = vmatpush1.bf16.msra.mxu0 %v1121
        %1138 = vmatprep.subr.bf16.mxu0 0
        %1139 = vmatpush1.bf16.msra.mxu0 %v1120
        %1140 = vmatprep.subr.bf16.mxu0 0
        %1141 = vmatpush2.bf16.msra.mxu0 0
        %1142 = vmatprep.subr.bf16.mxu0 0
        %1143 = vmatpush2.bf16.msra.mxu0 0
        %1144 = vmatprep.subr.bf16.mxu0 0
        %1145 = vmatpush2.bf16.msra.mxu0 0
        %1146 = vmatprep.subr.bf16.mxu0 0
        %1147 = vmatpush2.bf16.msra.mxu0 0
        %1148 = vmatprep.subr.bf16.mxu0 0
        %1149 = vmatpush2.bf16.msra.mxu0 0
        %1150 = vmatprep.subr.bf16.mxu0 0
        %1151 = vmatpush2.bf16.msra.mxu0 0
        %1152 = vmatprep.subr.bf16.mxu0 0
        %1153 = vmatpush2.bf16.msra.mxu0 0
        %1154 = vmatprep.subr.bf16.mxu0 0
        %1155 = vmatpush2.bf16.msra.mxu0 0
        %1156 = vmatprep.mubr.bf16.mxu0 0
        %1157 = vmatmul.mubr.bf16.gmra.mxu0 %v966
        %v1158 = vpop.f32.mrf.mxu0
        %v1159 = vadd.f32 %v948, %v1158
        %v1160 = vpop.f32.mrf.mxu0
        %v1161 = vpop.f32.mrf.mxu0
        %v1162 = vpop.f32.mrf.mxu0
        %1163 = vdwg.mxu0
        %v1168 = vlaneseq
        %v1169 = vshrl.u32 %v1168, 7
        %v1170 = vsub.s32 0, %v1169
        %v1171 = vrot.slane %v856, %v1170
        %v1172 = vlaneseq
        %v1173 = vshrl.u32 %v1172, 7
        %v1174 = vsub.s32 0, %v1173
        %v1175 = vrot.slane %v857, %v1174
        %v1176 = vlaneseq
        %v1177 = vshrl.u32 %v1176, 7
        %v1178 = vsub.s32 0, %v1177
        %v1179 = vrot.slane %v858, %v1178
        %v1180 = vlaneseq
        %v1181 = vshrl.u32 %v1180, 7
        %v1182 = vsub.s32 0, %v1181
        %v1183 = vrot.slane %v859, %v1182
        %v1192 = vunpack.c.l.b16 %v816
        %v1193 = vunpack.c.l.b16 %v817
        %v1194 = vunpack.c.l.b16 %v818
        %v1195 = vunpack.c.l.b16 %v819
        %v1196 = vpack.c.b16 %v1193, %v1192
        %v1197 = vpack.c.b16 %v1195, %v1194
        %1200 = vmatprep.subr.bf16.mxu0 0
        %1201 = vmatpush1.bf16.msra.mxu0 0
        %1202 = vmatprep.subr.bf16.mxu0 0
        %1203 = vmatpush1.bf16.msra.mxu0 0
        %1204 = vmatprep.subr.bf16.mxu0 0
        %1205 = vmatpush1.bf16.msra.mxu0 0
        %1206 = vmatprep.subr.bf16.mxu0 0
        %1207 = vmatpush1.bf16.msra.mxu0 0
        %1208 = vmatprep.subr.bf16.mxu0 0
        %1209 = vmatpush1.bf16.msra.mxu0 0
        %1210 = vmatprep.subr.bf16.mxu0 0
        %1211 = vmatpush1.bf16.msra.mxu0 0
        %1212 = vmatprep.subr.bf16.mxu0 0
        %1213 = vmatpush1.bf16.msra.mxu0 %v1197
        %1214 = vmatprep.subr.bf16.mxu0 0
        %1215 = vmatpush1.bf16.msra.mxu0 %v1196
        %1216 = vmatprep.subr.bf16.mxu0 0
        %1217 = vmatpush2.bf16.msra.mxu0 0
        %1218 = vmatprep.subr.bf16.mxu0 0
        %1219 = vmatpush2.bf16.msra.mxu0 0
        %1220 = vmatprep.subr.bf16.mxu0 0
        %1221 = vmatpush2.bf16.msra.mxu0 0
        %1222 = vmatprep.subr.bf16.mxu0 0
        %1223 = vmatpush2.bf16.msra.mxu0 0
        %1224 = vmatprep.subr.bf16.mxu0 0
        %1225 = vmatpush2.bf16.msra.mxu0 0
        %1226 = vmatprep.subr.bf16.mxu0 0
        %1227 = vmatpush2.bf16.msra.mxu0 0
        %1228 = vmatprep.subr.bf16.mxu0 0
        %1229 = vmatpush2.bf16.msra.mxu0 0
        %1230 = vmatprep.subr.bf16.mxu0 0
        %1231 = vmatpush2.bf16.msra.mxu0 0
        %1232 = vmatprep.mubr.bf16.mxu0 0
        %1233 = vmatmul.mubr.bf16.gmra.mxu0 %v966
        %v1234 = vpop.f32.mrf.mxu0
        %v1235 = vadd.f32 %v1171, %v1234
        %v1236 = vpop.f32.mrf.mxu0
        %v1237 = vpop.f32.mrf.mxu0
        %v1238 = vpop.f32.mrf.mxu0
        %1239 = vdwg.mxu0
        %v1244 = vunpack.c.l.b16 %v820
        %v1245 = vunpack.c.l.b16 %v821
        %v1246 = vunpack.c.l.b16 %v822
        %v1247 = vunpack.c.l.b16 %v823
        %v1248 = vpack.c.b16 %v1245, %v1244
        %v1249 = vpack.c.b16 %v1247, %v1246
        %1252 = vmatprep.subr.bf16.mxu0 0
        %1253 = vmatpush1.bf16.msra.mxu0 0
        %1254 = vmatprep.subr.bf16.mxu0 0
        %1255 = vmatpush1.bf16.msra.mxu0 0
        %1256 = vmatprep.subr.bf16.mxu0 0
        %1257 = vmatpush1.bf16.msra.mxu0 0
        %1258 = vmatprep.subr.bf16.mxu0 0
        %1259 = vmatpush1.bf16.msra.mxu0 0
        %1260 = vmatprep.subr.bf16.mxu0 0
        %1261 = vmatpush1.bf16.msra.mxu0 0
        %1262 = vmatprep.subr.bf16.mxu0 0
        %1263 = vmatpush1.bf16.msra.mxu0 0
        %1264 = vmatprep.subr.bf16.mxu0 0
        %1265 = vmatpush1.bf16.msra.mxu0 %v1249
        %1266 = vmatprep.subr.bf16.mxu0 0
        %1267 = vmatpush1.bf16.msra.mxu0 %v1248
        %1268 = vmatprep.subr.bf16.mxu0 0
        %1269 = vmatpush2.bf16.msra.mxu0 0
        %1270 = vmatprep.subr.bf16.mxu0 0
        %1271 = vmatpush2.bf16.msra.mxu0 0
        %1272 = vmatprep.subr.bf16.mxu0 0
        %1273 = vmatpush2.bf16.msra.mxu0 0
        %1274 = vmatprep.subr.bf16.mxu0 0
        %1275 = vmatpush2.bf16.msra.mxu0 0
        %1276 = vmatprep.subr.bf16.mxu0 0
        %1277 = vmatpush2.bf16.msra.mxu0 0
        %1278 = vmatprep.subr.bf16.mxu0 0
        %1279 = vmatpush2.bf16.msra.mxu0 0
        %1280 = vmatprep.subr.bf16.mxu0 0
        %1281 = vmatpush2.bf16.msra.mxu0 0
        %1282 = vmatprep.subr.bf16.mxu0 0
        %1283 = vmatpush2.bf16.msra.mxu0 0
        %1284 = vmatprep.mubr.bf16.mxu0 0
        %1285 = vmatmul.mubr.bf16.gmra.mxu0 %v966
        %v1286 = vpop.f32.mrf.mxu0
        %v1287 = vadd.f32 %v1175, %v1286
        %v1288 = vpop.f32.mrf.mxu0
        %v1289 = vpop.f32.mrf.mxu0
        %v1290 = vpop.f32.mrf.mxu0
        %1291 = vdwg.mxu0
        %v1296 = vunpack.c.l.b16 %v824
        %v1297 = vunpack.c.l.b16 %v825
        %v1298 = vunpack.c.l.b16 %v826
        %v1299 = vunpack.c.l.b16 %v827
        %v1300 = vpack.c.b16 %v1297, %v1296
        %v1301 = vpack.c.b16 %v1299, %v1298
        %1304 = vmatprep.subr.bf16.mxu0 0
        %1305 = vmatpush1.bf16.msra.mxu0 0
        %1306 = vmatprep.subr.bf16.mxu0 0
        %1307 = vmatpush1.bf16.msra.mxu0 0
        %1308 = vmatprep.subr.bf16.mxu0 0
        %1309 = vmatpush1.bf16.msra.mxu0 0
        %1310 = vmatprep.subr.bf16.mxu0 0
        %1311 = vmatpush1.bf16.msra.mxu0 0
        %1312 = vmatprep.subr.bf16.mxu0 0
        %1313 = vmatpush1.bf16.msra.mxu0 0
        %1314 = vmatprep.subr.bf16.mxu0 0
        %1315 = vmatpush1.bf16.msra.mxu0 0
        %1316 = vmatprep.subr.bf16.mxu0 0
        %1317 = vmatpush1.bf16.msra.mxu0 %v1301
        %1318 = vmatprep.subr.bf16.mxu0 0
        %1319 = vmatpush1.bf16.msra.mxu0 %v1300
        %1320 = vmatprep.subr.bf16.mxu0 0
        %1321 = vmatpush2.bf16.msra.mxu0 0
        %1322 = vmatprep.subr.bf16.mxu0 0
        %1323 = vmatpush2.bf16.msra.mxu0 0
        %1324 = vmatprep.subr.bf16.mxu0 0
        %1325 = vmatpush2.bf16.msra.mxu0 0
        %1326 = vmatprep.subr.bf16.mxu0 0
        %1327 = vmatpush2.bf16.msra.mxu0 0
        %1328 = vmatprep.subr.bf16.mxu0 0
        %1329 = vmatpush2.bf16.msra.mxu0 0
        %1330 = vmatprep.subr.bf16.mxu0 0
        %1331 = vmatpush2.bf16.msra.mxu0 0
        %1332 = vmatprep.subr.bf16.mxu0 0
        %1333 = vmatpush2.bf16.msra.mxu0 0
        %1334 = vmatprep.subr.bf16.mxu0 0
        %1335 = vmatpush2.bf16.msra.mxu0 0
        %1336 = vmatprep.mubr.bf16.mxu0 0
        %1337 = vmatmul.mubr.bf16.gmra.mxu0 %v966
        %v1338 = vpop.f32.mrf.mxu0
        %v1339 = vadd.f32 %v1179, %v1338
        %v1340 = vpop.f32.mrf.mxu0
        %v1341 = vpop.f32.mrf.mxu0
        %v1342 = vpop.f32.mrf.mxu0
        %1343 = vdwg.mxu0
        %v1348 = vunpack.c.l.b16 %v828
        %v1349 = vunpack.c.l.b16 %v829
        %v1350 = vunpack.c.l.b16 %v830
        %v1351 = vunpack.c.l.b16 %v831
        %v1352 = vpack.c.b16 %v1349, %v1348
        %v1353 = vpack.c.b16 %v1351, %v1350
        %1356 = vmatprep.subr.bf16.mxu0 0
        %1357 = vmatpush1.bf16.msra.mxu0 0
        %1358 = vmatprep.subr.bf16.mxu0 0
        %1359 = vmatpush1.bf16.msra.mxu0 0
        %1360 = vmatprep.subr.bf16.mxu0 0
        %1361 = vmatpush1.bf16.msra.mxu0 0
        %1362 = vmatprep.subr.bf16.mxu0 0
        %1363 = vmatpush1.bf16.msra.mxu0 0
        %1364 = vmatprep.subr.bf16.mxu0 0
        %1365 = vmatpush1.bf16.msra.mxu0 0
        %1366 = vmatprep.subr.bf16.mxu0 0
        %1367 = vmatpush1.bf16.msra.mxu0 0
        %1368 = vmatprep.subr.bf16.mxu0 0
        %1369 = vmatpush1.bf16.msra.mxu0 %v1353
        %1370 = vmatprep.subr.bf16.mxu0 0
        %1371 = vmatpush1.bf16.msra.mxu0 %v1352
        %1372 = vmatprep.subr.bf16.mxu0 0
        %1373 = vmatpush2.bf16.msra.mxu0 0
        %1374 = vmatprep.subr.bf16.mxu0 0
        %1375 = vmatpush2.bf16.msra.mxu0 0
        %1376 = vmatprep.subr.bf16.mxu0 0
        %1377 = vmatpush2.bf16.msra.mxu0 0
        %1378 = vmatprep.subr.bf16.mxu0 0
        %1379 = vmatpush2.bf16.msra.mxu0 0
        %1380 = vmatprep.subr.bf16.mxu0 0
        %1381 = vmatpush2.bf16.msra.mxu0 0
        %1382 = vmatprep.subr.bf16.mxu0 0
        %1383 = vmatpush2.bf16.msra.mxu0 0
        %1384 = vmatprep.subr.bf16.mxu0 0
        %1385 = vmatpush2.bf16.msra.mxu0 0
        %1386 = vmatprep.subr.bf16.mxu0 0
        %1387 = vmatpush2.bf16.msra.mxu0 0
        %1388 = vmatprep.mubr.bf16.mxu0 0
        %1389 = vmatmul.mubr.bf16.gmra.mxu0 %v966
        %v1390 = vpop.f32.mrf.mxu0
        %v1391 = vadd.f32 %v1183, %v1390
        %v1392 = vpop.f32.mrf.mxu0
        %v1393 = vpop.f32.mrf.mxu0
        %v1394 = vpop.f32.mrf.mxu0
        %1395 = vdwg.mxu0
        %v1400 = vlaneseq
        %v1401 = vshrl.u32 %v1400, 7
        %v1402 = vsub.s32 0, %v1401
        %v1403 = vrot.slane %v860, %v1402
        %v1404 = vlaneseq
        %v1405 = vshrl.u32 %v1404, 7
        %v1406 = vsub.s32 0, %v1405
        %v1407 = vrot.slane %v861, %v1406
        %v1408 = vlaneseq
        %v1409 = vshrl.u32 %v1408, 7
        %v1410 = vsub.s32 0, %v1409
        %v1411 = vrot.slane %v862, %v1410
        %v1412 = vlaneseq
        %v1413 = vshrl.u32 %v1412, 7
        %v1414 = vsub.s32 0, %v1413
        %v1415 = vrot.slane %v863, %v1414
        %v1424 = vunpack.c.l.b16 %v832
        %v1425 = vunpack.c.l.b16 %v833
        %v1426 = vunpack.c.l.b16 %v834
        %v1427 = vunpack.c.l.b16 %v835
        %v1428 = vpack.c.b16 %v1425, %v1424
        %v1429 = vpack.c.b16 %v1427, %v1426
        %1432 = vmatprep.subr.bf16.mxu0 0
        %1433 = vmatpush1.bf16.msra.mxu0 0
        %1434 = vmatprep.subr.bf16.mxu0 0
        %1435 = vmatpush1.bf16.msra.mxu0 0
        %1436 = vmatprep.subr.bf16.mxu0 0
        %1437 = vmatpush1.bf16.msra.mxu0 0
        %1438 = vmatprep.subr.bf16.mxu0 0
        %1439 = vmatpush1.bf16.msra.mxu0 0
        %1440 = vmatprep.subr.bf16.mxu0 0
        %1441 = vmatpush1.bf16.msra.mxu0 0
        %1442 = vmatprep.subr.bf16.mxu0 0
        %1443 = vmatpush1.bf16.msra.mxu0 0
        %1444 = vmatprep.subr.bf16.mxu0 0
        %1445 = vmatpush1.bf16.msra.mxu0 %v1429
        %1446 = vmatprep.subr.bf16.mxu0 0
        %1447 = vmatpush1.bf16.msra.mxu0 %v1428
        %1448 = vmatprep.subr.bf16.mxu0 0
        %1449 = vmatpush2.bf16.msra.mxu0 0
        %1450 = vmatprep.subr.bf16.mxu0 0
        %1451 = vmatpush2.bf16.msra.mxu0 0
        %1452 = vmatprep.subr.bf16.mxu0 0
        %1453 = vmatpush2.bf16.msra.mxu0 0
        %1454 = vmatprep.subr.bf16.mxu0 0
        %1455 = vmatpush2.bf16.msra.mxu0 0
        %1456 = vmatprep.subr.bf16.mxu0 0
        %1457 = vmatpush2.bf16.msra.mxu0 0
        %1458 = vmatprep.subr.bf16.mxu0 0
        %1459 = vmatpush2.bf16.msra.mxu0 0
        %1460 = vmatprep.subr.bf16.mxu0 0
        %1461 = vmatpush2.bf16.msra.mxu0 0
        %1462 = vmatprep.subr.bf16.mxu0 0
        %1463 = vmatpush2.bf16.msra.mxu0 0
        %1464 = vmatprep.mubr.bf16.mxu0 0
        %1465 = vmatmul.mubr.bf16.gmra.mxu0 %v966
        %v1466 = vpop.f32.mrf.mxu0
        %v1467 = vadd.f32 %v1403, %v1466
        %v1468 = vpop.f32.mrf.mxu0
        %v1469 = vpop.f32.mrf.mxu0
        %v1470 = vpop.f32.mrf.mxu0
        %1471 = vdwg.mxu0
        %v1476 = vunpack.c.l.b16 %v836
        %v1477 = vunpack.c.l.b16 %v837
        %v1478 = vunpack.c.l.b16 %v838
        %v1479 = vunpack.c.l.b16 %v839
        %v1480 = vpack.c.b16 %v1477, %v1476
        %v1481 = vpack.c.b16 %v1479, %v1478
        %1484 = vmatprep.subr.bf16.mxu0 0
        %1485 = vmatpush1.bf16.msra.mxu0 0
        %1486 = vmatprep.subr.bf16.mxu0 0
        %1487 = vmatpush1.bf16.msra.mxu0 0
        %1488 = vmatprep.subr.bf16.mxu0 0
        %1489 = vmatpush1.bf16.msra.mxu0 0
        %1490 = vmatprep.subr.bf16.mxu0 0
        %1491 = vmatpush1.bf16.msra.mxu0 0
        %1492 = vmatprep.subr.bf16.mxu0 0
        %1493 = vmatpush1.bf16.msra.mxu0 0
        %1494 = vmatprep.subr.bf16.mxu0 0
        %1495 = vmatpush1.bf16.msra.mxu0 0
        %1496 = vmatprep.subr.bf16.mxu0 0
        %1497 = vmatpush1.bf16.msra.mxu0 %v1481
        %1498 = vmatprep.subr.bf16.mxu0 0
        %1499 = vmatpush1.bf16.msra.mxu0 %v1480
        %1500 = vmatprep.subr.bf16.mxu0 0
        %1501 = vmatpush2.bf16.msra.mxu0 0
        %1502 = vmatprep.subr.bf16.mxu0 0
        %1503 = vmatpush2.bf16.msra.mxu0 0
        %1504 = vmatprep.subr.bf16.mxu0 0
        %1505 = vmatpush2.bf16.msra.mxu0 0
        %1506 = vmatprep.subr.bf16.mxu0 0
        %1507 = vmatpush2.bf16.msra.mxu0 0
        %1508 = vmatprep.subr.bf16.mxu0 0
        %1509 = vmatpush2.bf16.msra.mxu0 0
        %1510 = vmatprep.subr.bf16.mxu0 0
        %1511 = vmatpush2.bf16.msra.mxu0 0
        %1512 = vmatprep.subr.bf16.mxu0 0
        %1513 = vmatpush2.bf16.msra.mxu0 0
        %1514 = vmatprep.subr.bf16.mxu0 0
        %1515 = vmatpush2.bf16.msra.mxu0 0
        %1516 = vmatprep.mubr.bf16.mxu0 0
        %1517 = vmatmul.mubr.bf16.gmra.mxu0 %v966
        %v1518 = vpop.f32.mrf.mxu0
        %v1519 = vadd.f32 %v1407, %v1518
        %v1520 = vpop.f32.mrf.mxu0
        %v1521 = vpop.f32.mrf.mxu0
        %v1522 = vpop.f32.mrf.mxu0
        %1523 = vdwg.mxu0
        %v1528 = vunpack.c.l.b16 %v840
        %v1529 = vunpack.c.l.b16 %v841
        %v1530 = vunpack.c.l.b16 %v842
        %v1531 = vunpack.c.l.b16 %v843
        %v1532 = vpack.c.b16 %v1529, %v1528
        %v1533 = vpack.c.b16 %v1531, %v1530
        %1536 = vmatprep.subr.bf16.mxu0 0
        %1537 = vmatpush1.bf16.msra.mxu0 0
        %1538 = vmatprep.subr.bf16.mxu0 0
        %1539 = vmatpush1.bf16.msra.mxu0 0
        %1540 = vmatprep.subr.bf16.mxu0 0
        %1541 = vmatpush1.bf16.msra.mxu0 0
        %1542 = vmatprep.subr.bf16.mxu0 0
        %1543 = vmatpush1.bf16.msra.mxu0 0
        %1544 = vmatprep.subr.bf16.mxu0 0
        %1545 = vmatpush1.bf16.msra.mxu0 0
        %1546 = vmatprep.subr.bf16.mxu0 0
        %1547 = vmatpush1.bf16.msra.mxu0 0
        %1548 = vmatprep.subr.bf16.mxu0 0
        %1549 = vmatpush1.bf16.msra.mxu0 %v1533
        %1550 = vmatprep.subr.bf16.mxu0 0
        %1551 = vmatpush1.bf16.msra.mxu0 %v1532
        %1552 = vmatprep.subr.bf16.mxu0 0
        %1553 = vmatpush2.bf16.msra.mxu0 0
        %1554 = vmatprep.subr.bf16.mxu0 0
        %1555 = vmatpush2.bf16.msra.mxu0 0
        %1556 = vmatprep.subr.bf16.mxu0 0
        %1557 = vmatpush2.bf16.msra.mxu0 0
        %1558 = vmatprep.subr.bf16.mxu0 0
        %1559 = vmatpush2.bf16.msra.mxu0 0
        %1560 = vmatprep.subr.bf16.mxu0 0
        %1561 = vmatpush2.bf16.msra.mxu0 0
        %1562 = vmatprep.subr.bf16.mxu0 0
        %1563 = vmatpush2.bf16.msra.mxu0 0
        %1564 = vmatprep.subr.bf16.mxu0 0
        %1565 = vmatpush2.bf16.msra.mxu0 0
        %1566 = vmatprep.subr.bf16.mxu0 0
        %1567 = vmatpush2.bf16.msra.mxu0 0
        %1568 = vmatprep.mubr.bf16.mxu0 0
        %1569 = vmatmul.mubr.bf16.gmra.mxu0 %v966
        %v1570 = vpop.f32.mrf.mxu0
        %v1571 = vadd.f32 %v1411, %v1570
        %v1572 = vpop.f32.mrf.mxu0
        %v1573 = vpop.f32.mrf.mxu0
        %v1574 = vpop.f32.mrf.mxu0
        %1575 = vdwg.mxu0
        %v1580 = vunpack.c.l.b16 %v844
        %v1581 = vunpack.c.l.b16 %v845
        %v1582 = vunpack.c.l.b16 %v846
        %v1583 = vunpack.c.l.b16 %v847
        %v1584 = vpack.c.b16 %v1581, %v1580
        %v1585 = vpack.c.b16 %v1583, %v1582
        %1588 = vmatprep.subr.bf16.mxu0 0
        %1589 = vmatpush1.bf16.msra.mxu0 0
        %1590 = vmatprep.subr.bf16.mxu0 0
        %1591 = vmatpush1.bf16.msra.mxu0 0
        %1592 = vmatprep.subr.bf16.mxu0 0
        %1593 = vmatpush1.bf16.msra.mxu0 0
        %1594 = vmatprep.subr.bf16.mxu0 0
        %1595 = vmatpush1.bf16.msra.mxu0 0
        %1596 = vmatprep.subr.bf16.mxu0 0
        %1597 = vmatpush1.bf16.msra.mxu0 0
        %1598 = vmatprep.subr.bf16.mxu0 0
        %1599 = vmatpush1.bf16.msra.mxu0 0
        %1600 = vmatprep.subr.bf16.mxu0 0
        %1601 = vmatpush1.bf16.msra.mxu0 %v1585
        %1602 = vmatprep.subr.bf16.mxu0 0
        %1603 = vmatpush1.bf16.msra.mxu0 %v1584
        %1604 = vmatprep.subr.bf16.mxu0 0
        %1605 = vmatpush2.bf16.msra.mxu0 0
        %1606 = vmatprep.subr.bf16.mxu0 0
        %1607 = vmatpush2.bf16.msra.mxu0 0
        %1608 = vmatprep.subr.bf16.mxu0 0
        %1609 = vmatpush2.bf16.msra.mxu0 0
        %1610 = vmatprep.subr.bf16.mxu0 0
        %1611 = vmatpush2.bf16.msra.mxu0 0
        %1612 = vmatprep.subr.bf16.mxu0 0
        %1613 = vmatpush2.bf16.msra.mxu0 0
        %1614 = vmatprep.subr.bf16.mxu0 0
        %1615 = vmatpush2.bf16.msra.mxu0 0
        %1616 = vmatprep.subr.bf16.mxu0 0
        %1617 = vmatpush2.bf16.msra.mxu0 0
        %1618 = vmatprep.subr.bf16.mxu0 0
        %1619 = vmatpush2.bf16.msra.mxu0 0
        %1620 = vmatprep.mubr.bf16.mxu0 0
        %1621 = vmatmul.mubr.bf16.gmra.mxu0 %v966
        %v1622 = vpop.f32.mrf.mxu0
        %v1623 = vadd.f32 %v1415, %v1622
        %v1624 = vpop.f32.mrf.mxu0
        %v1625 = vpop.f32.mrf.mxu0
        %v1626 = vpop.f32.mrf.mxu0
        %1627 = vdwg.mxu0
        %v1628 = vpack.c.bf16 %v1003, %v1003
        %v1629 = vpack.c.bf16 %v1055, %v1055
        %v1630 = vpack.c.bf16 %v1107, %v1107
        %v1631 = vpack.c.bf16 %v1159, %v1159
        %v1632 = vpack.c.bf16 %v1235, %v1235
        %v1633 = vpack.c.bf16 %v1287, %v1287
        %v1634 = vpack.c.bf16 %v1339, %v1339
        %v1635 = vpack.c.bf16 %v1391, %v1391
        %vm1636 = vcmask 64512
        %v1638 = vsel %vm1636, %v1628, 0
        %v1641 = vsel %vm1636, %v1632, 0
        %1643 = vmatprep.subr.bf16.mxu0 0
        %1644 = vmatpush1.bf16.xpose.msra.mxu0 0
        %1645 = vmatprep.subr.bf16.mxu0 0
        %1646 = vmatpush1.bf16.xpose.msra.mxu0 0
        %1647 = vmatprep.subr.bf16.mxu0 0
        %1648 = vmatpush1.bf16.xpose.msra.mxu0 0
        %1649 = vmatprep.subr.bf16.mxu0 0
        %1650 = vmatpush1.bf16.xpose.msra.mxu0 0
        %1651 = vmatprep.subr.bf16.mxu0 0
        %1652 = vmatpush1.bf16.xpose.msra.mxu0 0
        %1653 = vmatprep.subr.bf16.mxu0 0
        %1654 = vmatpush1.bf16.xpose.msra.mxu0 0
        %1655 = vmatprep.subr.bf16.mxu0 0
        %1656 = vmatpush1.bf16.xpose.msra.mxu0 0
        %1657 = vmatprep.subr.bf16.mxu0 0
        %1658 = vmatpush1.bf16.xpose.msra.mxu0 %v1641
        %1659 = vmatprep.subr.bf16.mxu0 0
        %1660 = vmatpush2.bf16.xpose.msra.mxu0 0
        %1661 = vmatprep.subr.bf16.mxu0 0
        %1662 = vmatpush2.bf16.xpose.msra.mxu0 0
        %1663 = vmatprep.subr.bf16.mxu0 0
        %1664 = vmatpush2.bf16.xpose.msra.mxu0 0
        %1665 = vmatprep.subr.bf16.mxu0 0
        %1666 = vmatpush2.bf16.xpose.msra.mxu0 0
        %1667 = vmatprep.subr.bf16.mxu0 0
        %1668 = vmatpush2.bf16.xpose.msra.mxu0 0
        %1669 = vmatprep.subr.bf16.mxu0 0
        %1670 = vmatpush2.bf16.xpose.msra.mxu0 0
        %1671 = vmatprep.subr.bf16.mxu0 0
        %1672 = vmatpush2.bf16.xpose.msra.mxu0 0
        %1673 = vmatprep.subr.bf16.mxu0 0
        %1674 = vmatpush2.bf16.xpose.msra.mxu0 0
        %1675 = vmatprep.mubr.bf16.mxu0 0
        %1676 = vmatmul.mubr.bf16.gmra.mxu0 %v1638
        %v1677 = vpop.f32.mrf.mxu0
        %v1678 = vadd.f32 0.0, %v1677
        %v1679 = vpop.f32.mrf.mxu0
        %v1680 = vpop.f32.mrf.mxu0
        %v1681 = vpop.f32.mrf.mxu0
        %1682 = vdwg.mxu0
        %v1684 = vsel %vm1636, %v1629, 0
        %v1687 = vsel %vm1636, %v1633, 0
        %1689 = vmatprep.subr.bf16.mxu0 0
        %1690 = vmatpush1.bf16.xpose.msra.mxu0 0
        %1691 = vmatprep.subr.bf16.mxu0 0
        %1692 = vmatpush1.bf16.xpose.msra.mxu0 0
        %1693 = vmatprep.subr.bf16.mxu0 0
        %1694 = vmatpush1.bf16.xpose.msra.mxu0 0
        %1695 = vmatprep.subr.bf16.mxu0 0
        %1696 = vmatpush1.bf16.xpose.msra.mxu0 0
        %1697 = vmatprep.subr.bf16.mxu0 0
        %1698 = vmatpush1.bf16.xpose.msra.mxu0 0
        %1699 = vmatprep.subr.bf16.mxu0 0
        %1700 = vmatpush1.bf16.xpose.msra.mxu0 0
        %1701 = vmatprep.subr.bf16.mxu0 0
        %1702 = vmatpush1.bf16.xpose.msra.mxu0 0
        %1703 = vmatprep.subr.bf16.mxu0 0
        %1704 = vmatpush1.bf16.xpose.msra.mxu0 %v1687
        %1705 = vmatprep.subr.bf16.mxu0 0
        %1706 = vmatpush2.bf16.xpose.msra.mxu0 0
        %1707 = vmatprep.subr.bf16.mxu0 0
        %1708 = vmatpush2.bf16.xpose.msra.mxu0 0
        %1709 = vmatprep.subr.bf16.mxu0 0
        %1710 = vmatpush2.bf16.xpose.msra.mxu0 0
        %1711 = vmatprep.subr.bf16.mxu0 0
        %1712 = vmatpush2.bf16.xpose.msra.mxu0 0
        %1713 = vmatprep.subr.bf16.mxu0 0
        %1714 = vmatpush2.bf16.xpose.msra.mxu0 0
        %1715 = vmatprep.subr.bf16.mxu0 0
        %1716 = vmatpush2.bf16.xpose.msra.mxu0 0
        %1717 = vmatprep.subr.bf16.mxu0 0
        %1718 = vmatpush2.bf16.xpose.msra.mxu0 0
        %1719 = vmatprep.subr.bf16.mxu0 0
        %1720 = vmatpush2.bf16.xpose.msra.mxu0 0
        %1721 = vmatprep.mubr.bf16.mxu0 0
        %1722 = vmatmul.mubr.bf16.gmra.mxu0 %v1684
        %v1723 = vpop.f32.mrf.mxu0
        %v1724 = vadd.f32 0.0, %v1723
        %v1725 = vpop.f32.mrf.mxu0
        %v1726 = vpop.f32.mrf.mxu0
        %v1727 = vpop.f32.mrf.mxu0
        %1728 = vdwg.mxu0
        %v1730 = vsel %vm1636, %v1630, 0
        %v1733 = vsel %vm1636, %v1634, 0
        %1735 = vmatprep.subr.bf16.mxu0 0
        %1736 = vmatpush1.bf16.xpose.msra.mxu0 0
        %1737 = vmatprep.subr.bf16.mxu0 0
        %1738 = vmatpush1.bf16.xpose.msra.mxu0 0
        %1739 = vmatprep.subr.bf16.mxu0 0
        %1740 = vmatpush1.bf16.xpose.msra.mxu0 0
        %1741 = vmatprep.subr.bf16.mxu0 0
        %1742 = vmatpush1.bf16.xpose.msra.mxu0 0
        %1743 = vmatprep.subr.bf16.mxu0 0
        %1744 = vmatpush1.bf16.xpose.msra.mxu0 0
        %1745 = vmatprep.subr.bf16.mxu0 0
        %1746 = vmatpush1.bf16.xpose.msra.mxu0 0
        %1747 = vmatprep.subr.bf16.mxu0 0
        %1748 = vmatpush1.bf16.xpose.msra.mxu0 0
        %1749 = vmatprep.subr.bf16.mxu0 0
        %1750 = vmatpush1.bf16.xpose.msra.mxu0 %v1733
        %1751 = vmatprep.subr.bf16.mxu0 0
        %1752 = vmatpush2.bf16.xpose.msra.mxu0 0
        %1753 = vmatprep.subr.bf16.mxu0 0
        %1754 = vmatpush2.bf16.xpose.msra.mxu0 0
        %1755 = vmatprep.subr.bf16.mxu0 0
        %1756 = vmatpush2.bf16.xpose.msra.mxu0 0
        %1757 = vmatprep.subr.bf16.mxu0 0
        %1758 = vmatpush2.bf16.xpose.msra.mxu0 0
        %1759 = vmatprep.subr.bf16.mxu0 0
        %1760 = vmatpush2.bf16.xpose.msra.mxu0 0
        %1761 = vmatprep.subr.bf16.mxu0 0
        %1762 = vmatpush2.bf16.xpose.msra.mxu0 0
        %1763 = vmatprep.subr.bf16.mxu0 0
        %1764 = vmatpush2.bf16.xpose.msra.mxu0 0
        %1765 = vmatprep.subr.bf16.mxu0 0
        %1766 = vmatpush2.bf16.xpose.msra.mxu0 0
        %1767 = vmatprep.mubr.bf16.mxu0 0
        %1768 = vmatmul.mubr.bf16.gmra.mxu0 %v1730
        %v1769 = vpop.f32.mrf.mxu0
        %v1770 = vadd.f32 0.0, %v1769
        %v1771 = vpop.f32.mrf.mxu0
        %v1772 = vpop.f32.mrf.mxu0
        %v1773 = vpop.f32.mrf.mxu0
        %1774 = vdwg.mxu0
        %v1776 = vsel %vm1636, %v1631, 0
        %v1779 = vsel %vm1636, %v1635, 0
        %1781 = vmatprep.subr.bf16.mxu0 0
        %1782 = vmatpush1.bf16.xpose.msra.mxu0 0
        %1783 = vmatprep.subr.bf16.mxu0 0
        %1784 = vmatpush1.bf16.xpose.msra.mxu0 0
        %1785 = vmatprep.subr.bf16.mxu0 0
        %1786 = vmatpush1.bf16.xpose.msra.mxu0 0
        %1787 = vmatprep.subr.bf16.mxu0 0
        %1788 = vmatpush1.bf16.xpose.msra.mxu0 0
        %1789 = vmatprep.subr.bf16.mxu0 0
        %1790 = vmatpush1.bf16.xpose.msra.mxu0 0
        %1791 = vmatprep.subr.bf16.mxu0 0
        %1792 = vmatpush1.bf16.xpose.msra.mxu0 0
        %1793 = vmatprep.subr.bf16.mxu0 0
        %1794 = vmatpush1.bf16.xpose.msra.mxu0 0
        %1795 = vmatprep.subr.bf16.mxu0 0
        %1796 = vmatpush1.bf16.xpose.msra.mxu0 %v1779
        %1797 = vmatprep.subr.bf16.mxu0 0
        %1798 = vmatpush2.bf16.xpose.msra.mxu0 0
        %1799 = vmatprep.subr.bf16.mxu0 0
        %1800 = vmatpush2.bf16.xpose.msra.mxu0 0
        %1801 = vmatprep.subr.bf16.mxu0 0
        %1802 = vmatpush2.bf16.xpose.msra.mxu0 0
        %1803 = vmatprep.subr.bf16.mxu0 0
        %1804 = vmatpush2.bf16.xpose.msra.mxu0 0
        %1805 = vmatprep.subr.bf16.mxu0 0
        %1806 = vmatpush2.bf16.xpose.msra.mxu0 0
        %1807 = vmatprep.subr.bf16.mxu0 0
        %1808 = vmatpush2.bf16.xpose.msra.mxu0 0
        %1809 = vmatprep.subr.bf16.mxu0 0
        %1810 = vmatpush2.bf16.xpose.msra.mxu0 0
        %1811 = vmatprep.subr.bf16.mxu0 0
        %1812 = vmatpush2.bf16.xpose.msra.mxu0 0
        %1813 = vmatprep.mubr.bf16.mxu0 0
        %1814 = vmatmul.mubr.bf16.gmra.mxu0 %v1776
        %v1815 = vpop.f32.mrf.mxu0
        %v1816 = vadd.f32 0.0, %v1815
        %v1817 = vpop.f32.mrf.mxu0
        %v1818 = vpop.f32.mrf.mxu0
        %v1819 = vpop.f32.mrf.mxu0
        %1820 = vdwg.mxu0
        %v1821 = vmul.f32 %v1678, 0.35355338
        %v1822 = vmul.f32 %v1724, 0.35355338
        %v1823 = vmul.f32 %v1770, 0.35355338
        %v1824 = vmul.f32 %v1816, 0.35355338
        %v1825 = vsel %vm883, 1, 0
        %vm1826 = vcmp.eq.s32.totalorder %v1825, 1
        %v1827 = vsel %vm1826, %v1821, -1e+30
        %v1828 = vsel %vm1826, %v1822, -1e+30
        %v1829 = vsel %vm1826, %v1823, -1e+30
        %v1830 = vsel %vm1826, %v1824, -1e+30
        %v1831 = vsel %vm1636, %v1827, -inf
        %1832 = vmax.xlane.f32.xlu0 %v1831
        %v1833 = vpop.xlane.xlu0 %1832
        %v1834 = vsel %vm1636, %v1828, -inf
        %1835 = vmax.xlane.f32.xlu0 %v1834
        %v1836 = vpop.xlane.xlu0 %1835
        %v1837 = vsel %vm1636, %v1829, -inf
        %1838 = vmax.xlane.f32.xlu0 %v1837
        %v1839 = vpop.xlane.xlu0 %1838
        %v1840 = vsel %vm1636, %v1830, -inf
        %1841 = vmax.xlane.f32.xlu0 %v1840
        %v1842 = vpop.xlane.xlu0 %1841
        %v1843 = vsub.f32 %v1827, %v1833
        %v1844 = vsub.f32 %v1828, %v1836
        %v1845 = vsub.f32 %v1829, %v1839
        %v1846 = vsub.f32 %v1830, %v1842
        %v1847 = vmul.f32 %v1843, 1.442695
        %v1848 = vpow.pop %v1847
        %v1849 = vmul.f32 %v1844, 1.442695
        %v1850 = vpow.pop %v1849
        %v1851 = vmul.f32 %v1845, 1.442695
        %v1852 = vpow.pop %v1851
        %v1853 = vmul.f32 %v1846, 1.442695
        %v1854 = vpow.pop %v1853
        %v1855 = vsel %vm1636, %v1848, 0.0
        %1856 = vadd.xlane.f32.xlu0 %v1855
        %v1857 = vpop.xlane.xlu0 %1856
        %v1858 = vsel %vm1636, %v1850, 0.0
        %1859 = vadd.xlane.f32.xlu0 %v1858
        %v1860 = vpop.xlane.xlu0 %1859
        %v1861 = vsel %vm1636, %v1852, 0.0
        %1862 = vadd.xlane.f32.xlu0 %v1861
        %v1863 = vpop.xlane.xlu0 %1862
        %v1864 = vsel %vm1636, %v1854, 0.0
        %1865 = vadd.xlane.f32.xlu0 %v1864
        %v1866 = vpop.xlane.xlu0 %1865
        %v1867 = vrcp.pop %v1857
        %v1868 = vrcp.pop %v1860
        %v1869 = vrcp.pop %v1863
        %v1870 = vrcp.pop %v1866
        %v1871 = vmul.f32 %v1848, %v1867
        %v1872 = vmul.f32 %v1850, %v1868
        %v1873 = vmul.f32 %v1852, %v1869
        %v1874 = vmul.f32 %v1854, %v1870
        %v1875 = vpack.c.bf16 %v1871, %v1871
        %v1876 = vpack.c.bf16 %v1872, %v1872
        %v1877 = vpack.c.bf16 %v1873, %v1873
        %v1878 = vpack.c.bf16 %v1874, %v1874
        %v1879 = vpack.c.bf16 %v1467, %v1467
        %v1880 = vpack.c.bf16 %v1519, %v1519
        %v1881 = vpack.c.bf16 %v1571, %v1571
        %v1882 = vpack.c.bf16 %v1623, %v1623
        %v1884 = vsel %vm1636, %v1875, 0
        %vm1886 = vcmask 1043456
        %v1888 = vsel %vm1886, %v1879, 0
        %1890 = vmatprep.subr.bf16.mxu0 0
        %1891 = vmatpush1.bf16.msra.mxu0 0
        %1892 = vmatprep.subr.bf16.mxu0 0
        %1893 = vmatpush1.bf16.msra.mxu0 0
        %1894 = vmatprep.subr.bf16.mxu0 0
        %1895 = vmatpush1.bf16.msra.mxu0 0
        %1896 = vmatprep.subr.bf16.mxu0 0
        %1897 = vmatpush1.bf16.msra.mxu0 0
        %1898 = vmatprep.subr.bf16.mxu0 0
        %1899 = vmatpush1.bf16.msra.mxu0 0
        %1900 = vmatprep.subr.bf16.mxu0 0
        %1901 = vmatpush1.bf16.msra.mxu0 0
        %1902 = vmatprep.subr.bf16.mxu0 0
        %1903 = vmatpush1.bf16.msra.mxu0 0
        %1904 = vmatprep.subr.bf16.mxu0 0
        %1905 = vmatpush1.bf16.msra.mxu0 %v1888
        %1906 = vmatprep.subr.bf16.mxu0 0
        %1907 = vmatpush2.bf16.msra.mxu0 0
        %1908 = vmatprep.subr.bf16.mxu0 0
        %1909 = vmatpush2.bf16.msra.mxu0 0
        %1910 = vmatprep.subr.bf16.mxu0 0
        %1911 = vmatpush2.bf16.msra.mxu0 0
        %1912 = vmatprep.subr.bf16.mxu0 0
        %1913 = vmatpush2.bf16.msra.mxu0 0
        %1914 = vmatprep.subr.bf16.mxu0 0
        %1915 = vmatpush2.bf16.msra.mxu0 0
        %1916 = vmatprep.subr.bf16.mxu0 0
        %1917 = vmatpush2.bf16.msra.mxu0 0
        %1918 = vmatprep.subr.bf16.mxu0 0
        %1919 = vmatpush2.bf16.msra.mxu0 0
        %1920 = vmatprep.subr.bf16.mxu0 0
        %1921 = vmatpush2.bf16.msra.mxu0 0
        %1922 = vmatprep.mubr.bf16.mxu0 0
        %1923 = vmatmul.mubr.bf16.gmra.mxu0 %v1884
        %v1924 = vpop.f32.mrf.mxu0
        %v1925 = vadd.f32 0.0, %v1924
        %v1926 = vpop.f32.mrf.mxu0
        %v1927 = vpop.f32.mrf.mxu0
        %v1928 = vpop.f32.mrf.mxu0
        %1929 = vdwg.mxu0
        %v1931 = vsel %vm1636, %v1876, 0
        %v1934 = vsel %vm1886, %v1880, 0
        %1936 = vmatprep.subr.bf16.mxu0 0
        %1937 = vmatpush1.bf16.msra.mxu0 0
        %1938 = vmatprep.subr.bf16.mxu0 0
        %1939 = vmatpush1.bf16.msra.mxu0 0
        %1940 = vmatprep.subr.bf16.mxu0 0
        %1941 = vmatpush1.bf16.msra.mxu0 0
        %1942 = vmatprep.subr.bf16.mxu0 0
        %1943 = vmatpush1.bf16.msra.mxu0 0
        %1944 = vmatprep.subr.bf16.mxu0 0
        %1945 = vmatpush1.bf16.msra.mxu0 0
        %1946 = vmatprep.subr.bf16.mxu0 0
        %1947 = vmatpush1.bf16.msra.mxu0 0
        %1948 = vmatprep.subr.bf16.mxu0 0
        %1949 = vmatpush1.bf16.msra.mxu0 0
        %1950 = vmatprep.subr.bf16.mxu0 0
        %1951 = vmatpush1.bf16.msra.mxu0 %v1934
        %1952 = vmatprep.subr.bf16.mxu0 0
        %1953 = vmatpush2.bf16.msra.mxu0 0
        %1954 = vmatprep.subr.bf16.mxu0 0
        %1955 = vmatpush2.bf16.msra.mxu0 0
        %1956 = vmatprep.subr.bf16.mxu0 0
        %1957 = vmatpush2.bf16.msra.mxu0 0
        %1958 = vmatprep.subr.bf16.mxu0 0
        %1959 = vmatpush2.bf16.msra.mxu0 0
        %1960 = vmatprep.subr.bf16.mxu0 0
        %1961 = vmatpush2.bf16.msra.mxu0 0
        %1962 = vmatprep.subr.bf16.mxu0 0
        %1963 = vmatpush2.bf16.msra.mxu0 0
        %1964 = vmatprep.subr.bf16.mxu0 0
        %1965 = vmatpush2.bf16.msra.mxu0 0
        %1966 = vmatprep.subr.bf16.mxu0 0
        %1967 = vmatpush2.bf16.msra.mxu0 0
        %1968 = vmatprep.mubr.bf16.mxu0 0
        %1969 = vmatmul.mubr.bf16.gmra.mxu0 %v1931
        %v1970 = vpop.f32.mrf.mxu0
        %v1971 = vadd.f32 0.0, %v1970
        %v1972 = vpop.f32.mrf.mxu0
        %v1973 = vpop.f32.mrf.mxu0
        %v1974 = vpop.f32.mrf.mxu0
        %1975 = vdwg.mxu0
        %v1977 = vsel %vm1636, %v1877, 0
        %v1980 = vsel %vm1886, %v1881, 0
        %1982 = vmatprep.subr.bf16.mxu0 0
        %1983 = vmatpush1.bf16.msra.mxu0 0
        %1984 = vmatprep.subr.bf16.mxu0 0
        %1985 = vmatpush1.bf16.msra.mxu0 0
        %1986 = vmatprep.subr.bf16.mxu0 0
        %1987 = vmatpush1.bf16.msra.mxu0 0
        %1988 = vmatprep.subr.bf16.mxu0 0
        %1989 = vmatpush1.bf16.msra.mxu0 0
        %1990 = vmatprep.subr.bf16.mxu0 0
        %1991 = vmatpush1.bf16.msra.mxu0 0
        %1992 = vmatprep.subr.bf16.mxu0 0
        %1993 = vmatpush1.bf16.msra.mxu0 0
        %1994 = vmatprep.subr.bf16.mxu0 0
        %1995 = vmatpush1.bf16.msra.mxu0 0
        %1996 = vmatprep.subr.bf16.mxu0 0
        %1997 = vmatpush1.bf16.msra.mxu0 %v1980
        %1998 = vmatprep.subr.bf16.mxu0 0
        %1999 = vmatpush2.bf16.msra.mxu0 0
        %2000 = vmatprep.subr.bf16.mxu0 0
        %2001 = vmatpush2.bf16.msra.mxu0 0
        %2002 = vmatprep.subr.bf16.mxu0 0
        %2003 = vmatpush2.bf16.msra.mxu0 0
        %2004 = vmatprep.subr.bf16.mxu0 0
        %2005 = vmatpush2.bf16.msra.mxu0 0
        %2006 = vmatprep.subr.bf16.mxu0 0
        %2007 = vmatpush2.bf16.msra.mxu0 0
        %2008 = vmatprep.subr.bf16.mxu0 0
        %2009 = vmatpush2.bf16.msra.mxu0 0
        %2010 = vmatprep.subr.bf16.mxu0 0
        %2011 = vmatpush2.bf16.msra.mxu0 0
        %2012 = vmatprep.subr.bf16.mxu0 0
        %2013 = vmatpush2.bf16.msra.mxu0 0
        %2014 = vmatprep.mubr.bf16.mxu0 0
        %2015 = vmatmul.mubr.bf16.gmra.mxu0 %v1977
        %v2016 = vpop.f32.mrf.mxu0
        %v2017 = vadd.f32 0.0, %v2016
        %v2018 = vpop.f32.mrf.mxu0
        %v2019 = vpop.f32.mrf.mxu0
        %v2020 = vpop.f32.mrf.mxu0
        %2021 = vdwg.mxu0
        %v2023 = vsel %vm1636, %v1878, 0
        %v2026 = vsel %vm1886, %v1882, 0
        %2028 = vmatprep.subr.bf16.mxu0 0
        %2029 = vmatpush1.bf16.msra.mxu0 0
        %2030 = vmatprep.subr.bf16.mxu0 0
        %2031 = vmatpush1.bf16.msra.mxu0 0
        %2032 = vmatprep.subr.bf16.mxu0 0
        %2033 = vmatpush1.bf16.msra.mxu0 0
        %2034 = vmatprep.subr.bf16.mxu0 0
        %2035 = vmatpush1.bf16.msra.mxu0 0
        %2036 = vmatprep.subr.bf16.mxu0 0
        %2037 = vmatpush1.bf16.msra.mxu0 0
        %2038 = vmatprep.subr.bf16.mxu0 0
        %2039 = vmatpush1.bf16.msra.mxu0 0
        %2040 = vmatprep.subr.bf16.mxu0 0
        %2041 = vmatpush1.bf16.msra.mxu0 0
        %2042 = vmatprep.subr.bf16.mxu0 0
        %2043 = vmatpush1.bf16.msra.mxu0 %v2026
        %2044 = vmatprep.subr.bf16.mxu0 0
        %2045 = vmatpush2.bf16.msra.mxu0 0
        %2046 = vmatprep.subr.bf16.mxu0 0
        %2047 = vmatpush2.bf16.msra.mxu0 0
        %2048 = vmatprep.subr.bf16.mxu0 0
        %2049 = vmatpush2.bf16.msra.mxu0 0
        %2050 = vmatprep.subr.bf16.mxu0 0
        %2051 = vmatpush2.bf16.msra.mxu0 0
        %2052 = vmatprep.subr.bf16.mxu0 0
        %2053 = vmatpush2.bf16.msra.mxu0 0
        %2054 = vmatprep.subr.bf16.mxu0 0
        %2055 = vmatpush2.bf16.msra.mxu0 0
        %2056 = vmatprep.subr.bf16.mxu0 0
        %2057 = vmatpush2.bf16.msra.mxu0 0
        %2058 = vmatprep.subr.bf16.mxu0 0
        %2059 = vmatpush2.bf16.msra.mxu0 0
        %2060 = vmatprep.mubr.bf16.mxu0 0
        %2061 = vmatmul.mubr.bf16.gmra.mxu0 %v2023
        %v2062 = vpop.f32.mrf.mxu0
        %v2063 = vadd.f32 0.0, %v2062
        %v2064 = vpop.f32.mrf.mxu0
        %v2065 = vpop.f32.mrf.mxu0
        %v2066 = vpop.f32.mrf.mxu0
        %2067 = vdwg.mxu0
        %v2068 = vpack.c.bf16 %v1925, %v1925
        %v2069 = vpack.c.bf16 %v1971, %v1971
        %v2070 = vpack.c.bf16 %v2017, %v2017
        %v2071 = vpack.c.bf16 %v2063, %v2063
        %v2073 = vsel %vm1636, %v2068, 0
        %v2076 = vsel %vm1886, %v848, 0
        %2078 = vmatprep.subr.bf16.mxu0 0
        %2079 = vmatpush1.bf16.msra.mxu0 0
        %2080 = vmatprep.subr.bf16.mxu0 0
        %2081 = vmatpush1.bf16.msra.mxu0 0
        %2082 = vmatprep.subr.bf16.mxu0 0
        %2083 = vmatpush1.bf16.msra.mxu0 0
        %2084 = vmatprep.subr.bf16.mxu0 0
        %2085 = vmatpush1.bf16.msra.mxu0 0
        %2086 = vmatprep.subr.bf16.mxu0 0
        %2087 = vmatpush1.bf16.msra.mxu0 0
        %2088 = vmatprep.subr.bf16.mxu0 0
        %2089 = vmatpush1.bf16.msra.mxu0 0
        %2090 = vmatprep.subr.bf16.mxu0 0
        %2091 = vmatpush1.bf16.msra.mxu0 0
        %2092 = vmatprep.subr.bf16.mxu0 0
        %2093 = vmatpush1.bf16.msra.mxu0 %v2076
        %2094 = vmatprep.subr.bf16.mxu0 0
        %2095 = vmatpush2.bf16.msra.mxu0 0
        %2096 = vmatprep.subr.bf16.mxu0 0
        %2097 = vmatpush2.bf16.msra.mxu0 0
        %2098 = vmatprep.subr.bf16.mxu0 0
        %2099 = vmatpush2.bf16.msra.mxu0 0
        %2100 = vmatprep.subr.bf16.mxu0 0
        %2101 = vmatpush2.bf16.msra.mxu0 0
        %2102 = vmatprep.subr.bf16.mxu0 0
        %2103 = vmatpush2.bf16.msra.mxu0 0
        %2104 = vmatprep.subr.bf16.mxu0 0
        %2105 = vmatpush2.bf16.msra.mxu0 0
        %2106 = vmatprep.subr.bf16.mxu0 0
        %2107 = vmatpush2.bf16.msra.mxu0 0
        %2108 = vmatprep.subr.bf16.mxu0 0
        %2109 = vmatpush2.bf16.msra.mxu0 0
        %2110 = vmatprep.mubr.bf16.mxu0 0
        %2111 = vmatmul.mubr.bf16.gmra.mxu0 %v2073
        %v2112 = vpop.f32.mrf.mxu0
        %v2113 = vadd.f32 0.0, %v2112
        %v2114 = vpop.f32.mrf.mxu0
        %v2115 = vpop.f32.mrf.mxu0
        %v2116 = vpop.f32.mrf.mxu0
        %2117 = vdwg.mxu0
        %v2119 = vsel %vm1636, %v2069, 0
        %v2122 = vsel %vm1886, %v849, 0
        %2124 = vmatprep.subr.bf16.mxu0 0
        %2125 = vmatpush1.bf16.msra.mxu0 0
        %2126 = vmatprep.subr.bf16.mxu0 0
        %2127 = vmatpush1.bf16.msra.mxu0 0
        %2128 = vmatprep.subr.bf16.mxu0 0
        %2129 = vmatpush1.bf16.msra.mxu0 0
        %2130 = vmatprep.subr.bf16.mxu0 0
        %2131 = vmatpush1.bf16.msra.mxu0 0
        %2132 = vmatprep.subr.bf16.mxu0 0
        %2133 = vmatpush1.bf16.msra.mxu0 0
        %2134 = vmatprep.subr.bf16.mxu0 0
        %2135 = vmatpush1.bf16.msra.mxu0 0
        %2136 = vmatprep.subr.bf16.mxu0 0
        %2137 = vmatpush1.bf16.msra.mxu0 0
        %2138 = vmatprep.subr.bf16.mxu0 0
        %2139 = vmatpush1.bf16.msra.mxu0 %v2122
        %2140 = vmatprep.subr.bf16.mxu0 0
        %2141 = vmatpush2.bf16.msra.mxu0 0
        %2142 = vmatprep.subr.bf16.mxu0 0
        %2143 = vmatpush2.bf16.msra.mxu0 0
        %2144 = vmatprep.subr.bf16.mxu0 0
        %2145 = vmatpush2.bf16.msra.mxu0 0
        %2146 = vmatprep.subr.bf16.mxu0 0
        %2147 = vmatpush2.bf16.msra.mxu0 0
        %2148 = vmatprep.subr.bf16.mxu0 0
        %2149 = vmatpush2.bf16.msra.mxu0 0
        %2150 = vmatprep.subr.bf16.mxu0 0
        %2151 = vmatpush2.bf16.msra.mxu0 0
        %2152 = vmatprep.subr.bf16.mxu0 0
        %2153 = vmatpush2.bf16.msra.mxu0 0
        %2154 = vmatprep.subr.bf16.mxu0 0
        %2155 = vmatpush2.bf16.msra.mxu0 0
        %2156 = vmatprep.mubr.bf16.mxu0 0
        %2157 = vmatmul.mubr.bf16.gmra.mxu0 %v2119
        %v2158 = vpop.f32.mrf.mxu0
        %v2159 = vadd.f32 0.0, %v2158
        %v2160 = vpop.f32.mrf.mxu0
        %v2161 = vpop.f32.mrf.mxu0
        %v2162 = vpop.f32.mrf.mxu0
        %2163 = vdwg.mxu0
        %v2165 = vsel %vm1636, %v2070, 0
        %v2168 = vsel %vm1886, %v850, 0
        %2170 = vmatprep.subr.bf16.mxu0 0
        %2171 = vmatpush1.bf16.msra.mxu0 0
        %2172 = vmatprep.subr.bf16.mxu0 0
        %2173 = vmatpush1.bf16.msra.mxu0 0
        %2174 = vmatprep.subr.bf16.mxu0 0
        %2175 = vmatpush1.bf16.msra.mxu0 0
        %2176 = vmatprep.subr.bf16.mxu0 0
        %2177 = vmatpush1.bf16.msra.mxu0 0
        %2178 = vmatprep.subr.bf16.mxu0 0
        %2179 = vmatpush1.bf16.msra.mxu0 0
        %2180 = vmatprep.subr.bf16.mxu0 0
        %2181 = vmatpush1.bf16.msra.mxu0 0
        %2182 = vmatprep.subr.bf16.mxu0 0
        %2183 = vmatpush1.bf16.msra.mxu0 0
        %2184 = vmatprep.subr.bf16.mxu0 0
        %2185 = vmatpush1.bf16.msra.mxu0 %v2168
        %2186 = vmatprep.subr.bf16.mxu0 0
        %2187 = vmatpush2.bf16.msra.mxu0 0
        %2188 = vmatprep.subr.bf16.mxu0 0
        %2189 = vmatpush2.bf16.msra.mxu0 0
        %2190 = vmatprep.subr.bf16.mxu0 0
        %2191 = vmatpush2.bf16.msra.mxu0 0
        %2192 = vmatprep.subr.bf16.mxu0 0
        %2193 = vmatpush2.bf16.msra.mxu0 0
        %2194 = vmatprep.subr.bf16.mxu0 0
        %2195 = vmatpush2.bf16.msra.mxu0 0
        %2196 = vmatprep.subr.bf16.mxu0 0
        %2197 = vmatpush2.bf16.msra.mxu0 0
        %2198 = vmatprep.subr.bf16.mxu0 0
        %2199 = vmatpush2.bf16.msra.mxu0 0
        %2200 = vmatprep.subr.bf16.mxu0 0
        %2201 = vmatpush2.bf16.msra.mxu0 0
        %2202 = vmatprep.mubr.bf16.mxu0 0
        %2203 = vmatmul.mubr.bf16.gmra.mxu0 %v2165
        %v2204 = vpop.f32.mrf.mxu0
        %v2205 = vadd.f32 0.0, %v2204
        %v2206 = vpop.f32.mrf.mxu0
        %v2207 = vpop.f32.mrf.mxu0
        %v2208 = vpop.f32.mrf.mxu0
        %2209 = vdwg.mxu0
        %v2211 = vsel %vm1636, %v2071, 0
        %v2214 = vsel %vm1886, %v851, 0
        %2216 = vmatprep.subr.bf16.mxu0 0
        %2217 = vmatpush1.bf16.msra.mxu0 0
        %2218 = vmatprep.subr.bf16.mxu0 0
        %2219 = vmatpush1.bf16.msra.mxu0 0
        %2220 = vmatprep.subr.bf16.mxu0 0
        %2221 = vmatpush1.bf16.msra.mxu0 0
        %2222 = vmatprep.subr.bf16.mxu0 0
        %2223 = vmatpush1.bf16.msra.mxu0 0
        %2224 = vmatprep.subr.bf16.mxu0 0
        %2225 = vmatpush1.bf16.msra.mxu0 0
        %2226 = vmatprep.subr.bf16.mxu0 0
        %2227 = vmatpush1.bf16.msra.mxu0 0
        %2228 = vmatprep.subr.bf16.mxu0 0
        %2229 = vmatpush1.bf16.msra.mxu0 0
        %2230 = vmatprep.subr.bf16.mxu0 0
        %2231 = vmatpush1.bf16.msra.mxu0 %v2214
        %2232 = vmatprep.subr.bf16.mxu0 0
        %2233 = vmatpush2.bf16.msra.mxu0 0
        %2234 = vmatprep.subr.bf16.mxu0 0
        %2235 = vmatpush2.bf16.msra.mxu0 0
        %2236 = vmatprep.subr.bf16.mxu0 0
        %2237 = vmatpush2.bf16.msra.mxu0 0
        %2238 = vmatprep.subr.bf16.mxu0 0
        %2239 = vmatpush2.bf16.msra.mxu0 0
        %2240 = vmatprep.subr.bf16.mxu0 0
        %2241 = vmatpush2.bf16.msra.mxu0 0
        %2242 = vmatprep.subr.bf16.mxu0 0
        %2243 = vmatpush2.bf16.msra.mxu0 0
        %2244 = vmatprep.subr.bf16.mxu0 0
        %2245 = vmatpush2.bf16.msra.mxu0 0
        %2246 = vmatprep.subr.bf16.mxu0 0
        %2247 = vmatpush2.bf16.msra.mxu0 0
        %2248 = vmatprep.mubr.bf16.mxu0 0
        %2249 = vmatmul.mubr.bf16.gmra.mxu0 %v2211
        %v2250 = vpop.f32.mrf.mxu0
        %v2251 = vadd.f32 0.0, %v2250
        %v2252 = vpop.f32.mrf.mxu0
        %v2253 = vpop.f32.mrf.mxu0
        %v2254 = vpop.f32.mrf.mxu0
        %2255 = vdwg.mxu0
        %v2256 = vsel %vm884, %v2113, 0.0
        %v2257 = vsel %vm884, %v2159, 0.0
        %v2258 = vadd.f32 %v2256, %v2257
        %v2259 = vsel %vm884, %v2205, 0.0
        %v2260 = vadd.f32 %v2258, %v2259
        %v2261 = vsel %vm884, %v2251, 0.0
        %v2262 = vadd.f32 %v2260, %v2261
        %v2264 = vlaneseq
        %v2265 = vshrl.u32 %v2264, 7
        %v2266 = vsub.s32 0, %v2265
        %v2267 = vrot.slane %v864, %v2266
        %v2269 = vadd.f32 %v2262, %v2267
        %v2271 = vrot.slane %v928, 4
        %v2273 = vsel %vm884, %v2271, 0
        %2275 = vmatprep.subr.bf16.mxu0 0
        %2276 = vmatpush1.bf16.msra.mxu0 0
        %2277 = vmatprep.subr.bf16.mxu0 0
        %2278 = vmatpush1.bf16.msra.mxu0 0
        %2279 = vmatprep.subr.bf16.mxu0 0
        %2280 = vmatpush1.bf16.msra.mxu0 0
        %2281 = vmatprep.subr.bf16.mxu0 0
        %2282 = vmatpush1.bf16.msra.mxu0 0
        %2283 = vmatprep.subr.bf16.mxu0 0
        %2284 = vmatpush1.bf16.msra.mxu0 0
        %2285 = vmatprep.subr.bf16.mxu0 0
        %2286 = vmatpush1.bf16.msra.mxu0 0
        %2287 = vmatprep.subr.bf16.mxu0 0
        %2288 = vmatpush1.bf16.msra.mxu0 %v962
        %2289 = vmatprep.subr.bf16.mxu0 0
        %2290 = vmatpush1.bf16.msra.mxu0 %v961
        %2291 = vmatprep.subr.bf16.mxu0 0
        %2292 = vmatpush2.bf16.msra.mxu0 0
        %2293 = vmatprep.subr.bf16.mxu0 0
        %2294 = vmatpush2.bf16.msra.mxu0 0
        %2295 = vmatprep.subr.bf16.mxu0 0
        %2296 = vmatpush2.bf16.msra.mxu0 0
        %2297 = vmatprep.subr.bf16.mxu0 0
        %2298 = vmatpush2.bf16.msra.mxu0 0
        %2299 = vmatprep.subr.bf16.mxu0 0
        %2300 = vmatpush2.bf16.msra.mxu0 0
        %2301 = vmatprep.subr.bf16.mxu0 0
        %2302 = vmatpush2.bf16.msra.mxu0 0
        %2303 = vmatprep.subr.bf16.mxu0 0
        %2304 = vmatpush2.bf16.msra.mxu0 0
        %2305 = vmatprep.subr.bf16.mxu0 0
        %2306 = vmatpush2.bf16.msra.mxu0 0
        %2307 = vmatprep.mubr.bf16.mxu0 0
        %2308 = vmatmul.mubr.bf16.gmra.mxu0 %v2273
        %v2309 = vpop.f32.mrf.mxu0
        %v2310 = vadd.f32 %v936, %v2309
        %v2311 = vpop.f32.mrf.mxu0
        %v2312 = vpop.f32.mrf.mxu0
        %v2313 = vpop.f32.mrf.mxu0
        %2314 = vdwg.mxu0
        %2315 = vmatprep.subr.bf16.mxu0 0
        %2316 = vmatpush1.bf16.msra.mxu0 0
        %2317 = vmatprep.subr.bf16.mxu0 0
        %2318 = vmatpush1.bf16.msra.mxu0 0
        %2319 = vmatprep.subr.bf16.mxu0 0
        %2320 = vmatpush1.bf16.msra.mxu0 0
        %2321 = vmatprep.subr.bf16.mxu0 0
        %2322 = vmatpush1.bf16.msra.mxu0 0
        %2323 = vmatprep.subr.bf16.mxu0 0
        %2324 = vmatpush1.bf16.msra.mxu0 0
        %2325 = vmatprep.subr.bf16.mxu0 0
        %2326 = vmatpush1.bf16.msra.mxu0 0
        %2327 = vmatprep.subr.bf16.mxu0 0
        %2328 = vmatpush1.bf16.msra.mxu0 %v1017
        %2329 = vmatprep.subr.bf16.mxu0 0
        %2330 = vmatpush1.bf16.msra.mxu0 %v1016
        %2331 = vmatprep.subr.bf16.mxu0 0
        %2332 = vmatpush2.bf16.msra.mxu0 0
        %2333 = vmatprep.subr.bf16.mxu0 0
        %2334 = vmatpush2.bf16.msra.mxu0 0
        %2335 = vmatprep.subr.bf16.mxu0 0
        %2336 = vmatpush2.bf16.msra.mxu0 0
        %2337 = vmatprep.subr.bf16.mxu0 0
        %2338 = vmatpush2.bf16.msra.mxu0 0
        %2339 = vmatprep.subr.bf16.mxu0 0
        %2340 = vmatpush2.bf16.msra.mxu0 0
        %2341 = vmatprep.subr.bf16.mxu0 0
        %2342 = vmatpush2.bf16.msra.mxu0 0
        %2343 = vmatprep.subr.bf16.mxu0 0
        %2344 = vmatpush2.bf16.msra.mxu0 0
        %2345 = vmatprep.subr.bf16.mxu0 0
        %2346 = vmatpush2.bf16.msra.mxu0 0
        %2347 = vmatprep.mubr.bf16.mxu0 0
        %2348 = vmatmul.mubr.bf16.gmra.mxu0 %v2273
        %v2349 = vpop.f32.mrf.mxu0
        %v2350 = vadd.f32 %v940, %v2349
        %v2351 = vpop.f32.mrf.mxu0
        %v2352 = vpop.f32.mrf.mxu0
        %v2353 = vpop.f32.mrf.mxu0
        %2354 = vdwg.mxu0
        %2355 = vmatprep.subr.bf16.mxu0 0
        %2356 = vmatpush1.bf16.msra.mxu0 0
        %2357 = vmatprep.subr.bf16.mxu0 0
        %2358 = vmatpush1.bf16.msra.mxu0 0
        %2359 = vmatprep.subr.bf16.mxu0 0
        %2360 = vmatpush1.bf16.msra.mxu0 0
        %2361 = vmatprep.subr.bf16.mxu0 0
        %2362 = vmatpush1.bf16.msra.mxu0 0
        %2363 = vmatprep.subr.bf16.mxu0 0
        %2364 = vmatpush1.bf16.msra.mxu0 0
        %2365 = vmatprep.subr.bf16.mxu0 0
        %2366 = vmatpush1.bf16.msra.mxu0 0
        %2367 = vmatprep.subr.bf16.mxu0 0
        %2368 = vmatpush1.bf16.msra.mxu0 %v1069
        %2369 = vmatprep.subr.bf16.mxu0 0
        %2370 = vmatpush1.bf16.msra.mxu0 %v1068
        %2371 = vmatprep.subr.bf16.mxu0 0
        %2372 = vmatpush2.bf16.msra.mxu0 0
        %2373 = vmatprep.subr.bf16.mxu0 0
        %2374 = vmatpush2.bf16.msra.mxu0 0
        %2375 = vmatprep.subr.bf16.mxu0 0
        %2376 = vmatpush2.bf16.msra.mxu0 0
        %2377 = vmatprep.subr.bf16.mxu0 0
        %2378 = vmatpush2.bf16.msra.mxu0 0
        %2379 = vmatprep.subr.bf16.mxu0 0
        %2380 = vmatpush2.bf16.msra.mxu0 0
        %2381 = vmatprep.subr.bf16.mxu0 0
        %2382 = vmatpush2.bf16.msra.mxu0 0
        %2383 = vmatprep.subr.bf16.mxu0 0
        %2384 = vmatpush2.bf16.msra.mxu0 0
        %2385 = vmatprep.subr.bf16.mxu0 0
        %2386 = vmatpush2.bf16.msra.mxu0 0
        %2387 = vmatprep.mubr.bf16.mxu0 0
        %2388 = vmatmul.mubr.bf16.gmra.mxu0 %v2273
        %v2389 = vpop.f32.mrf.mxu0
        %v2390 = vadd.f32 %v944, %v2389
        %v2391 = vpop.f32.mrf.mxu0
        %v2392 = vpop.f32.mrf.mxu0
        %v2393 = vpop.f32.mrf.mxu0
        %2394 = vdwg.mxu0
        %2395 = vmatprep.subr.bf16.mxu0 0
        %2396 = vmatpush1.bf16.msra.mxu0 0
        %2397 = vmatprep.subr.bf16.mxu0 0
        %2398 = vmatpush1.bf16.msra.mxu0 0
        %2399 = vmatprep.subr.bf16.mxu0 0
        %2400 = vmatpush1.bf16.msra.mxu0 0
        %2401 = vmatprep.subr.bf16.mxu0 0
        %2402 = vmatpush1.bf16.msra.mxu0 0
        %2403 = vmatprep.subr.bf16.mxu0 0
        %2404 = vmatpush1.bf16.msra.mxu0 0
        %2405 = vmatprep.subr.bf16.mxu0 0
        %2406 = vmatpush1.bf16.msra.mxu0 0
        %2407 = vmatprep.subr.bf16.mxu0 0
        %2408 = vmatpush1.bf16.msra.mxu0 %v1121
        %2409 = vmatprep.subr.bf16.mxu0 0
        %2410 = vmatpush1.bf16.msra.mxu0 %v1120
        %2411 = vmatprep.subr.bf16.mxu0 0
        %2412 = vmatpush2.bf16.msra.mxu0 0
        %2413 = vmatprep.subr.bf16.mxu0 0
        %2414 = vmatpush2.bf16.msra.mxu0 0
        %2415 = vmatprep.subr.bf16.mxu0 0
        %2416 = vmatpush2.bf16.msra.mxu0 0
        %2417 = vmatprep.subr.bf16.mxu0 0
        %2418 = vmatpush2.bf16.msra.mxu0 0
        %2419 = vmatprep.subr.bf16.mxu0 0
        %2420 = vmatpush2.bf16.msra.mxu0 0
        %2421 = vmatprep.subr.bf16.mxu0 0
        %2422 = vmatpush2.bf16.msra.mxu0 0
        %2423 = vmatprep.subr.bf16.mxu0 0
        %2424 = vmatpush2.bf16.msra.mxu0 0
        %2425 = vmatprep.subr.bf16.mxu0 0
        %2426 = vmatpush2.bf16.msra.mxu0 0
        %2427 = vmatprep.mubr.bf16.mxu0 0
        %2428 = vmatmul.mubr.bf16.gmra.mxu0 %v2273
        %v2429 = vpop.f32.mrf.mxu0
        %v2430 = vadd.f32 %v948, %v2429
        %v2431 = vpop.f32.mrf.mxu0
        %v2432 = vpop.f32.mrf.mxu0
        %v2433 = vpop.f32.mrf.mxu0
        %2434 = vdwg.mxu0
        %2435 = vmatprep.subr.bf16.mxu0 0
        %2436 = vmatpush1.bf16.msra.mxu0 0
        %2437 = vmatprep.subr.bf16.mxu0 0
        %2438 = vmatpush1.bf16.msra.mxu0 0
        %2439 = vmatprep.subr.bf16.mxu0 0
        %2440 = vmatpush1.bf16.msra.mxu0 0
        %2441 = vmatprep.subr.bf16.mxu0 0
        %2442 = vmatpush1.bf16.msra.mxu0 0
        %2443 = vmatprep.subr.bf16.mxu0 0
        %2444 = vmatpush1.bf16.msra.mxu0 0
        %2445 = vmatprep.subr.bf16.mxu0 0
        %2446 = vmatpush1.bf16.msra.mxu0 0
        %2447 = vmatprep.subr.bf16.mxu0 0
        %2448 = vmatpush1.bf16.msra.mxu0 %v1197
        %2449 = vmatprep.subr.bf16.mxu0 0
        %2450 = vmatpush1.bf16.msra.mxu0 %v1196
        %2451 = vmatprep.subr.bf16.mxu0 0
        %2452 = vmatpush2.bf16.msra.mxu0 0
        %2453 = vmatprep.subr.bf16.mxu0 0
        %2454 = vmatpush2.bf16.msra.mxu0 0
        %2455 = vmatprep.subr.bf16.mxu0 0
        %2456 = vmatpush2.bf16.msra.mxu0 0
        %2457 = vmatprep.subr.bf16.mxu0 0
        %2458 = vmatpush2.bf16.msra.mxu0 0
        %2459 = vmatprep.subr.bf16.mxu0 0
        %2460 = vmatpush2.bf16.msra.mxu0 0
        %2461 = vmatprep.subr.bf16.mxu0 0
        %2462 = vmatpush2.bf16.msra.mxu0 0
        %2463 = vmatprep.subr.bf16.mxu0 0
        %2464 = vmatpush2.bf16.msra.mxu0 0
        %2465 = vmatprep.subr.bf16.mxu0 0
        %2466 = vmatpush2.bf16.msra.mxu0 0
        %2467 = vmatprep.mubr.bf16.mxu0 0
        %2468 = vmatmul.mubr.bf16.gmra.mxu0 %v2273
        %v2469 = vpop.f32.mrf.mxu0
        %v2470 = vadd.f32 %v1171, %v2469
        %v2471 = vpop.f32.mrf.mxu0
        %v2472 = vpop.f32.mrf.mxu0
        %v2473 = vpop.f32.mrf.mxu0
        %2474 = vdwg.mxu0
        %2475 = vmatprep.subr.bf16.mxu0 0
        %2476 = vmatpush1.bf16.msra.mxu0 0
        %2477 = vmatprep.subr.bf16.mxu0 0
        %2478 = vmatpush1.bf16.msra.mxu0 0
        %2479 = vmatprep.subr.bf16.mxu0 0
        %2480 = vmatpush1.bf16.msra.mxu0 0
        %2481 = vmatprep.subr.bf16.mxu0 0
        %2482 = vmatpush1.bf16.msra.mxu0 0
        %2483 = vmatprep.subr.bf16.mxu0 0
        %2484 = vmatpush1.bf16.msra.mxu0 0
        %2485 = vmatprep.subr.bf16.mxu0 0
        %2486 = vmatpush1.bf16.msra.mxu0 0
        %2487 = vmatprep.subr.bf16.mxu0 0
        %2488 = vmatpush1.bf16.msra.mxu0 %v1249
        %2489 = vmatprep.subr.bf16.mxu0 0
        %2490 = vmatpush1.bf16.msra.mxu0 %v1248
        %2491 = vmatprep.subr.bf16.mxu0 0
        %2492 = vmatpush2.bf16.msra.mxu0 0
        %2493 = vmatprep.subr.bf16.mxu0 0
        %2494 = vmatpush2.bf16.msra.mxu0 0
        %2495 = vmatprep.subr.bf16.mxu0 0
        %2496 = vmatpush2.bf16.msra.mxu0 0
        %2497 = vmatprep.subr.bf16.mxu0 0
        %2498 = vmatpush2.bf16.msra.mxu0 0
        %2499 = vmatprep.subr.bf16.mxu0 0
        %2500 = vmatpush2.bf16.msra.mxu0 0
        %2501 = vmatprep.subr.bf16.mxu0 0
        %2502 = vmatpush2.bf16.msra.mxu0 0
        %2503 = vmatprep.subr.bf16.mxu0 0
        %2504 = vmatpush2.bf16.msra.mxu0 0
        %2505 = vmatprep.subr.bf16.mxu0 0
        %2506 = vmatpush2.bf16.msra.mxu0 0
        %2507 = vmatprep.mubr.bf16.mxu0 0
        %2508 = vmatmul.mubr.bf16.gmra.mxu0 %v2273
        %v2509 = vpop.f32.mrf.mxu0
        %v2510 = vadd.f32 %v1175, %v2509
        %v2511 = vpop.f32.mrf.mxu0
        %v2512 = vpop.f32.mrf.mxu0
        %v2513 = vpop.f32.mrf.mxu0
        %2514 = vdwg.mxu0
        %2515 = vmatprep.subr.bf16.mxu0 0
        %2516 = vmatpush1.bf16.msra.mxu0 0
        %2517 = vmatprep.subr.bf16.mxu0 0
        %2518 = vmatpush1.bf16.msra.mxu0 0
        %2519 = vmatprep.subr.bf16.mxu0 0
        %2520 = vmatpush1.bf16.msra.mxu0 0
        %2521 = vmatprep.subr.bf16.mxu0 0
        %2522 = vmatpush1.bf16.msra.mxu0 0
        %2523 = vmatprep.subr.bf16.mxu0 0
        %2524 = vmatpush1.bf16.msra.mxu0 0
        %2525 = vmatprep.subr.bf16.mxu0 0
        %2526 = vmatpush1.bf16.msra.mxu0 0
        %2527 = vmatprep.subr.bf16.mxu0 0
        %2528 = vmatpush1.bf16.msra.mxu0 %v1301
        %2529 = vmatprep.subr.bf16.mxu0 0
        %2530 = vmatpush1.bf16.msra.mxu0 %v1300
        %2531 = vmatprep.subr.bf16.mxu0 0
        %2532 = vmatpush2.bf16.msra.mxu0 0
        %2533 = vmatprep.subr.bf16.mxu0 0
        %2534 = vmatpush2.bf16.msra.mxu0 0
        %2535 = vmatprep.subr.bf16.mxu0 0
        %2536 = vmatpush2.bf16.msra.mxu0 0
        %2537 = vmatprep.subr.bf16.mxu0 0
        %2538 = vmatpush2.bf16.msra.mxu0 0
        %2539 = vmatprep.subr.bf16.mxu0 0
        %2540 = vmatpush2.bf16.msra.mxu0 0
        %2541 = vmatprep.subr.bf16.mxu0 0
        %2542 = vmatpush2.bf16.msra.mxu0 0
        %2543 = vmatprep.subr.bf16.mxu0 0
        %2544 = vmatpush2.bf16.msra.mxu0 0
        %2545 = vmatprep.subr.bf16.mxu0 0
        %2546 = vmatpush2.bf16.msra.mxu0 0
        %2547 = vmatprep.mubr.bf16.mxu0 0
        %2548 = vmatmul.mubr.bf16.gmra.mxu0 %v2273
        %v2549 = vpop.f32.mrf.mxu0
        %v2550 = vadd.f32 %v1179, %v2549
        %v2551 = vpop.f32.mrf.mxu0
        %v2552 = vpop.f32.mrf.mxu0
        %v2553 = vpop.f32.mrf.mxu0
        %2554 = vdwg.mxu0
        %2555 = vmatprep.subr.bf16.mxu0 0
        %2556 = vmatpush1.bf16.msra.mxu0 0
        %2557 = vmatprep.subr.bf16.mxu0 0
        %2558 = vmatpush1.bf16.msra.mxu0 0
        %2559 = vmatprep.subr.bf16.mxu0 0
        %2560 = vmatpush1.bf16.msra.mxu0 0
        %2561 = vmatprep.subr.bf16.mxu0 0
        %2562 = vmatpush1.bf16.msra.mxu0 0
        %2563 = vmatprep.subr.bf16.mxu0 0
        %2564 = vmatpush1.bf16.msra.mxu0 0
        %2565 = vmatprep.subr.bf16.mxu0 0
        %2566 = vmatpush1.bf16.msra.mxu0 0
        %2567 = vmatprep.subr.bf16.mxu0 0
        %2568 = vmatpush1.bf16.msra.mxu0 %v1353
        %2569 = vmatprep.subr.bf16.mxu0 0
        %2570 = vmatpush1.bf16.msra.mxu0 %v1352
        %2571 = vmatprep.subr.bf16.mxu0 0
        %2572 = vmatpush2.bf16.msra.mxu0 0
        %2573 = vmatprep.subr.bf16.mxu0 0
        %2574 = vmatpush2.bf16.msra.mxu0 0
        %2575 = vmatprep.subr.bf16.mxu0 0
        %2576 = vmatpush2.bf16.msra.mxu0 0
        %2577 = vmatprep.subr.bf16.mxu0 0
        %2578 = vmatpush2.bf16.msra.mxu0 0
        %2579 = vmatprep.subr.bf16.mxu0 0
        %2580 = vmatpush2.bf16.msra.mxu0 0
        %2581 = vmatprep.subr.bf16.mxu0 0
        %2582 = vmatpush2.bf16.msra.mxu0 0
        %2583 = vmatprep.subr.bf16.mxu0 0
        %2584 = vmatpush2.bf16.msra.mxu0 0
        %2585 = vmatprep.subr.bf16.mxu0 0
        %2586 = vmatpush2.bf16.msra.mxu0 0
        %2587 = vmatprep.mubr.bf16.mxu0 0
        %2588 = vmatmul.mubr.bf16.gmra.mxu0 %v2273
        %v2589 = vpop.f32.mrf.mxu0
        %v2590 = vadd.f32 %v1183, %v2589
        %v2591 = vpop.f32.mrf.mxu0
        %v2592 = vpop.f32.mrf.mxu0
        %v2593 = vpop.f32.mrf.mxu0
        %2594 = vdwg.mxu0
        %2595 = vmatprep.subr.bf16.mxu0 0
        %2596 = vmatpush1.bf16.msra.mxu0 0
        %2597 = vmatprep.subr.bf16.mxu0 0
        %2598 = vmatpush1.bf16.msra.mxu0 0
        %2599 = vmatprep.subr.bf16.mxu0 0
        %2600 = vmatpush1.bf16.msra.mxu0 0
        %2601 = vmatprep.subr.bf16.mxu0 0
        %2602 = vmatpush1.bf16.msra.mxu0 0
        %2603 = vmatprep.subr.bf16.mxu0 0
        %2604 = vmatpush1.bf16.msra.mxu0 0
        %2605 = vmatprep.subr.bf16.mxu0 0
        %2606 = vmatpush1.bf16.msra.mxu0 0
        %2607 = vmatprep.subr.bf16.mxu0 0
        %2608 = vmatpush1.bf16.msra.mxu0 %v1429
        %2609 = vmatprep.subr.bf16.mxu0 0
        %2610 = vmatpush1.bf16.msra.mxu0 %v1428
        %2611 = vmatprep.subr.bf16.mxu0 0
        %2612 = vmatpush2.bf16.msra.mxu0 0
        %2613 = vmatprep.subr.bf16.mxu0 0
        %2614 = vmatpush2.bf16.msra.mxu0 0
        %2615 = vmatprep.subr.bf16.mxu0 0
        %2616 = vmatpush2.bf16.msra.mxu0 0
        %2617 = vmatprep.subr.bf16.mxu0 0
        %2618 = vmatpush2.bf16.msra.mxu0 0
        %2619 = vmatprep.subr.bf16.mxu0 0
        %2620 = vmatpush2.bf16.msra.mxu0 0
        %2621 = vmatprep.subr.bf16.mxu0 0
        %2622 = vmatpush2.bf16.msra.mxu0 0
        %2623 = vmatprep.subr.bf16.mxu0 0
        %2624 = vmatpush2.bf16.msra.mxu0 0
        %2625 = vmatprep.subr.bf16.mxu0 0
        %2626 = vmatpush2.bf16.msra.mxu0 0
        %2627 = vmatprep.mubr.bf16.mxu0 0
        %2628 = vmatmul.mubr.bf16.gmra.mxu0 %v2273
        %v2629 = vpop.f32.mrf.mxu0
        %v2630 = vadd.f32 %v1403, %v2629
        %v2631 = vpop.f32.mrf.mxu0
        %v2632 = vpop.f32.mrf.mxu0
        %v2633 = vpop.f32.mrf.mxu0
        %2634 = vdwg.mxu0
        %2635 = vmatprep.subr.bf16.mxu0 0
        %2636 = vmatpush1.bf16.msra.mxu0 0
        %2637 = vmatprep.subr.bf16.mxu0 0
        %2638 = vmatpush1.bf16.msra.mxu0 0
        %2639 = vmatprep.subr.bf16.mxu0 0
        %2640 = vmatpush1.bf16.msra.mxu0 0
        %2641 = vmatprep.subr.bf16.mxu0 0
        %2642 = vmatpush1.bf16.msra.mxu0 0
        %2643 = vmatprep.subr.bf16.mxu0 0
        %2644 = vmatpush1.bf16.msra.mxu0 0
        %2645 = vmatprep.subr.bf16.mxu0 0
        %2646 = vmatpush1.bf16.msra.mxu0 0
        %2647 = vmatprep.subr.bf16.mxu0 0
        %2648 = vmatpush1.bf16.msra.mxu0 %v1481
        %2649 = vmatprep.subr.bf16.mxu0 0
        %2650 = vmatpush1.bf16.msra.mxu0 %v1480
        %2651 = vmatprep.subr.bf16.mxu0 0
        %2652 = vmatpush2.bf16.msra.mxu0 0
        %2653 = vmatprep.subr.bf16.mxu0 0
        %2654 = vmatpush2.bf16.msra.mxu0 0
        %2655 = vmatprep.subr.bf16.mxu0 0
        %2656 = vmatpush2.bf16.msra.mxu0 0
        %2657 = vmatprep.subr.bf16.mxu0 0
        %2658 = vmatpush2.bf16.msra.mxu0 0
        %2659 = vmatprep.subr.bf16.mxu0 0
        %2660 = vmatpush2.bf16.msra.mxu0 0
        %2661 = vmatprep.subr.bf16.mxu0 0
        %2662 = vmatpush2.bf16.msra.mxu0 0
        %2663 = vmatprep.subr.bf16.mxu0 0
        %2664 = vmatpush2.bf16.msra.mxu0 0
        %2665 = vmatprep.subr.bf16.mxu0 0
        %2666 = vmatpush2.bf16.msra.mxu0 0
        %2667 = vmatprep.mubr.bf16.mxu0 0
        %2668 = vmatmul.mubr.bf16.gmra.mxu0 %v2273
        %v2669 = vpop.f32.mrf.mxu0
        %v2670 = vadd.f32 %v1407, %v2669
        %v2671 = vpop.f32.mrf.mxu0
        %v2672 = vpop.f32.mrf.mxu0
        %v2673 = vpop.f32.mrf.mxu0
        %2674 = vdwg.mxu0
        %2675 = vmatprep.subr.bf16.mxu0 0
        %2676 = vmatpush1.bf16.msra.mxu0 0
        %2677 = vmatprep.subr.bf16.mxu0 0
        %2678 = vmatpush1.bf16.msra.mxu0 0
        %2679 = vmatprep.subr.bf16.mxu0 0
        %2680 = vmatpush1.bf16.msra.mxu0 0
        %2681 = vmatprep.subr.bf16.mxu0 0
        %2682 = vmatpush1.bf16.msra.mxu0 0
        %2683 = vmatprep.subr.bf16.mxu0 0
        %2684 = vmatpush1.bf16.msra.mxu0 0
        %2685 = vmatprep.subr.bf16.mxu0 0
        %2686 = vmatpush1.bf16.msra.mxu0 0
        %2687 = vmatprep.subr.bf16.mxu0 0
        %2688 = vmatpush1.bf16.msra.mxu0 %v1533
        %2689 = vmatprep.subr.bf16.mxu0 0
        %2690 = vmatpush1.bf16.msra.mxu0 %v1532
        %2691 = vmatprep.subr.bf16.mxu0 0
        %2692 = vmatpush2.bf16.msra.mxu0 0
        %2693 = vmatprep.subr.bf16.mxu0 0
        %2694 = vmatpush2.bf16.msra.mxu0 0
        %2695 = vmatprep.subr.bf16.mxu0 0
        %2696 = vmatpush2.bf16.msra.mxu0 0
        %2697 = vmatprep.subr.bf16.mxu0 0
        %2698 = vmatpush2.bf16.msra.mxu0 0
        %2699 = vmatprep.subr.bf16.mxu0 0
        %2700 = vmatpush2.bf16.msra.mxu0 0
        %2701 = vmatprep.subr.bf16.mxu0 0
        %2702 = vmatpush2.bf16.msra.mxu0 0
        %2703 = vmatprep.subr.bf16.mxu0 0
        %2704 = vmatpush2.bf16.msra.mxu0 0
        %2705 = vmatprep.subr.bf16.mxu0 0
        %2706 = vmatpush2.bf16.msra.mxu0 0
        %2707 = vmatprep.mubr.bf16.mxu0 0
        %2708 = vmatmul.mubr.bf16.gmra.mxu0 %v2273
        %v2709 = vpop.f32.mrf.mxu0
        %v2710 = vadd.f32 %v1411, %v2709
        %v2711 = vpop.f32.mrf.mxu0
        %v2712 = vpop.f32.mrf.mxu0
        %v2713 = vpop.f32.mrf.mxu0
        %2714 = vdwg.mxu0
        %2715 = vmatprep.subr.bf16.mxu0 0
        %2716 = vmatpush1.bf16.msra.mxu0 0
        %2717 = vmatprep.subr.bf16.mxu0 0
        %2718 = vmatpush1.bf16.msra.mxu0 0
        %2719 = vmatprep.subr.bf16.mxu0 0
        %2720 = vmatpush1.bf16.msra.mxu0 0
        %2721 = vmatprep.subr.bf16.mxu0 0
        %2722 = vmatpush1.bf16.msra.mxu0 0
        %2723 = vmatprep.subr.bf16.mxu0 0
        %2724 = vmatpush1.bf16.msra.mxu0 0
        %2725 = vmatprep.subr.bf16.mxu0 0
        %2726 = vmatpush1.bf16.msra.mxu0 0
        %2727 = vmatprep.subr.bf16.mxu0 0
        %2728 = vmatpush1.bf16.msra.mxu0 %v1585
        %2729 = vmatprep.subr.bf16.mxu0 0
        %2730 = vmatpush1.bf16.msra.mxu0 %v1584
        %2731 = vmatprep.subr.bf16.mxu0 0
        %2732 = vmatpush2.bf16.msra.mxu0 0
        %2733 = vmatprep.subr.bf16.mxu0 0
        %2734 = vmatpush2.bf16.msra.mxu0 0
        %2735 = vmatprep.subr.bf16.mxu0 0
        %2736 = vmatpush2.bf16.msra.mxu0 0
        %2737 = vmatprep.subr.bf16.mxu0 0
        %2738 = vmatpush2.bf16.msra.mxu0 0
        %2739 = vmatprep.subr.bf16.mxu0 0
        %2740 = vmatpush2.bf16.msra.mxu0 0
        %2741 = vmatprep.subr.bf16.mxu0 0
        %2742 = vmatpush2.bf16.msra.mxu0 0
        %2743 = vmatprep.subr.bf16.mxu0 0
        %2744 = vmatpush2.bf16.msra.mxu0 0
        %2745 = vmatprep.subr.bf16.mxu0 0
        %2746 = vmatpush2.bf16.msra.mxu0 0
        %2747 = vmatprep.mubr.bf16.mxu0 0
        %2748 = vmatmul.mubr.bf16.gmra.mxu0 %v2273
        %v2749 = vpop.f32.mrf.mxu0
        %v2750 = vadd.f32 %v1415, %v2749
        %v2751 = vpop.f32.mrf.mxu0
        %v2752 = vpop.f32.mrf.mxu0
        %v2753 = vpop.f32.mrf.mxu0
        %2754 = vdwg.mxu0
        %v2755 = vpack.c.bf16 %v2310, %v2310
        %v2756 = vpack.c.bf16 %v2350, %v2350
        %v2757 = vpack.c.bf16 %v2390, %v2390
        %v2758 = vpack.c.bf16 %v2430, %v2430
        %v2759 = vpack.c.bf16 %v2470, %v2470
        %v2760 = vpack.c.bf16 %v2510, %v2510
        %v2761 = vpack.c.bf16 %v2550, %v2550
        %v2762 = vpack.c.bf16 %v2590, %v2590
        %v2764 = vsel %vm1636, %v2755, 0
        %v2767 = vsel %vm1636, %v2759, 0
        %2769 = vmatprep.subr.bf16.mxu0 0
        %2770 = vmatpush1.bf16.xpose.msra.mxu0 0
        %2771 = vmatprep.subr.bf16.mxu0 0
        %2772 = vmatpush1.bf16.xpose.msra.mxu0 0
        %2773 = vmatprep.subr.bf16.mxu0 0
        %2774 = vmatpush1.bf16.xpose.msra.mxu0 0
        %2775 = vmatprep.subr.bf16.mxu0 0
        %2776 = vmatpush1.bf16.xpose.msra.mxu0 0
        %2777 = vmatprep.subr.bf16.mxu0 0
        %2778 = vmatpush1.bf16.xpose.msra.mxu0 0
        %2779 = vmatprep.subr.bf16.mxu0 0
        %2780 = vmatpush1.bf16.xpose.msra.mxu0 0
        %2781 = vmatprep.subr.bf16.mxu0 0
        %2782 = vmatpush1.bf16.xpose.msra.mxu0 0
        %2783 = vmatprep.subr.bf16.mxu0 0
        %2784 = vmatpush1.bf16.xpose.msra.mxu0 %v2767
        %2785 = vmatprep.subr.bf16.mxu0 0
        %2786 = vmatpush2.bf16.xpose.msra.mxu0 0
        %2787 = vmatprep.subr.bf16.mxu0 0
        %2788 = vmatpush2.bf16.xpose.msra.mxu0 0
        %2789 = vmatprep.subr.bf16.mxu0 0
        %2790 = vmatpush2.bf16.xpose.msra.mxu0 0
        %2791 = vmatprep.subr.bf16.mxu0 0
        %2792 = vmatpush2.bf16.xpose.msra.mxu0 0
        %2793 = vmatprep.subr.bf16.mxu0 0
        %2794 = vmatpush2.bf16.xpose.msra.mxu0 0
        %2795 = vmatprep.subr.bf16.mxu0 0
        %2796 = vmatpush2.bf16.xpose.msra.mxu0 0
        %2797 = vmatprep.subr.bf16.mxu0 0
        %2798 = vmatpush2.bf16.xpose.msra.mxu0 0
        %2799 = vmatprep.subr.bf16.mxu0 0
        %2800 = vmatpush2.bf16.xpose.msra.mxu0 0
        %2801 = vmatprep.mubr.bf16.mxu0 0
        %2802 = vmatmul.mubr.bf16.gmra.mxu0 %v2764
        %v2803 = vpop.f32.mrf.mxu0
        %v2804 = vadd.f32 0.0, %v2803
        %v2805 = vpop.f32.mrf.mxu0
        %v2806 = vpop.f32.mrf.mxu0
        %v2807 = vpop.f32.mrf.mxu0
        %2808 = vdwg.mxu0
        %v2810 = vsel %vm1636, %v2756, 0
        %v2813 = vsel %vm1636, %v2760, 0
        %2815 = vmatprep.subr.bf16.mxu0 0
        %2816 = vmatpush1.bf16.xpose.msra.mxu0 0
        %2817 = vmatprep.subr.bf16.mxu0 0
        %2818 = vmatpush1.bf16.xpose.msra.mxu0 0
        %2819 = vmatprep.subr.bf16.mxu0 0
        %2820 = vmatpush1.bf16.xpose.msra.mxu0 0
        %2821 = vmatprep.subr.bf16.mxu0 0
        %2822 = vmatpush1.bf16.xpose.msra.mxu0 0
        %2823 = vmatprep.subr.bf16.mxu0 0
        %2824 = vmatpush1.bf16.xpose.msra.mxu0 0
        %2825 = vmatprep.subr.bf16.mxu0 0
        %2826 = vmatpush1.bf16.xpose.msra.mxu0 0
        %2827 = vmatprep.subr.bf16.mxu0 0
        %2828 = vmatpush1.bf16.xpose.msra.mxu0 0
        %2829 = vmatprep.subr.bf16.mxu0 0
        %2830 = vmatpush1.bf16.xpose.msra.mxu0 %v2813
        %2831 = vmatprep.subr.bf16.mxu0 0
        %2832 = vmatpush2.bf16.xpose.msra.mxu0 0
        %2833 = vmatprep.subr.bf16.mxu0 0
        %2834 = vmatpush2.bf16.xpose.msra.mxu0 0
        %2835 = vmatprep.subr.bf16.mxu0 0
        %2836 = vmatpush2.bf16.xpose.msra.mxu0 0
        %2837 = vmatprep.subr.bf16.mxu0 0
        %2838 = vmatpush2.bf16.xpose.msra.mxu0 0
        %2839 = vmatprep.subr.bf16.mxu0 0
        %2840 = vmatpush2.bf16.xpose.msra.mxu0 0
        %2841 = vmatprep.subr.bf16.mxu0 0
        %2842 = vmatpush2.bf16.xpose.msra.mxu0 0
        %2843 = vmatprep.subr.bf16.mxu0 0
        %2844 = vmatpush2.bf16.xpose.msra.mxu0 0
        %2845 = vmatprep.subr.bf16.mxu0 0
        %2846 = vmatpush2.bf16.xpose.msra.mxu0 0
        %2847 = vmatprep.mubr.bf16.mxu0 0
        %2848 = vmatmul.mubr.bf16.gmra.mxu0 %v2810
        %v2849 = vpop.f32.mrf.mxu0
        %v2850 = vadd.f32 0.0, %v2849
        %v2851 = vpop.f32.mrf.mxu0
        %v2852 = vpop.f32.mrf.mxu0
        %v2853 = vpop.f32.mrf.mxu0
        %2854 = vdwg.mxu0
        %v2856 = vsel %vm1636, %v2757, 0
        %v2859 = vsel %vm1636, %v2761, 0
        %2861 = vmatprep.subr.bf16.mxu0 0
        %2862 = vmatpush1.bf16.xpose.msra.mxu0 0
        %2863 = vmatprep.subr.bf16.mxu0 0
        %2864 = vmatpush1.bf16.xpose.msra.mxu0 0
        %2865 = vmatprep.subr.bf16.mxu0 0
        %2866 = vmatpush1.bf16.xpose.msra.mxu0 0
        %2867 = vmatprep.subr.bf16.mxu0 0
        %2868 = vmatpush1.bf16.xpose.msra.mxu0 0
        %2869 = vmatprep.subr.bf16.mxu0 0
        %2870 = vmatpush1.bf16.xpose.msra.mxu0 0
        %2871 = vmatprep.subr.bf16.mxu0 0
        %2872 = vmatpush1.bf16.xpose.msra.mxu0 0
        %2873 = vmatprep.subr.bf16.mxu0 0
        %2874 = vmatpush1.bf16.xpose.msra.mxu0 0
        %2875 = vmatprep.subr.bf16.mxu0 0
        %2876 = vmatpush1.bf16.xpose.msra.mxu0 %v2859
        %2877 = vmatprep.subr.bf16.mxu0 0
        %2878 = vmatpush2.bf16.xpose.msra.mxu0 0
        %2879 = vmatprep.subr.bf16.mxu0 0
        %2880 = vmatpush2.bf16.xpose.msra.mxu0 0
        %2881 = vmatprep.subr.bf16.mxu0 0
        %2882 = vmatpush2.bf16.xpose.msra.mxu0 0
        %2883 = vmatprep.subr.bf16.mxu0 0
        %2884 = vmatpush2.bf16.xpose.msra.mxu0 0
        %2885 = vmatprep.subr.bf16.mxu0 0
        %2886 = vmatpush2.bf16.xpose.msra.mxu0 0
        %2887 = vmatprep.subr.bf16.mxu0 0
        %2888 = vmatpush2.bf16.xpose.msra.mxu0 0
        %2889 = vmatprep.subr.bf16.mxu0 0
        %2890 = vmatpush2.bf16.xpose.msra.mxu0 0
        %2891 = vmatprep.subr.bf16.mxu0 0
        %2892 = vmatpush2.bf16.xpose.msra.mxu0 0
        %2893 = vmatprep.mubr.bf16.mxu0 0
        %2894 = vmatmul.mubr.bf16.gmra.mxu0 %v2856
        %v2895 = vpop.f32.mrf.mxu0
        %v2896 = vadd.f32 0.0, %v2895
        %v2897 = vpop.f32.mrf.mxu0
        %v2898 = vpop.f32.mrf.mxu0
        %v2899 = vpop.f32.mrf.mxu0
        %2900 = vdwg.mxu0
        %v2902 = vsel %vm1636, %v2758, 0
        %v2905 = vsel %vm1636, %v2762, 0
        %2907 = vmatprep.subr.bf16.mxu0 0
        %2908 = vmatpush1.bf16.xpose.msra.mxu0 0
        %2909 = vmatprep.subr.bf16.mxu0 0
        %2910 = vmatpush1.bf16.xpose.msra.mxu0 0
        %2911 = vmatprep.subr.bf16.mxu0 0
        %2912 = vmatpush1.bf16.xpose.msra.mxu0 0
        %2913 = vmatprep.subr.bf16.mxu0 0
        %2914 = vmatpush1.bf16.xpose.msra.mxu0 0
        %2915 = vmatprep.subr.bf16.mxu0 0
        %2916 = vmatpush1.bf16.xpose.msra.mxu0 0
        %2917 = vmatprep.subr.bf16.mxu0 0
        %2918 = vmatpush1.bf16.xpose.msra.mxu0 0
        %2919 = vmatprep.subr.bf16.mxu0 0
        %2920 = vmatpush1.bf16.xpose.msra.mxu0 0
        %2921 = vmatprep.subr.bf16.mxu0 0
        %2922 = vmatpush1.bf16.xpose.msra.mxu0 %v2905
        %2923 = vmatprep.subr.bf16.mxu0 0
        %2924 = vmatpush2.bf16.xpose.msra.mxu0 0
        %2925 = vmatprep.subr.bf16.mxu0 0
        %2926 = vmatpush2.bf16.xpose.msra.mxu0 0
        %2927 = vmatprep.subr.bf16.mxu0 0
        %2928 = vmatpush2.bf16.xpose.msra.mxu0 0
        %2929 = vmatprep.subr.bf16.mxu0 0
        %2930 = vmatpush2.bf16.xpose.msra.mxu0 0
        %2931 = vmatprep.subr.bf16.mxu0 0
        %2932 = vmatpush2.bf16.xpose.msra.mxu0 0
        %2933 = vmatprep.subr.bf16.mxu0 0
        %2934 = vmatpush2.bf16.xpose.msra.mxu0 0
        %2935 = vmatprep.subr.bf16.mxu0 0
        %2936 = vmatpush2.bf16.xpose.msra.mxu0 0
        %2937 = vmatprep.subr.bf16.mxu0 0
        %2938 = vmatpush2.bf16.xpose.msra.mxu0 0
        %2939 = vmatprep.mubr.bf16.mxu0 0
        %2940 = vmatmul.mubr.bf16.gmra.mxu0 %v2902
        %v2941 = vpop.f32.mrf.mxu0
        %v2942 = vadd.f32 0.0, %v2941
        %v2943 = vpop.f32.mrf.mxu0
        %v2944 = vpop.f32.mrf.mxu0
        %v2945 = vpop.f32.mrf.mxu0
        %2946 = vdwg.mxu0
        %v2947 = vmul.f32 %v2804, 0.35355338
        %v2948 = vmul.f32 %v2850, 0.35355338
        %v2949 = vmul.f32 %v2896, 0.35355338
        %v2950 = vmul.f32 %v2942, 0.35355338
        %v2951 = vsel %vm1826, %v2947, -1e+30
        %v2952 = vsel %vm1826, %v2948, -1e+30
        %v2953 = vsel %vm1826, %v2949, -1e+30
        %v2954 = vsel %vm1826, %v2950, -1e+30
        %v2955 = vsel %vm1636, %v2951, -inf
        %2956 = vmax.xlane.f32.xlu0 %v2955
        %v2957 = vpop.xlane.xlu0 %2956
        %v2958 = vsel %vm1636, %v2952, -inf
        %2959 = vmax.xlane.f32.xlu0 %v2958
        %v2960 = vpop.xlane.xlu0 %2959
        %v2961 = vsel %vm1636, %v2953, -inf
        %2962 = vmax.xlane.f32.xlu0 %v2961
        %v2963 = vpop.xlane.xlu0 %2962
        %v2964 = vsel %vm1636, %v2954, -inf
        %2965 = vmax.xlane.f32.xlu0 %v2964
        %v2966 = vpop.xlane.xlu0 %2965
        %v2967 = vsub.f32 %v2951, %v2957
        %v2968 = vsub.f32 %v2952, %v2960
        %v2969 = vsub.f32 %v2953, %v2963
        %v2970 = vsub.f32 %v2954, %v2966
        %v2971 = vmul.f32 %v2967, 1.442695
        %v2972 = vpow.pop %v2971
        %v2973 = vmul.f32 %v2968, 1.442695
        %v2974 = vpow.pop %v2973
        %v2975 = vmul.f32 %v2969, 1.442695
        %v2976 = vpow.pop %v2975
        %v2977 = vmul.f32 %v2970, 1.442695
        %v2978 = vpow.pop %v2977
        %v2979 = vsel %vm1636, %v2972, 0.0
        %2980 = vadd.xlane.f32.xlu0 %v2979
        %v2981 = vpop.xlane.xlu0 %2980
        %v2982 = vsel %vm1636, %v2974, 0.0
        %2983 = vadd.xlane.f32.xlu0 %v2982
        %v2984 = vpop.xlane.xlu0 %2983
        %v2985 = vsel %vm1636, %v2976, 0.0
        %2986 = vadd.xlane.f32.xlu0 %v2985
        %v2987 = vpop.xlane.xlu0 %2986
        %v2988 = vsel %vm1636, %v2978, 0.0
        %2989 = vadd.xlane.f32.xlu0 %v2988
        %v2990 = vpop.xlane.xlu0 %2989
        %v2991 = vrcp.pop %v2981
        %v2992 = vrcp.pop %v2984
        %v2993 = vrcp.pop %v2987
        %v2994 = vrcp.pop %v2990
        %v2995 = vmul.f32 %v2972, %v2991
        %v2996 = vmul.f32 %v2974, %v2992
        %v2997 = vmul.f32 %v2976, %v2993
        %v2998 = vmul.f32 %v2978, %v2994
        %v2999 = vpack.c.bf16 %v2995, %v2995
        %v3000 = vpack.c.bf16 %v2996, %v2996
        %v3001 = vpack.c.bf16 %v2997, %v2997
        %v3002 = vpack.c.bf16 %v2998, %v2998
        %v3003 = vpack.c.bf16 %v2630, %v2630
        %v3004 = vpack.c.bf16 %v2670, %v2670
        %v3005 = vpack.c.bf16 %v2710, %v2710
        %v3006 = vpack.c.bf16 %v2750, %v2750
        %v3008 = vsel %vm1636, %v2999, 0
        %v3011 = vsel %vm1886, %v3003, 0
        %3013 = vmatprep.subr.bf16.mxu0 0
        %3014 = vmatpush1.bf16.msra.mxu0 0
        %3015 = vmatprep.subr.bf16.mxu0 0
        %3016 = vmatpush1.bf16.msra.mxu0 0
        %3017 = vmatprep.subr.bf16.mxu0 0
        %3018 = vmatpush1.bf16.msra.mxu0 0
        %3019 = vmatprep.subr.bf16.mxu0 0
        %3020 = vmatpush1.bf16.msra.mxu0 0
        %3021 = vmatprep.subr.bf16.mxu0 0
        %3022 = vmatpush1.bf16.msra.mxu0 0
        %3023 = vmatprep.subr.bf16.mxu0 0
        %3024 = vmatpush1.bf16.msra.mxu0 0
        %3025 = vmatprep.subr.bf16.mxu0 0
        %3026 = vmatpush1.bf16.msra.mxu0 0
        %3027 = vmatprep.subr.bf16.mxu0 0
        %3028 = vmatpush1.bf16.msra.mxu0 %v3011
        %3029 = vmatprep.subr.bf16.mxu0 0
        %3030 = vmatpush2.bf16.msra.mxu0 0
        %3031 = vmatprep.subr.bf16.mxu0 0
        %3032 = vmatpush2.bf16.msra.mxu0 0
        %3033 = vmatprep.subr.bf16.mxu0 0
        %3034 = vmatpush2.bf16.msra.mxu0 0
        %3035 = vmatprep.subr.bf16.mxu0 0
        %3036 = vmatpush2.bf16.msra.mxu0 0
        %3037 = vmatprep.subr.bf16.mxu0 0
        %3038 = vmatpush2.bf16.msra.mxu0 0
        %3039 = vmatprep.subr.bf16.mxu0 0
        %3040 = vmatpush2.bf16.msra.mxu0 0
        %3041 = vmatprep.subr.bf16.mxu0 0
        %3042 = vmatpush2.bf16.msra.mxu0 0
        %3043 = vmatprep.subr.bf16.mxu0 0
        %3044 = vmatpush2.bf16.msra.mxu0 0
        %3045 = vmatprep.mubr.bf16.mxu0 0
        %3046 = vmatmul.mubr.bf16.gmra.mxu0 %v3008
        %v3047 = vpop.f32.mrf.mxu0
        %v3048 = vadd.f32 0.0, %v3047
        %v3049 = vpop.f32.mrf.mxu0
        %v3050 = vpop.f32.mrf.mxu0
        %v3051 = vpop.f32.mrf.mxu0
        %3052 = vdwg.mxu0
        %v3054 = vsel %vm1636, %v3000, 0
        %v3057 = vsel %vm1886, %v3004, 0
        %3059 = vmatprep.subr.bf16.mxu0 0
        %3060 = vmatpush1.bf16.msra.mxu0 0
        %3061 = vmatprep.subr.bf16.mxu0 0
        %3062 = vmatpush1.bf16.msra.mxu0 0
        %3063 = vmatprep.subr.bf16.mxu0 0
        %3064 = vmatpush1.bf16.msra.mxu0 0
        %3065 = vmatprep.subr.bf16.mxu0 0
        %3066 = vmatpush1.bf16.msra.mxu0 0
        %3067 = vmatprep.subr.bf16.mxu0 0
        %3068 = vmatpush1.bf16.msra.mxu0 0
        %3069 = vmatprep.subr.bf16.mxu0 0
        %3070 = vmatpush1.bf16.msra.mxu0 0
        %3071 = vmatprep.subr.bf16.mxu0 0
        %3072 = vmatpush1.bf16.msra.mxu0 0
        %3073 = vmatprep.subr.bf16.mxu0 0
        %3074 = vmatpush1.bf16.msra.mxu0 %v3057
        %3075 = vmatprep.subr.bf16.mxu0 0
        %3076 = vmatpush2.bf16.msra.mxu0 0
        %3077 = vmatprep.subr.bf16.mxu0 0
        %3078 = vmatpush2.bf16.msra.mxu0 0
        %3079 = vmatprep.subr.bf16.mxu0 0
        %3080 = vmatpush2.bf16.msra.mxu0 0
        %3081 = vmatprep.subr.bf16.mxu0 0
        %3082 = vmatpush2.bf16.msra.mxu0 0
        %3083 = vmatprep.subr.bf16.mxu0 0
        %3084 = vmatpush2.bf16.msra.mxu0 0
        %3085 = vmatprep.subr.bf16.mxu0 0
        %3086 = vmatpush2.bf16.msra.mxu0 0
        %3087 = vmatprep.subr.bf16.mxu0 0
        %3088 = vmatpush2.bf16.msra.mxu0 0
        %3089 = vmatprep.subr.bf16.mxu0 0
        %3090 = vmatpush2.bf16.msra.mxu0 0
        %3091 = vmatprep.mubr.bf16.mxu0 0
        %3092 = vmatmul.mubr.bf16.gmra.mxu0 %v3054
        %v3093 = vpop.f32.mrf.mxu0
        %v3094 = vadd.f32 0.0, %v3093
        %v3095 = vpop.f32.mrf.mxu0
        %v3096 = vpop.f32.mrf.mxu0
        %v3097 = vpop.f32.mrf.mxu0
        %3098 = vdwg.mxu0
        %v3100 = vsel %vm1636, %v3001, 0
        %v3103 = vsel %vm1886, %v3005, 0
        %3105 = vmatprep.subr.bf16.mxu0 0
        %3106 = vmatpush1.bf16.msra.mxu0 0
        %3107 = vmatprep.subr.bf16.mxu0 0
        %3108 = vmatpush1.bf16.msra.mxu0 0
        %3109 = vmatprep.subr.bf16.mxu0 0
        %3110 = vmatpush1.bf16.msra.mxu0 0
        %3111 = vmatprep.subr.bf16.mxu0 0
        %3112 = vmatpush1.bf16.msra.mxu0 0
        %3113 = vmatprep.subr.bf16.mxu0 0
        %3114 = vmatpush1.bf16.msra.mxu0 0
        %3115 = vmatprep.subr.bf16.mxu0 0
        %3116 = vmatpush1.bf16.msra.mxu0 0
        %3117 = vmatprep.subr.bf16.mxu0 0
        %3118 = vmatpush1.bf16.msra.mxu0 0
        %3119 = vmatprep.subr.bf16.mxu0 0
        %3120 = vmatpush1.bf16.msra.mxu0 %v3103
        %3121 = vmatprep.subr.bf16.mxu0 0
        %3122 = vmatpush2.bf16.msra.mxu0 0
        %3123 = vmatprep.subr.bf16.mxu0 0
        %3124 = vmatpush2.bf16.msra.mxu0 0
        %3125 = vmatprep.subr.bf16.mxu0 0
        %3126 = vmatpush2.bf16.msra.mxu0 0
        %3127 = vmatprep.subr.bf16.mxu0 0
        %3128 = vmatpush2.bf16.msra.mxu0 0
        %3129 = vmatprep.subr.bf16.mxu0 0
        %3130 = vmatpush2.bf16.msra.mxu0 0
        %3131 = vmatprep.subr.bf16.mxu0 0
        %3132 = vmatpush2.bf16.msra.mxu0 0
        %3133 = vmatprep.subr.bf16.mxu0 0
        %3134 = vmatpush2.bf16.msra.mxu0 0
        %3135 = vmatprep.subr.bf16.mxu0 0
        %3136 = vmatpush2.bf16.msra.mxu0 0
        %3137 = vmatprep.mubr.bf16.mxu0 0
        %3138 = vmatmul.mubr.bf16.gmra.mxu0 %v3100
        %v3139 = vpop.f32.mrf.mxu0
        %v3140 = vadd.f32 0.0, %v3139
        %v3141 = vpop.f32.mrf.mxu0
        %v3142 = vpop.f32.mrf.mxu0
        %v3143 = vpop.f32.mrf.mxu0
        %3144 = vdwg.mxu0
        %v3146 = vsel %vm1636, %v3002, 0
        %v3149 = vsel %vm1886, %v3006, 0
        %3151 = vmatprep.subr.bf16.mxu0 0
        %3152 = vmatpush1.bf16.msra.mxu0 0
        %3153 = vmatprep.subr.bf16.mxu0 0
        %3154 = vmatpush1.bf16.msra.mxu0 0
        %3155 = vmatprep.subr.bf16.mxu0 0
        %3156 = vmatpush1.bf16.msra.mxu0 0
        %3157 = vmatprep.subr.bf16.mxu0 0
        %3158 = vmatpush1.bf16.msra.mxu0 0
        %3159 = vmatprep.subr.bf16.mxu0 0
        %3160 = vmatpush1.bf16.msra.mxu0 0
        %3161 = vmatprep.subr.bf16.mxu0 0
        %3162 = vmatpush1.bf16.msra.mxu0 0
        %3163 = vmatprep.subr.bf16.mxu0 0
        %3164 = vmatpush1.bf16.msra.mxu0 0
        %3165 = vmatprep.subr.bf16.mxu0 0
        %3166 = vmatpush1.bf16.msra.mxu0 %v3149
        %3167 = vmatprep.subr.bf16.mxu0 0
        %3168 = vmatpush2.bf16.msra.mxu0 0
        %3169 = vmatprep.subr.bf16.mxu0 0
        %3170 = vmatpush2.bf16.msra.mxu0 0
        %3171 = vmatprep.subr.bf16.mxu0 0
        %3172 = vmatpush2.bf16.msra.mxu0 0
        %3173 = vmatprep.subr.bf16.mxu0 0
        %3174 = vmatpush2.bf16.msra.mxu0 0
        %3175 = vmatprep.subr.bf16.mxu0 0
        %3176 = vmatpush2.bf16.msra.mxu0 0
        %3177 = vmatprep.subr.bf16.mxu0 0
        %3178 = vmatpush2.bf16.msra.mxu0 0
        %3179 = vmatprep.subr.bf16.mxu0 0
        %3180 = vmatpush2.bf16.msra.mxu0 0
        %3181 = vmatprep.subr.bf16.mxu0 0
        %3182 = vmatpush2.bf16.msra.mxu0 0
        %3183 = vmatprep.mubr.bf16.mxu0 0
        %3184 = vmatmul.mubr.bf16.gmra.mxu0 %v3146
        %v3185 = vpop.f32.mrf.mxu0
        %v3186 = vadd.f32 0.0, %v3185
        %v3187 = vpop.f32.mrf.mxu0
        %v3188 = vpop.f32.mrf.mxu0
        %v3189 = vpop.f32.mrf.mxu0
        %3190 = vdwg.mxu0
        %v3191 = vpack.c.bf16 %v3048, %v3048
        %v3192 = vpack.c.bf16 %v3094, %v3094
        %v3193 = vpack.c.bf16 %v3140, %v3140
        %v3194 = vpack.c.bf16 %v3186, %v3186
        %v3196 = vsel %vm1636, %v3191, 0
        %3198 = vmatprep.subr.bf16.mxu0 0
        %3199 = vmatpush1.bf16.msra.mxu0 0
        %3200 = vmatprep.subr.bf16.mxu0 0
        %3201 = vmatpush1.bf16.msra.mxu0 0
        %3202 = vmatprep.subr.bf16.mxu0 0
        %3203 = vmatpush1.bf16.msra.mxu0 0
        %3204 = vmatprep.subr.bf16.mxu0 0
        %3205 = vmatpush1.bf16.msra.mxu0 0
        %3206 = vmatprep.subr.bf16.mxu0 0
        %3207 = vmatpush1.bf16.msra.mxu0 0
        %3208 = vmatprep.subr.bf16.mxu0 0
        %3209 = vmatpush1.bf16.msra.mxu0 0
        %3210 = vmatprep.subr.bf16.mxu0 0
        %3211 = vmatpush1.bf16.msra.mxu0 0
        %3212 = vmatprep.subr.bf16.mxu0 0
        %3213 = vmatpush1.bf16.msra.mxu0 %v2076
        %3214 = vmatprep.subr.bf16.mxu0 0
        %3215 = vmatpush2.bf16.msra.mxu0 0
        %3216 = vmatprep.subr.bf16.mxu0 0
        %3217 = vmatpush2.bf16.msra.mxu0 0
        %3218 = vmatprep.subr.bf16.mxu0 0
        %3219 = vmatpush2.bf16.msra.mxu0 0
        %3220 = vmatprep.subr.bf16.mxu0 0
        %3221 = vmatpush2.bf16.msra.mxu0 0
        %3222 = vmatprep.subr.bf16.mxu0 0
        %3223 = vmatpush2.bf16.msra.mxu0 0
        %3224 = vmatprep.subr.bf16.mxu0 0
        %3225 = vmatpush2.bf16.msra.mxu0 0
        %3226 = vmatprep.subr.bf16.mxu0 0
        %3227 = vmatpush2.bf16.msra.mxu0 0
        %3228 = vmatprep.subr.bf16.mxu0 0
        %3229 = vmatpush2.bf16.msra.mxu0 0
        %3230 = vmatprep.mubr.bf16.mxu0 0
        %3231 = vmatmul.mubr.bf16.gmra.mxu0 %v3196
        %v3232 = vpop.f32.mrf.mxu0
        %v3233 = vadd.f32 0.0, %v3232
        %v3234 = vpop.f32.mrf.mxu0
        %v3235 = vpop.f32.mrf.mxu0
        %v3236 = vpop.f32.mrf.mxu0
        %3237 = vdwg.mxu0
        %v3239 = vsel %vm1636, %v3192, 0
        %3241 = vmatprep.subr.bf16.mxu0 0
        %3242 = vmatpush1.bf16.msra.mxu0 0
        %3243 = vmatprep.subr.bf16.mxu0 0
        %3244 = vmatpush1.bf16.msra.mxu0 0
        %3245 = vmatprep.subr.bf16.mxu0 0
        %3246 = vmatpush1.bf16.msra.mxu0 0
        %3247 = vmatprep.subr.bf16.mxu0 0
        %3248 = vmatpush1.bf16.msra.mxu0 0
        %3249 = vmatprep.subr.bf16.mxu0 0
        %3250 = vmatpush1.bf16.msra.mxu0 0
        %3251 = vmatprep.subr.bf16.mxu0 0
        %3252 = vmatpush1.bf16.msra.mxu0 0
        %3253 = vmatprep.subr.bf16.mxu0 0
        %3254 = vmatpush1.bf16.msra.mxu0 0
        %3255 = vmatprep.subr.bf16.mxu0 0
        %3256 = vmatpush1.bf16.msra.mxu0 %v2122
        %3257 = vmatprep.subr.bf16.mxu0 0
        %3258 = vmatpush2.bf16.msra.mxu0 0
        %3259 = vmatprep.subr.bf16.mxu0 0
        %3260 = vmatpush2.bf16.msra.mxu0 0
        %3261 = vmatprep.subr.bf16.mxu0 0
        %3262 = vmatpush2.bf16.msra.mxu0 0
        %3263 = vmatprep.subr.bf16.mxu0 0
        %3264 = vmatpush2.bf16.msra.mxu0 0
        %3265 = vmatprep.subr.bf16.mxu0 0
        %3266 = vmatpush2.bf16.msra.mxu0 0
        %3267 = vmatprep.subr.bf16.mxu0 0
        %3268 = vmatpush2.bf16.msra.mxu0 0
        %3269 = vmatprep.subr.bf16.mxu0 0
        %3270 = vmatpush2.bf16.msra.mxu0 0
        %3271 = vmatprep.subr.bf16.mxu0 0
        %3272 = vmatpush2.bf16.msra.mxu0 0
        %3273 = vmatprep.mubr.bf16.mxu0 0
        %3274 = vmatmul.mubr.bf16.gmra.mxu0 %v3239
        %v3275 = vpop.f32.mrf.mxu0
        %v3276 = vadd.f32 0.0, %v3275
        %v3277 = vpop.f32.mrf.mxu0
        %v3278 = vpop.f32.mrf.mxu0
        %v3279 = vpop.f32.mrf.mxu0
        %3280 = vdwg.mxu0
        %v3282 = vsel %vm1636, %v3193, 0
        %3284 = vmatprep.subr.bf16.mxu0 0
        %3285 = vmatpush1.bf16.msra.mxu0 0
        %3286 = vmatprep.subr.bf16.mxu0 0
        %3287 = vmatpush1.bf16.msra.mxu0 0
        %3288 = vmatprep.subr.bf16.mxu0 0
        %3289 = vmatpush1.bf16.msra.mxu0 0
        %3290 = vmatprep.subr.bf16.mxu0 0
        %3291 = vmatpush1.bf16.msra.mxu0 0
        %3292 = vmatprep.subr.bf16.mxu0 0
        %3293 = vmatpush1.bf16.msra.mxu0 0
        %3294 = vmatprep.subr.bf16.mxu0 0
        %3295 = vmatpush1.bf16.msra.mxu0 0
        %3296 = vmatprep.subr.bf16.mxu0 0
        %3297 = vmatpush1.bf16.msra.mxu0 0
        %3298 = vmatprep.subr.bf16.mxu0 0
        %3299 = vmatpush1.bf16.msra.mxu0 %v2168
        %3300 = vmatprep.subr.bf16.mxu0 0
        %3301 = vmatpush2.bf16.msra.mxu0 0
        %3302 = vmatprep.subr.bf16.mxu0 0
        %3303 = vmatpush2.bf16.msra.mxu0 0
        %3304 = vmatprep.subr.bf16.mxu0 0
        %3305 = vmatpush2.bf16.msra.mxu0 0
        %3306 = vmatprep.subr.bf16.mxu0 0
        %3307 = vmatpush2.bf16.msra.mxu0 0
        %3308 = vmatprep.subr.bf16.mxu0 0
        %3309 = vmatpush2.bf16.msra.mxu0 0
        %3310 = vmatprep.subr.bf16.mxu0 0
        %3311 = vmatpush2.bf16.msra.mxu0 0
        %3312 = vmatprep.subr.bf16.mxu0 0
        %3313 = vmatpush2.bf16.msra.mxu0 0
        %3314 = vmatprep.subr.bf16.mxu0 0
        %3315 = vmatpush2.bf16.msra.mxu0 0
        %3316 = vmatprep.mubr.bf16.mxu0 0
        %3317 = vmatmul.mubr.bf16.gmra.mxu0 %v3282
        %v3318 = vpop.f32.mrf.mxu0
        %v3319 = vadd.f32 0.0, %v3318
        %v3320 = vpop.f32.mrf.mxu0
        %v3321 = vpop.f32.mrf.mxu0
        %v3322 = vpop.f32.mrf.mxu0
        %3323 = vdwg.mxu0
        %v3325 = vsel %vm1636, %v3194, 0
        %3327 = vmatprep.subr.bf16.mxu0 0
        %3328 = vmatpush1.bf16.msra.mxu0 0
        %3329 = vmatprep.subr.bf16.mxu0 0
        %3330 = vmatpush1.bf16.msra.mxu0 0
        %3331 = vmatprep.subr.bf16.mxu0 0
        %3332 = vmatpush1.bf16.msra.mxu0 0
        %3333 = vmatprep.subr.bf16.mxu0 0
        %3334 = vmatpush1.bf16.msra.mxu0 0
        %3335 = vmatprep.subr.bf16.mxu0 0
        %3336 = vmatpush1.bf16.msra.mxu0 0
        %3337 = vmatprep.subr.bf16.mxu0 0
        %3338 = vmatpush1.bf16.msra.mxu0 0
        %3339 = vmatprep.subr.bf16.mxu0 0
        %3340 = vmatpush1.bf16.msra.mxu0 0
        %3341 = vmatprep.subr.bf16.mxu0 0
        %3342 = vmatpush1.bf16.msra.mxu0 %v2214
        %3343 = vmatprep.subr.bf16.mxu0 0
        %3344 = vmatpush2.bf16.msra.mxu0 0
        %3345 = vmatprep.subr.bf16.mxu0 0
        %3346 = vmatpush2.bf16.msra.mxu0 0
        %3347 = vmatprep.subr.bf16.mxu0 0
        %3348 = vmatpush2.bf16.msra.mxu0 0
        %3349 = vmatprep.subr.bf16.mxu0 0
        %3350 = vmatpush2.bf16.msra.mxu0 0
        %3351 = vmatprep.subr.bf16.mxu0 0
        %3352 = vmatpush2.bf16.msra.mxu0 0
        %3353 = vmatprep.subr.bf16.mxu0 0
        %3354 = vmatpush2.bf16.msra.mxu0 0
        %3355 = vmatprep.subr.bf16.mxu0 0
        %3356 = vmatpush2.bf16.msra.mxu0 0
        %3357 = vmatprep.subr.bf16.mxu0 0
        %3358 = vmatpush2.bf16.msra.mxu0 0
        %3359 = vmatprep.mubr.bf16.mxu0 0
        %3360 = vmatmul.mubr.bf16.gmra.mxu0 %v3325
        %v3361 = vpop.f32.mrf.mxu0
        %v3362 = vadd.f32 0.0, %v3361
        %v3363 = vpop.f32.mrf.mxu0
        %v3364 = vpop.f32.mrf.mxu0
        %v3365 = vpop.f32.mrf.mxu0
        %3366 = vdwg.mxu0
        %v3367 = vsel %vm884, %v3233, 0.0
        %v3368 = vsel %vm884, %v3276, 0.0
        %v3369 = vadd.f32 %v3367, %v3368
        %v3370 = vsel %vm884, %v3319, 0.0
        %v3371 = vadd.f32 %v3369, %v3370
        %v3372 = vsel %vm884, %v3362, 0.0
        %v3373 = vadd.f32 %v3371, %v3372
        %v3374 = vadd.f32 %v3373, %v2267
        %v3375 = vadd.f32 %v794, %v2269
        %v3376 = vadd.f32 %v795, %v3374
        %v3377 = vsel %vm884, %v3375, 0.0
        %3378 = vadd.xlane.f32.xlu0 %v3377
        %v3379 = vpop.xlane.xlu0 %3378
        %v3380 = vsel %vm884, %v3376, 0.0
        %3381 = vadd.xlane.f32.xlu0 %v3380
        %v3382 = vpop.xlane.xlu0 %3381
        %v3383 = vmul.f32 %v3379, %v891
        %v3384 = vmul.f32 %v3382, %v891
        %v3385 = vsub.f32 %v3375, %v3383
        %v3386 = vsub.f32 %v3376, %v3384
        %v3387 = vmul.f32 %v3385, %v3385
        %v3388 = vmul.f32 %v3386, %v3386
        %v3389 = vsel %vm884, %v3387, 0.0
        %3390 = vadd.xlane.f32.xlu0 %v3389
        %v3391 = vpop.xlane.xlu0 %3390
        %v3392 = vsel %vm884, %v3388, 0.0
        %3393 = vadd.xlane.f32.xlu0 %v3392
        %v3394 = vpop.xlane.xlu0 %3393
        %v3395 = vmul.f32 %v3391, %v891
        %v3396 = vmul.f32 %v3394, %v891
        %v3397 = vadd.f32 %v3395, 1e-05
        %v3398 = vadd.f32 %v3396, 1e-05
        %v3399 = vrsqrt.pop %v3397
        %v3400 = vrsqrt.pop %v3398
        %v3401 = vmul.f32 %v3385, %v3399
        %v3402 = vmul.f32 %v3386, %v3400
        %v3404 = vlaneseq
        %v3405 = vshrl.u32 %v3404, 7
        %v3406 = vsub.s32 0, %v3405
        %v3407 = vrot.slane %v798, %v3406
        %v3409 = vmul.f32 %v3401, %v3407
        %v3410 = vmul.f32 %v3402, %v3407
        %v3412 = vlaneseq
        %v3413 = vshrl.u32 %v3412, 7
        %v3414 = vsub.s32 0, %v3413
        %v3415 = vrot.slane %v799, %v3414
        %v3417 = vadd.f32 %v3409, %v3415
        %v3418 = vadd.f32 %v3410, %v3415
        %v3419 = vpack.c.bf16 %v3418, %v3417
        %v3421 = vlaneseq
        %v3422 = vshrl.u32 %v3421, 7
        %v3423 = vsub.s32 0, %v3422
        %v3424 = vrot.slane %v869, %v3423
        %v3430 = vunpack.c.l.b16 %v865
        %v3431 = vunpack.c.l.b16 %v866
        %v3432 = vunpack.c.l.b16 %v867
        %v3433 = vunpack.c.l.b16 %v868
        %v3434 = vpack.c.b16 %v3431, %v3430
        %v3435 = vpack.c.b16 %v3433, %v3432
        %v3439 = vsel %vm884, %v3419, 0
        %3441 = vmatprep.subr.bf16.mxu0 0
        %3442 = vmatpush1.bf16.msra.mxu0 0
        %3443 = vmatprep.subr.bf16.mxu0 0
        %3444 = vmatpush1.bf16.msra.mxu0 0
        %3445 = vmatprep.subr.bf16.mxu0 0
        %3446 = vmatpush1.bf16.msra.mxu0 0
        %3447 = vmatprep.subr.bf16.mxu0 0
        %3448 = vmatpush1.bf16.msra.mxu0 0
        %3449 = vmatprep.subr.bf16.mxu0 0
        %3450 = vmatpush1.bf16.msra.mxu0 0
        %3451 = vmatprep.subr.bf16.mxu0 0
        %3452 = vmatpush1.bf16.msra.mxu0 0
        %3453 = vmatprep.subr.bf16.mxu0 0
        %3454 = vmatpush1.bf16.msra.mxu0 %v3435
        %3455 = vmatprep.subr.bf16.mxu0 0
        %3456 = vmatpush1.bf16.msra.mxu0 %v3434
        %3457 = vmatprep.subr.bf16.mxu0 0
        %3458 = vmatpush2.bf16.msra.mxu0 0
        %3459 = vmatprep.subr.bf16.mxu0 0
        %3460 = vmatpush2.bf16.msra.mxu0 0
        %3461 = vmatprep.subr.bf16.mxu0 0
        %3462 = vmatpush2.bf16.msra.mxu0 0
        %3463 = vmatprep.subr.bf16.mxu0 0
        %3464 = vmatpush2.bf16.msra.mxu0 0
        %3465 = vmatprep.subr.bf16.mxu0 0
        %3466 = vmatpush2.bf16.msra.mxu0 0
        %3467 = vmatprep.subr.bf16.mxu0 0
        %3468 = vmatpush2.bf16.msra.mxu0 0
        %3469 = vmatprep.subr.bf16.mxu0 0
        %3470 = vmatpush2.bf16.msra.mxu0 0
        %3471 = vmatprep.subr.bf16.mxu0 0
        %3472 = vmatpush2.bf16.msra.mxu0 0
        %3473 = vmatprep.mubr.bf16.mxu0 0
        %3474 = vmatmul.mubr.bf16.gmra.mxu0 %v3439
        %v3475 = vpop.f32.mrf.mxu0
        %v3476 = vadd.f32 %v3424, %v3475
        %v3477 = vpop.f32.mrf.mxu0
        %v3478 = vpop.f32.mrf.mxu0
        %v3479 = vadd.f32 %v3424, %v3478
        %v3480 = vpop.f32.mrf.mxu0
        %3481 = vdwg.mxu0
        %v3482 = vmax.f32 %v3476, 0.0
        %v3483 = vmax.f32 %v3479, 0.0
        %v3484 = vpack.c.bf16 %v3483, %v3482
        %v3486 = vlaneseq
        %v3487 = vshrl.u32 %v3486, 7
        %v3488 = vsub.s32 0, %v3487
        %v3489 = vrot.slane %v878, %v3488
        %v3499 = vunpack.c.l.b16 %v870
        %v3500 = vunpack.c.l.b16 %v871
        %v3501 = vunpack.c.l.b16 %v872
        %v3502 = vunpack.c.l.b16 %v873
        %v3503 = vunpack.c.l.b16 %v874
        %v3504 = vunpack.c.l.b16 %v875
        %v3505 = vunpack.c.l.b16 %v876
        %v3506 = vunpack.c.l.b16 %v877
        %v3507 = vpack.c.b16 %v3500, %v3499
        %v3508 = vpack.c.b16 %v3502, %v3501
        %v3509 = vpack.c.b16 %v3504, %v3503
        %v3510 = vpack.c.b16 %v3506, %v3505
        %vm3515 = vcmask 523264
        %v3517 = vsel %vm3515, %v3484, 0
        %3519 = vmatprep.subr.bf16.mxu0 0
        %3520 = vmatpush1.bf16.msra.mxu0 0
        %3521 = vmatprep.subr.bf16.mxu0 0
        %3522 = vmatpush1.bf16.msra.mxu0 0
        %3523 = vmatprep.subr.bf16.mxu0 0
        %3524 = vmatpush1.bf16.msra.mxu0 0
        %3525 = vmatprep.subr.bf16.mxu0 0
        %3526 = vmatpush1.bf16.msra.mxu0 0
        %3527 = vmatprep.subr.bf16.mxu0 0
        %3528 = vmatpush1.bf16.msra.mxu0 %v3510
        %3529 = vmatprep.subr.bf16.mxu0 0
        %3530 = vmatpush1.bf16.msra.mxu0 %v3509
        %3531 = vmatprep.subr.bf16.mxu0 0
        %3532 = vmatpush1.bf16.msra.mxu0 %v3508
        %3533 = vmatprep.subr.bf16.mxu0 0
        %3534 = vmatpush1.bf16.msra.mxu0 %v3507
        %3535 = vmatprep.subr.bf16.mxu0 0
        %3536 = vmatpush2.bf16.msra.mxu0 0
        %3537 = vmatprep.subr.bf16.mxu0 0
        %3538 = vmatpush2.bf16.msra.mxu0 0
        %3539 = vmatprep.subr.bf16.mxu0 0
        %3540 = vmatpush2.bf16.msra.mxu0 0
        %3541 = vmatprep.subr.bf16.mxu0 0
        %3542 = vmatpush2.bf16.msra.mxu0 0
        %3543 = vmatprep.subr.bf16.mxu0 0
        %3544 = vmatpush2.bf16.msra.mxu0 0
        %3545 = vmatprep.subr.bf16.mxu0 0
        %3546 = vmatpush2.bf16.msra.mxu0 0
        %3547 = vmatprep.subr.bf16.mxu0 0
        %3548 = vmatpush2.bf16.msra.mxu0 0
        %3549 = vmatprep.subr.bf16.mxu0 0
        %3550 = vmatpush2.bf16.msra.mxu0 0
        %3551 = vmatprep.mubr.bf16.mxu0 0
        %3552 = vmatmul.mubr.bf16.gmra.mxu0 %v3517
        %v3553 = vpop.f32.mrf.mxu0
        %v3554 = vadd.f32 %v3489, %v3553
        %v3555 = vpop.f32.mrf.mxu0
        %v3556 = vpop.f32.mrf.mxu0
        %v3557 = vadd.f32 %v3489, %v3556
        %v3558 = vpop.f32.mrf.mxu0
        %3559 = vdwg.mxu0
        %v3560 = vadd.f32 %v3375, %v3554
        %v3561 = vadd.f32 %v3376, %v3557
        %3562 = vst.msk [vmem:[#allocation2] sm:$0xff] %vm884, %v3560
        %3563 = vst.msk [vmem:[#allocation2 + $0x8] sm:$0xff] %vm884, %v3561
        %p3564 = scmp.eq.s32.totalorder %s29, 1
        // Predicated region
        $region93: #{tpu_custom_call.1} parent=87 // pred_check
          %p3565 = pneg %p3564
        $region94: #{tpu_custom_call.1} parent=87 // pred_check_branch
          %3567 = sbr.rel (%p3565) target = $region96
        $region95: #{tpu_custom_call.1} parent=87 // pred_region
          %3568 = vst.msk [vmem:[#allocation3] sm:$0xff] %vm884, %v3560
          %3569 = vst.msk [vmem:[#allocation3 + $0x8] sm:$0xff] %vm884, %v3561
        $region96: #{tpu_custom_call.1} parent=87 // pred_fallthru
          _
        // Predicated region
        $region97: #{tpu_custom_call.1} parent=87 // pred_check
          %p3570 = pneg %p479
        $region98: #{tpu_custom_call.1} parent=87 // pred_check_branch
          %3572 = sbr.rel (%p3570) target = $region100
        $region99: #{tpu_custom_call.1} parent=87 // pred_region
          %s3574 = ssub.s32 256, 256
          %3575 = vsyncadd [#allocation4], %s3574
          %s3576 = sshll.u32 [#allocation3], 4
          %s3577 = int_to_ptr.vmem [resolvable:$true] %s3576
          %3582 = dma.vmem_to_hbm [thread:$0]  %s3577, 256, %s17, [#allocation4], 128, 128, 8
        $region100: #{tpu_custom_call.1} parent=87 // pred_fallthru
          _
        // Predicated region
        $region101: #{tpu_custom_call.1} parent=87 // pred_check
          %p3583 = pneg %p479
        $region102: #{tpu_custom_call.1} parent=87 // pred_check_branch
          %3585 = sbr.rel (%p3583) target = $region104
        $region103: #{tpu_custom_call.1} parent=87 // pred_region
          %3586 = dma.done [#allocation4], 256
        $region104: #{tpu_custom_call.1} parent=87 // pred_fallthru
          _
      $region88: #{tpu_custom_call.1} parent=5 // pred_fallthru
        _
      %p3587 = scmp.le.s32.totalorder 2, %s24
      // Predicated region
      $region105: #{tpu_custom_call.1} parent=5 // pred_check
        %p3588 = pneg %p3587
      $region106: #{tpu_custom_call.1} parent=5 // pred_check_branch
        %3590 = sbr.rel (%p3588) target = $region108
      $region107: #{tpu_custom_call.1} parent=5 // pred_region
        %s3591 = ssub.s32 %s24, 2
      $region108: #{tpu_custom_call.1} parent=5 // pred_fallthru
        _
    $region6: #{tpu_custom_call.1} parent=1 // loop_footer
      %s28 = sadd.s32 1, %s24
    $region7: #{tpu_custom_call.1} parent=1 // loop_footer_branch
      %23 = sbr.rel target = $region3
    $region8: #{tpu_custom_call.1} parent=1 // loop_exit
      _
    %3592 = vsyncpa [#allocation4], 1
    %s3593 = scalar_lea.sflag [#allocation4], 1
    %3594 = vsyncpa %s3593, 1

</llo_original>
